<compile_context>
chip_gen: v5e
topology: v5e:2x2
jax: 0.10.0
libtpu: 0.0.40
codegen_flags: <defaults>
</compile_context>

<pallas_src>
import math

import jax
import jax.numpy as jnp
from jax import lax
from jax.experimental import pallas as pl
from jax.experimental.pallas import tpu as pltpu

EPS = 1e-5                       # nn.BatchNorm2d default eps
VMEM_LIMIT = 48 * 1024 * 1024    # <= v7x scoped budget, generous on v5e/v6e


# ----------------------------- Pallas kernels ------------------------------ #

def _matmul_stats_kernel(p_ref, w_ref, y_ref, s1_ref, s2_ref):
    """conv-as-matmul (bf16 MXU, f32 acc) + per-tile partial BN statistics.

    The bf16 store of y happens after the f32 statistics are taken, so the
    batch statistics are unaffected by the narrower activation dtype.
    Zero-padded tail patch rows contribute exactly 0 to both moments (the
    convs carry no bias), so no tail-row masking is required.
    """
    y = jnp.dot(p_ref[...], w_ref[...], preferred_element_type=jnp.float32)
    y_ref[...] = y.astype(y_ref.dtype)
    s1_ref[0] = jnp.sum(y, axis=0, keepdims=True)
    s2_ref[0] = jnp.sum(y * y, axis=0, keepdims=True)


def _make_affine_kernel(has_residual, apply_relu):
    """BN normalize (precomputed scale/shift) + optional residual + ReLU."""

    def kernel(*refs):
        if has_residual:
            y_ref, sc_ref, sh_ref, r_ref, o_ref = refs
        else:
            y_ref, sc_ref, sh_ref, o_ref = refs
        o = y_ref[...].astype(jnp.float32) * sc_ref[...] + sh_ref[...]
        if has_residual:
            o = o + r_ref[...].astype(jnp.float32)
        if apply_relu:
            o = jnp.maximum(o, 0.0)
        o_ref[...] = o.astype(o_ref.dtype)

    return kernel


def _make_pool_kernel(w_out):
    """Fused BN affine + ReLU + 3x3/2 maxpool (+ outer F.relu).

    Tap refs are (TN, W2+1, C) even/odd-column slabs of the edge-padded raw
    conv1 output; the three W-window positions are contiguous slices of them.
    Edge-replicate padding / clamping only ever duplicates a value that is
    already inside the pooling window, so the max is exact.
    relu-before-pool + the outer F.relu fold into a single ReLU because
    max_t relu(z_t) == relu(max_t z_t).
    """

    def kernel(sc_ref, sh_ref, t00, t01, t10, t11, t20, t21, o_ref):
        sc = sc_ref[...]                       # (1, C) f32, broadcasts
        sh = sh_ref[...]
        m = None
        for r_even, r_odd in ((t00, t01), (t10, t11), (t20, t21)):
            taps = (r_even[:, 0:w_out, :],         # padded col 2*w2
                    r_odd[:, 0:w_out, :],          # padded col 2*w2 + 1
                    r_even[:, 1:w_out + 1, :])     # padded col 2*w2 + 2
            for t in taps:
                z = t.astype(jnp.float32) * sc + sh
                m = z if m is None else jnp.maximum(m, z)
        o_ref[...] = jnp.maximum(m, 0.0).astype(o_ref.dtype)

    return kernel


# ------------------------------ call wrappers ------------------------------ #

def _tile_rows(m, max_rows):
    """Pick (tile_rows, padded_rows).

    Tiles are multiples of 8 (or the full dim for tiny m), and we aim for at
    least two grid steps so that both v7x TensorCores get work under the
    'parallel' dimension semantics (v5e/v6e have a single core and are
    unaffected)."""
    if m < 16:
        return m, m
    cap = min(max_rows, (m // 2 // 8) * 8)
    if cap < 8:
        return m, m
    t = cap
    while t >= 8 and m % t != 0:
        t -= 8
    if t >= 8:
        return t, m
    t = cap
    return t, ((m + t - 1) // t) * t


def _fold(m, c):
    """Lane-dense fold factor so the last dim becomes 128 (free reshape)."""
    if c < 128 and 128 % c == 0 and m % (128 // c) == 0:
        return 128 // c
    return 1


def _largest_divisor_leq(n, cap):
    cap = max(1, min(n, cap))
    for d in range(cap, 0, -1):
        if n % d == 0:
            return d
    return 1


def conv_matmul_stats(patches, wmat, *, max_rows=2048):
    """Tiled (M,K)@(K,Cout) on the MXU + per-tile partial sum / sumsq.

    `patches` and `wmat` must already be bf16 (built once, in bf16, by the
    caller -- no duplicate f32 materialization)."""
    assert patches.dtype == jnp.bfloat16 and wmat.dtype == jnp.bfloat16
    m, k = patches.shape
    cout = wmat.shape[1]
    tm, m_pad = _tile_rows(m, max_rows)
    if m_pad != m:
        patches = jnp.pad(patches, ((0, m_pad - m), (0, 0)))
    grid = m_pad // tm

    bytes_accessed = (m_pad * k * 2 + k * cout * 2 + m_pad * cout * 2
                      + 2 * grid * cout * 4)
    y, s1, s2 = pl.pallas_call(
        _matmul_stats_kernel,
        grid=(grid,),
        in_specs=[
            pl.BlockSpec((tm, k), lambda i: (i, 0)),
            pl.BlockSpec((k, cout), lambda i: (0, 0)),   # weight stays in VMEM
        ],
        out_specs=[
            pl.BlockSpec((tm, cout), lambda i: (i, 0)),
            pl.BlockSpec((1, 1, cout), lambda i: (i, 0, 0)),
            pl.BlockSpec((1, 1, cout), lambda i: (i, 0, 0)),
        ],
        out_shape=[
            jax.ShapeDtypeStruct((m_pad, cout), jnp.bfloat16),
            jax.ShapeDtypeStruct((grid, 1, cout), jnp.float32),
            jax.ShapeDtypeStruct((grid, 1, cout), jnp.float32),
        ],
        compiler_params=pltpu.CompilerParams(
            dimension_semantics=("parallel",),
            vmem_limit_bytes=VMEM_LIMIT),
        cost_estimate=pl.CostEstimate(
            flops=2 * m_pad * k * cout, transcendentals=0,
            bytes_accessed=bytes_accessed),
    )(patches, wmat)
    if m_pad != m:
        y = y[:m]
    return y, jnp.sum(s1, axis=(0, 1)), jnp.sum(s2, axis=(0, 1))


def _bn_scale_shift(s, ss, count, gamma, beta):
    """Fold training-mode batch statistics into a per-channel affine."""
    mean = s / count
    var = jnp.maximum(ss / count - mean * mean, 0.0)   # biased variance
    scale = gamma.reshape(-1) * lax.rsqrt(var + EPS)
    shift = beta.reshape(-1) - mean * scale
    return scale, shift


def bn_affine_act(y, scale, shift, residual=None, *, apply_relu,
                  out_dtype=jnp.bfloat16, max_rows=4096):
    m, c = y.shape
    f = _fold(m, c)
    mf, cf = m // f, c * f
    yf = y.reshape(mf, cf)                       # lane-dense view (free reshape)
    sc = jnp.tile(scale.reshape(1, c).astype(jnp.float32), (1, f))
    sh = jnp.tile(shift.reshape(1, c).astype(jnp.float32), (1, f))
    rf = residual.reshape(mf, cf) if residual is not None else None

    tm, m_pad = _tile_rows(mf, max_rows)
    if m_pad != mf:
        yf = jnp.pad(yf, ((0, m_pad - mf), (0, 0)))
        if rf is not None:
            rf = jnp.pad(rf, ((0, m_pad - mf), (0, 0)))
    grid = m_pad // tm

    inputs = [yf, sc, sh]
    in_specs = [pl.BlockSpec((tm, cf), lambda i: (i, 0)),
                pl.BlockSpec((1, cf), lambda i: (0, 0)),
                pl.BlockSpec((1, cf), lambda i: (0, 0))]
    if rf is not None:
        inputs.append(rf)
        in_specs.append(pl.BlockSpec((tm, cf), lambda i: (i, 0)))

    out = pl.pallas_call(
        _make_affine_kernel(residual is not None, apply_relu),
        grid=(grid,),
        in_specs=in_specs,
        out_specs=pl.BlockSpec((tm, cf), lambda i: (i, 0)),
        out_shape=jax.ShapeDtypeStruct((m_pad, cf), out_dtype),
        compiler_params=pltpu.CompilerParams(
            dimension_semantics=("parallel",),
            vmem_limit_bytes=VMEM_LIMIT),
    )(*inputs)
    if m_pad != mf:
        out = out[:mf]
    return out.reshape(m, c)


def maxpool_bn_relu(y1, scale, shift, N, H1, W1, C, *, target_rows=2048):
    """Fused BN + ReLU + MaxPool(3,2,1) + outer F.relu on conv1's raw output.

    The only extra HBM traffic is one bf16 repack of y1 (edge-pad in W plus
    even/odd-column de-interleave, a single fused XLA copy); the 9 window taps
    are then just BlockSpec views / in-kernel slices of that buffer."""
    H2 = (H1 - 1) // 2 + 1
    W2 = (W1 - 1) // 2 + 1
    Wp = 2 * W2 + 2                              # even, >= W1 + 2

    x = y1.reshape(N, H1, W1, C)
    xp = jnp.pad(x, ((0, 0), (0, 0), (1, Wp - W1 - 1), (0, 0)), mode="edge")
    # de-interleave even/odd padded columns: (N, H1, 2, Wp//2, C)
    xd = jnp.transpose(xp.reshape(N, H1, Wp // 2, 2, C), (0, 1, 3, 2, 4))
    Wh = Wp // 2

    TN = _largest_divisor_leq(N, max(1, target_rows // max(W2, 1)))
    grid = (N // TN, H2)

    def tap_spec(i, q):
        def imap(bn, h2, i=i, q=q):
            # window rows are 2*h2-1 .. 2*h2+1; replicate-clamp at the borders
            row = jnp.clip(2 * h2 - 1 + i, 0, H1 - 1)
            return (bn, row, q, 0, 0)
        return pl.BlockSpec((TN, None, None, Wh, C), imap)

    inputs = [scale.reshape(1, C).astype(jnp.float32),
              shift.reshape(1, C).astype(jnp.float32)]
    in_specs = [pl.BlockSpec((1, C), lambda bn, h2: (0, 0)),
                pl.BlockSpec((1, C), lambda bn, h2: (0, 0))]
    for i in range(3):
        for q in range(2):
            inputs.append(xd)
            in_specs.append(tap_spec(i, q))

    out = pl.pallas_call(
        _make_pool_kernel(W2),
        grid=grid,
        in_specs=in_specs,
        out_specs=pl.BlockSpec((TN, None, W2, C), lambda bn, h2: (bn, h2, 0, 0)),
        out_shape=jax.ShapeDtypeStruct((N, H2, W2, C), jnp.bfloat16),
        compiler_params=pltpu.CompilerParams(
            dimension_semantics=("parallel", "parallel"),
            vmem_limit_bytes=VMEM_LIMIT),
        cost_estimate=pl.CostEstimate(
            flops=22 * N * H2 * W2 * C, transcendentals=0,
            bytes_accessed=(9 * N * H2 * Wh * C + N * H2 * W2 * C) * 2),
    )(*inputs)
    return out.reshape(N * H2 * W2, C), H2, W2


# ------------------------------- JAX glue ---------------------------------- #

def _im2col_patches(x_nhwc, kh, kw, stride, pad):
    """Materialize the (N*Ho*Wo, kh*kw*C) patch matrix (bf16, built once).

    TODO(synk): for the 3x3 convs, replace this with in-VMEM patch building
    from halo row-slabs (pl.ANY + manual DMA) to kill the 9x read blow-up."""
    N, H, W, C = x_nhwc.shape
    xp = jnp.pad(x_nhwc, ((0, 0), (pad, pad), (pad, pad), (0, 0)))
    Ho = (H + 2 * pad - kh) // stride + 1
    Wo = (W + 2 * pad - kw) // stride + 1
    cols = []
    for i in range(kh):
        for j in range(kw):
            sl = lax.slice(
                xp, (0, i, j, 0),
                (N, i + (Ho - 1) * stride + 1, j + (Wo - 1) * stride + 1, C),
                (1, stride, stride, 1))
            cols.append(sl.reshape(N * Ho * Wo, C))
    return jnp.concatenate(cols, axis=-1), (N, Ho, Wo, C)


def init_params(key):
    """Mirror the module __init__: conv ~ N(0, sqrt(2/(kh*kw*Cout))), BN
    gamma=1 / beta=0 per layer.  Weights are stored HWIO flattened to
    (KH*KW*Cin, Cout), matching the im2col column order.  conv2b's bias is
    omitted: a conv bias immediately followed by training-mode BatchNorm is
    cancelled exactly, so the forward output is unchanged."""
    k1, k2, k3 = jax.random.split(key, 3)
    w1 = jax.random.normal(k1, (7, 7, 3, 64), jnp.float32) * math.sqrt(2.0 / (7 * 7 * 64))
    w2a = jax.random.normal(k2, (3, 3, 64, 64), jnp.float32) * math.sqrt(2.0 / (3 * 3 * 64))
    w2b = jax.random.normal(k3, (3, 3, 64, 64), jnp.float32) * math.sqrt(2.0 / (3 * 3 * 64))
    ones, zeros = jnp.ones((1, 64), jnp.float32), jnp.zeros((1, 64), jnp.float32)
    return dict(
        w1=w1.reshape(7 * 7 * 3, 64),
        w2a=w2a.reshape(3 * 3 * 64, 64),
        w2b=w2b.reshape(3 * 3 * 64, 64),
        g1=ones, b1=zeros,
        g2a=ones, b2a=zeros,
        g2b=ones, b2b=zeros,
    )


@jax.jit
def resnet18_client_forward(x_nchw, params):
    xb = jnp.transpose(x_nchw, (0, 2, 3, 1)).astype(jnp.bfloat16)  # NCHW->NHWC
    w1 = params["w1"].astype(jnp.bfloat16)
    w2a = params["w2a"].astype(jnp.bfloat16)
    w2b = params["w2b"].astype(jnp.bfloat16)

    # ---- layer1: Conv 7x7/2 p3 (no bias) -> BN -> ReLU -> MaxPool 3x3/2 p1,
    #      then the outer F.relu.  BN+ReLU+pool(+outer relu) fused in one
    #      Pallas kernel reading a single repacked copy of y1.
    p1, (N, H1, W1, _) = _im2col_patches(xb, 7, 7, 2, 3)      # (M1, 147) bf16
    y1, s1, ss1 = conv_matmul_stats(p1, w1)                   # (M1, 64) bf16
    sc1, sh1 = _bn_scale_shift(s1, ss1, y1.shape[0], params["g1"], params["b1"])
    res1, H2, W2 = maxpool_bn_relu(y1, sc1, sh1, N, H1, W1, 64)   # (M2, 64) bf16

    # ---- layer2 conv a: 3x3/1 p1 (no bias) -> BN -> ReLU
    p2, _ = _im2col_patches(res1.reshape(N, H2, W2, 64), 3, 3, 1, 1)
    y2, s2, ss2 = conv_matmul_stats(p2, w2a)
    sc2, sh2 = _bn_scale_shift(s2, ss2, y2.shape[0], params["g2a"], params["b2a"])
    a2 = bn_affine_act(y2, sc2, sh2, apply_relu=True, out_dtype=jnp.bfloat16)

    # ---- layer2 conv b: 3x3/1 p1 -> BN ; + residual1 ; ReLU
    # (the conv bias is dropped: training-mode BN cancels it exactly)
    p3, _ = _im2col_patches(a2.reshape(N, H2, W2, 64), 3, 3, 1, 1)
    y3, s3, ss3 = conv_matmul_stats(p3, w2b)
    sc3, sh3 = _bn_scale_shift(s3, ss3, y3.shape[0], params["g2b"], params["b2b"])
    out = bn_affine_act(y3, sc3, sh3, residual=res1, apply_relu=True,
                        out_dtype=jnp.float32)

    return jnp.transpose(out.reshape(N, H2, W2, 64), (0, 3, 1, 2))  # -> NCHW


if __name__ == "__main__":
    x = jax.random.normal(jax.random.PRNGKey(0), (2, 3, 16, 16), jnp.float32)
    params = init_params(jax.random.PRNGKey(1))
    out = resnet18_client_forward(x, params)
    jax.block_until_ready(out)
    assert out.shape == (2, 64, 4, 4) and out.dtype == jnp.float32
    assert bool(jnp.all(jnp.isfinite(out)))
    print("KERNEL_OK")
</pallas_src>

<mosaic_0001>
module attributes {stable_mosaic.version = 11 : i64} {
  func.func @_matmul_stats_kernel(%arg0: i32, %arg1: memref<64x147xbf16, #tpu.memory_space<vmem>>, %arg2: memref<147x64xbf16, #tpu.memory_space<vmem>>, %arg3: memref<64x64xbf16, #tpu.memory_space<vmem>>, %arg4: memref<1x1x64xf32, #tpu.memory_space<vmem>>, %arg5: memref<1x1x64xf32, #tpu.memory_space<vmem>>) attributes {dimension_semantics = [#tpu.dimension_semantics<parallel>], iteration_bounds = array<i64: 2>, scalar_prefetch = 0 : i64, scratch_operands = 0 : i64, tpu.core_type = #tpu.core_type<tc>, window_params = [{transform_indices = @transform_0, window_bounds = array<i64: 64, 147>}, {pipeline_mode = #tpu.pipeline_mode<synchronous>, transform_indices = @transform_1, window_bounds = array<i64: 147, 64>}, {transform_indices = @transform_2, window_bounds = array<i64: 64, 64>}, {transform_indices = @transform_3, window_bounds = array<i64: 1, 1, 64>}, {transform_indices = @transform_4, window_bounds = array<i64: 1, 1, 64>}]} {
    %c0 = arith.constant 0 : index
    %c0_0 = arith.constant 0 : index
    %0 = vector.load %arg1[%c0, %c0_0] : memref<64x147xbf16, #tpu.memory_space<vmem>>, vector<64x147xbf16>
    %c0_1 = arith.constant 0 : index
    %c0_2 = arith.constant 0 : index
    %1 = vector.load %arg2[%c0_1, %c0_2] : memref<147x64xbf16, #tpu.memory_space<vmem>>, vector<147x64xbf16>
    %cst = arith.constant dense<0.000000e+00> : vector<64x64xf32>
    %2 = tpu.matmul %0, %1, %cst {dimension_numbers = #tpu.dot_dimension_numbers<[1], [0], [0], [1], [0, 0, 1, 1], [], []>} : vector<64x147xbf16>, vector<147x64xbf16>, vector<64x64xf32> -> vector<64x64xf32>
    %3 = arith.truncf %2 : vector<64x64xf32> to vector<64x64xbf16>
    %c0_3 = arith.constant 0 : index
    %c0_4 = arith.constant 0 : index
    %4 = vector.load %arg3[%c0_3, %c0_4] : memref<64x64xbf16, #tpu.memory_space<vmem>>, vector<64x64xbf16>
    tpu.vector_store %arg3[%c0_3, %c0_4], %3 {strides = array<i32>} : memref<64x64xbf16, #tpu.memory_space<vmem>>, vector<64x64xbf16>,
    %cst_5 = arith.constant dense<0.000000e+00> : vector<64xf32>
    %5 = vector.multi_reduction <add>, %2, %cst_5 [0] : vector<64x64xf32> to vector<64xf32>
    %6 = vector.shape_cast %5 : vector<64xf32> to vector<1x64xf32>
    %c0_6 = arith.constant 0 : index
    %c0_7 = arith.constant 0 : index
    %c0_8 = arith.constant 0 : index
    %7 = vector.load %arg4[%c0_6, %c0_7, %c0_8] : memref<1x1x64xf32, #tpu.memory_space<vmem>>, vector<1x1x64xf32>
    %8 = vector.shape_cast %7 : vector<1x1x64xf32> to vector<1x64xf32>
    %9 = vector.shape_cast %6 : vector<1x64xf32> to vector<1x1x64xf32>
    tpu.vector_store %arg4[%c0_6, %c0_7, %c0_8], %9 {strides = array<i32>} : memref<1x1x64xf32, #tpu.memory_space<vmem>>, vector<1x1x64xf32>,
    %10 = arith.mulf %2, %2 : vector<64x64xf32>
    %cst_9 = arith.constant dense<0.000000e+00> : vector<64xf32>
    %11 = vector.multi_reduction <add>, %10, %cst_9 [0] : vector<64x64xf32> to vector<64xf32>
    %12 = vector.shape_cast %11 : vector<64xf32> to vector<1x64xf32>
    %c0_10 = arith.constant 0 : index
    %c0_11 = arith.constant 0 : index
    %c0_12 = arith.constant 0 : index
    %13 = vector.load %arg5[%c0_10, %c0_11, %c0_12] : memref<1x1x64xf32, #tpu.memory_space<vmem>>, vector<1x1x64xf32>
    %14 = vector.shape_cast %13 : vector<1x1x64xf32> to vector<1x64xf32>
    %15 = vector.shape_cast %12 : vector<1x64xf32> to vector<1x1x64xf32>
    tpu.vector_store %arg5[%c0_10, %c0_11, %c0_12], %15 {strides = array<i32>} : memref<1x1x64xf32, #tpu.memory_space<vmem>>, vector<1x1x64xf32>,
    return
  }
  func.func @transform_0(%arg0: i32) -> (i32, i32) {
    %c0_i32 = arith.constant 0 : i32
    %c0_i32_0 = arith.constant 0 : i32
    return %arg0, %c0_i32 : i32, i32
  }
  func.func @transform_1(%arg0: i32) -> (i32, i32) {
    %c0_i32 = arith.constant 0 : i32
    %c0_i32_0 = arith.constant 0 : i32
    %c0_i32_1 = arith.constant 0 : i32
    return %c0_i32, %c0_i32_0 : i32, i32
  }
  func.func @transform_2(%arg0: i32) -> (i32, i32) {
    %c0_i32 = arith.constant 0 : i32
    %c0_i32_0 = arith.constant 0 : i32
    return %arg0, %c0_i32 : i32, i32
  }
  func.func @transform_3(%arg0: i32) -> (i32, i32, i32) {
    %c0_i32 = arith.constant 0 : i32
    %c0_i32_0 = arith.constant 0 : i32
    %c0_i32_1 = arith.constant 0 : i32
    return %arg0, %c0_i32, %c0_i32_0 : i32, i32, i32
  }
  func.func @transform_4(%arg0: i32) -> (i32, i32, i32) {
    %c0_i32 = arith.constant 0 : i32
    %c0_i32_0 = arith.constant 0 : i32
    %c0_i32_1 = arith.constant 0 : i32
    return %arg0, %c0_i32, %c0_i32_0 : i32, i32, i32
  }
}

module attributes {stable_mosaic.version = 11 : i64} {
  func.func @kernel(%arg0: i32, %arg1: i32, %arg2: memref<1x64xf32, #tpu.memory_space<vmem>>, %arg3: memref<1x64xf32, #tpu.memory_space<vmem>>, %arg4: memref<2x1x1x5x64xbf16, #tpu.memory_space<vmem>>, %arg5: memref<2x1x1x5x64xbf16, #tpu.memory_space<vmem>>, %arg6: memref<2x1x1x5x64xbf16, #tpu.memory_space<vmem>>, %arg7: memref<2x1x1x5x64xbf16, #tpu.memory_space<vmem>>, %arg8: memref<2x1x1x5x64xbf16, #tpu.memory_space<vmem>>, %arg9: memref<2x1x1x5x64xbf16, #tpu.memory_space<vmem>>, %arg10: memref<2x1x4x64xbf16, #tpu.memory_space<vmem>>) attributes {dimension_semantics = [#tpu.dimension_semantics<parallel>, #tpu.dimension_semantics<parallel>], iteration_bounds = array<i64: 1, 4>, scalar_prefetch = 0 : i64, scratch_operands = 0 : i64, tpu.core_type = #tpu.core_type<tc>, window_params = [{pipeline_mode = #tpu.pipeline_mode<synchronous>, transform_indices = @transform_0, window_bounds = array<i64: 1, 64>}, {pipeline_mode = #tpu.pipeline_mode<synchronous>, transform_indices = @transform_1, window_bounds = array<i64: 1, 64>}, {transform_indices = @transform_2, window_bounds = array<i64: 2, 1, 1, 5, 64>}, {transform_indices = @transform_3, window_bounds = array<i64: 2, 1, 1, 5, 64>}, {transform_indices = @transform_4, window_bounds = array<i64: 2, 1, 1, 5, 64>}, {transform_indices = @transform_5, window_bounds = array<i64: 2, 1, 1, 5, 64>}, {transform_indices = @transform_6, window_bounds = array<i64: 2, 1, 1, 5, 64>}, {transform_indices = @transform_7, window_bounds = array<i64: 2, 1, 1, 5, 64>}, {transform_indices = @transform_8, window_bounds = array<i64: 2, 1, 4, 64>}]} {
    %c0 = arith.constant 0 : index
    %c0_0 = arith.constant 0 : index
    %0 = vector.load %arg2[%c0, %c0_0] : memref<1x64xf32, #tpu.memory_space<vmem>>, vector<1x64xf32>
    %c0_1 = arith.constant 0 : index
    %c0_2 = arith.constant 0 : index
    %1 = vector.load %arg3[%c0_1, %c0_2] : memref<1x64xf32, #tpu.memory_space<vmem>>, vector<1x64xf32>
    %c0_3 = arith.constant 0 : index
    %c0_4 = arith.constant 0 : index
    %c0_5 = arith.constant 0 : index
    %c0_6 = arith.constant 0 : index
    %c0_7 = arith.constant 0 : index
    %2 = vector.load %arg4[%c0_3, %c0_4, %c0_5, %c0_6, %c0_7] : memref<2x1x1x5x64xbf16, #tpu.memory_space<vmem>>, vector<2x1x1x4x64xbf16>
    %3 = vector.shape_cast %2 : vector<2x1x1x4x64xbf16> to vector<2x4x64xbf16>
    %c0_8 = arith.constant 0 : index
    %c0_9 = arith.constant 0 : index
    %c0_10 = arith.constant 0 : index
    %c0_11 = arith.constant 0 : index
    %c0_12 = arith.constant 0 : index
    %4 = vector.load %arg5[%c0_8, %c0_9, %c0_10, %c0_11, %c0_12] : memref<2x1x1x5x64xbf16, #tpu.memory_space<vmem>>, vector<2x1x1x4x64xbf16>
    %5 = vector.shape_cast %4 : vector<2x1x1x4x64xbf16> to vector<2x4x64xbf16>
    %c0_13 = arith.constant 0 : index
    %c0_14 = arith.constant 0 : index
    %c0_15 = arith.constant 0 : index
    %c1 = arith.constant 1 : index
    %c0_16 = arith.constant 0 : index
    %6 = vector.load %arg4[%c0_13, %c0_14, %c0_15, %c1, %c0_16] : memref<2x1x1x5x64xbf16, #tpu.memory_space<vmem>>, vector<2x1x1x4x64xbf16>
    %7 = vector.shape_cast %6 : vector<2x1x1x4x64xbf16> to vector<2x4x64xbf16>
    %8 = arith.extf %3 : vector<2x4x64xbf16> to vector<2x4x64xf32>
    %9 = vector.shape_cast %0 : vector<1x64xf32> to vector<1x1x64xf32>
    %10 = vector.broadcast %9 : vector<1x1x64xf32> to vector<2x4x64xf32>
    %11 = arith.mulf %8, %10 : vector<2x4x64xf32>
    %12 = vector.shape_cast %1 : vector<1x64xf32> to vector<1x1x64xf32>
    %13 = vector.broadcast %12 : vector<1x1x64xf32> to vector<2x4x64xf32>
    %14 = arith.addf %11, %13 : vector<2x4x64xf32>
    %15 = arith.extf %5 : vector<2x4x64xbf16> to vector<2x4x64xf32>
    %16 = vector.shape_cast %0 : vector<1x64xf32> to vector<1x1x64xf32>
    %17 = vector.broadcast %16 : vector<1x1x64xf32> to vector<2x4x64xf32>
    %18 = arith.mulf %15, %17 : vector<2x4x64xf32>
    %19 = vector.shape_cast %1 : vector<1x64xf32> to vector<1x1x64xf32>
    %20 = vector.broadcast %19 : vector<1x1x64xf32> to vector<2x4x64xf32>
    %21 = arith.addf %18, %20 : vector<2x4x64xf32>
    %22 = arith.maximumf %14, %21 : vector<2x4x64xf32>
    %23 = arith.extf %7 : vector<2x4x64xbf16> to vector<2x4x64xf32>
    %24 = vector.shape_cast %0 : vector<1x64xf32> to vector<1x1x64xf32>
    %25 = vector.broadcast %24 : vector<1x1x64xf32> to vector<2x4x64xf32>
    %26 = arith.mulf %23, %25 : vector<2x4x64xf32>
    %27 = vector.shape_cast %1 : vector<1x64xf32> to vector<1x1x64xf32>
    %28 = vector.broadcast %27 : vector<1x1x64xf32> to vector<2x4x64xf32>
    %29 = arith.addf %26, %28 : vector<2x4x64xf32>
    %30 = arith.maximumf %22, %29 : vector<2x4x64xf32>
    %c0_17 = arith.constant 0 : index
    %c0_18 = arith.constant 0 : index
    %c0_19 = arith.constant 0 : index
    %c0_20 = arith.constant 0 : index
    %c0_21 = arith.constant 0 : index
    %31 = vector.load %arg6[%c0_17, %c0_18, %c0_19, %c0_20, %c0_21] : memref<2x1x1x5x64xbf16, #tpu.memory_space<vmem>>, vector<2x1x1x4x64xbf16>
    %32 = vector.shape_cast %31 : vector<2x1x1x4x64xbf16> to vector<2x4x64xbf16>
    %c0_22 = arith.constant 0 : index
    %c0_23 = arith.constant 0 : index
    %c0_24 = arith.constant 0 : index
    %c0_25 = arith.constant 0 : index
    %c0_26 = arith.constant 0 : index
    %33 = vector.load %arg7[%c0_22, %c0_23, %c0_24, %c0_25, %c0_26] : memref<2x1x1x5x64xbf16, #tpu.memory_space<vmem>>, vector<2x1x1x4x64xbf16>
    %34 = vector.shape_cast %33 : vector<2x1x1x4x64xbf16> to vector<2x4x64xbf16>
    %c0_27 = arith.constant 0 : index
    %c0_28 = arith.constant 0 : index
    %c0_29 = arith.constant 0 : index
    %c1_30 = arith.constant 1 : index
    %c0_31 = arith.constant 0 : index
    %35 = vector.load %arg6[%c0_27, %c0_28, %c0_29, %c1_30, %c0_31] : memref<2x1x1x5x64xbf16, #tpu.memory_space<vmem>>, vector<2x1x1x4x64xbf16>
    %36 = vector.shape_cast %35 : vector<2x1x1x4x64xbf16> to vector<2x4x64xbf16>
    %37 = arith.extf %32 : vector<2x4x64xbf16> to vector<2x4x64xf32>
    %38 = vector.shape_cast %0 : vector<1x64xf32> to vector<1x1x64xf32>
    %39 = vector.broadcast %38 : vector<1x1x64xf32> to vector<2x4x64xf32>
    %40 = arith.mulf %37, %39 : vector<2x4x64xf32>
    %41 = vector.shape_cast %1 : vector<1x64xf32> to vector<1x1x64xf32>
    %42 = vector.broadcast %41 : vector<1x1x64xf32> to vector<2x4x64xf32>
    %43 = arith.addf %40, %42 : vector<2x4x64xf32>
    %44 = arith.maximumf %30, %43 : vector<2x4x64xf32>
    %45 = arith.extf %34 : vector<2x4x64xbf16> to vector<2x4x64xf32>
    %46 = vector.shape_cast %0 : vector<1x64xf32> to vector<1x1x64xf32>
    %47 = vector.broadcast %46 : vector<1x1x64xf32> to vector<2x4x64xf32>
    %48 = arith.mulf %45, %47 : vector<2x4x64xf32>
    %49 = vector.shape_cast %1 : vector<1x64xf32> to vector<1x1x64xf32>
    %50 = vector.broadcast %49 : vector<1x1x64xf32> to vector<2x4x64xf32>
    %51 = arith.addf %48, %50 : vector<2x4x64xf32>
    %52 = arith.maximumf %44, %51 : vector<2x4x64xf32>
    %53 = arith.extf %36 : vector<2x4x64xbf16> to vector<2x4x64xf32>
    %54 = vector.shape_cast %0 : vector<1x64xf32> to vector<1x1x64xf32>
    %55 = vector.broadcast %54 : vector<1x1x64xf32> to vector<2x4x64xf32>
    %56 = arith.mulf %53, %55 : vector<2x4x64xf32>
    %57 = vector.shape_cast %1 : vector<1x64xf32> to vector<1x1x64xf32>
    %58 = vector.broadcast %57 : vector<1x1x64xf32> to vector<2x4x64xf32>
    %59 = arith.addf %56, %58 : vector<2x4x64xf32>
    %60 = arith.maximumf %52, %59 : vector<2x4x64xf32>
    %c0_32 = arith.constant 0 : index
    %c0_33 = arith.constant 0 : index
    %c0_34 = arith.constant 0 : index
    %c0_35 = arith.constant 0 : index
    %c0_36 = arith.constant 0 : index
    %61 = vector.load %arg8[%c0_32, %c0_33, %c0_34, %c0_35, %c0_36] : memref<2x1x1x5x64xbf16, #tpu.memory_space<vmem>>, vector<2x1x1x4x64xbf16>
    %62 = vector.shape_cast %61 : vector<2x1x1x4x64xbf16> to vector<2x4x64xbf16>
    %c0_37 = arith.constant 0 : index
    %c0_38 = arith.constant 0 : index
    %c0_39 = arith.constant 0 : index
    %c0_40 = arith.constant 0 : index
    %c0_41 = arith.constant 0 : index
    %63 = vector.load %arg9[%c0_37, %c0_38, %c0_39, %c0_40, %c0_41] : memref<2x1x1x5x64xbf16, #tpu.memory_space<vmem>>, vector<2x1x1x4x64xbf16>
    %64 = vector.shape_cast %63 : vector<2x1x1x4x64xbf16> to vector<2x4x64xbf16>
    %c0_42 = arith.constant 0 : index
    %c0_43 = arith.constant 0 : index
    %c0_44 = arith.constant 0 : index
    %c1_45 = arith.constant 1 : index
    %c0_46 = arith.constant 0 : index
    %65 = vector.load %arg8[%c0_42, %c0_43, %c0_44, %c1_45, %c0_46] : memref<2x1x1x5x64xbf16, #tpu.memory_space<vmem>>, vector<2x1x1x4x64xbf16>
    %66 = vector.shape_cast %65 : vector<2x1x1x4x64xbf16> to vector<2x4x64xbf16>
    %67 = arith.extf %62 : vector<2x4x64xbf16> to vector<2x4x64xf32>
    %68 = vector.shape_cast %0 : vector<1x64xf32> to vector<1x1x64xf32>
    %69 = vector.broadcast %68 : vector<1x1x64xf32> to vector<2x4x64xf32>
    %70 = arith.mulf %67, %69 : vector<2x4x64xf32>
    %71 = vector.shape_cast %1 : vector<1x64xf32> to vector<1x1x64xf32>
    %72 = vector.broadcast %71 : vector<1x1x64xf32> to vector<2x4x64xf32>
    %73 = arith.addf %70, %72 : vector<2x4x64xf32>
    %74 = arith.maximumf %60, %73 : vector<2x4x64xf32>
    %75 = arith.extf %64 : vector<2x4x64xbf16> to vector<2x4x64xf32>
    %76 = vector.shape_cast %0 : vector<1x64xf32> to vector<1x1x64xf32>
    %77 = vector.broadcast %76 : vector<1x1x64xf32> to vector<2x4x64xf32>
    %78 = arith.mulf %75, %77 : vector<2x4x64xf32>
    %79 = vector.shape_cast %1 : vector<1x64xf32> to vector<1x1x64xf32>
    %80 = vector.broadcast %79 : vector<1x1x64xf32> to vector<2x4x64xf32>
    %81 = arith.addf %78, %80 : vector<2x4x64xf32>
    %82 = arith.maximumf %74, %81 : vector<2x4x64xf32>
    %83 = arith.extf %66 : vector<2x4x64xbf16> to vector<2x4x64xf32>
    %84 = vector.shape_cast %0 : vector<1x64xf32> to vector<1x1x64xf32>
    %85 = vector.broadcast %84 : vector<1x1x64xf32> to vector<2x4x64xf32>
    %86 = arith.mulf %83, %85 : vector<2x4x64xf32>
    %87 = vector.shape_cast %1 : vector<1x64xf32> to vector<1x1x64xf32>
    %88 = vector.broadcast %87 : vector<1x1x64xf32> to vector<2x4x64xf32>
    %89 = arith.addf %86, %88 : vector<2x4x64xf32>
    %90 = arith.maximumf %82, %89 : vector<2x4x64xf32>
    %cst = arith.constant 0.000000e+00 : f32
    %91 = vector.broadcast %cst : f32 to vector<2x4x64xf32>
    %92 = arith.maximumf %90, %91 : vector<2x4x64xf32>
    %93 = arith.truncf %92 : vector<2x4x64xf32> to vector<2x4x64xbf16>
    %c0_47 = arith.constant 0 : index
    %c0_48 = arith.constant 0 : index
    %c0_49 = arith.constant 0 : index
    %c0_50 = arith.constant 0 : index
    %94 = vector.load %arg10[%c0_47, %c0_48, %c0_49, %c0_50] : memref<2x1x4x64xbf16, #tpu.memory_space<vmem>>, vector<2x1x4x64xbf16>
    %95 = vector.shape_cast %94 : vector<2x1x4x64xbf16> to vector<2x4x64xbf16>
    %96 = vector.shape_cast %93 : vector<2x4x64xbf16> to vector<2x1x4x64xbf16>
    tpu.vector_store %arg10[%c0_47, %c0_48, %c0_49, %c0_50], %96 {strides = array<i32>} : memref<2x1x4x64xbf16, #tpu.memory_space<vmem>>, vector<2x1x4x64xbf16>,
    return
  }
  func.func @transform_0(%arg0: i32, %arg1: i32) -> (i32, i32) {
    %c0_i32 = arith.constant 0 : i32
    %c0_i32_0 = arith.constant 0 : i32
    %c0_i32_1 = arith.constant 0 : i32
    return %c0_i32, %c0_i32_0 : i32, i32
  }
  func.func @transform_1(%arg0: i32, %arg1: i32) -> (i32, i32) {
    %c0_i32 = arith.constant 0 : i32
    %c0_i32_0 = arith.constant 0 : i32
    %c0_i32_1 = arith.constant 0 : i32
    return %c0_i32, %c0_i32_0 : i32, i32
  }
  func.func @transform_2(%arg0: i32, %arg1: i32) -> (i32, i32, i32, i32, i32) {
    %c2_i32 = arith.constant 2 : i32
    %0 = arith.muli %c2_i32, %arg1 : i32
    %c1_i32 = arith.constant 1 : i32
    %1 = arith.subi %0, %c1_i32 : i32
    %c0_i32 = arith.constant 0 : i32
    %2 = arith.addi %1, %c0_i32 : i32
    %c0_i32_0 = arith.constant 0 : i32
    %c7_i32 = arith.constant 7 : i32
    %3 = arith.maxsi %c0_i32_0, %2 : i32
    %4 = arith.minsi %c7_i32, %3 : i32
    %c0_i32_1 = arith.constant 0 : i32
    %c0_i32_2 = arith.constant 0 : i32
    %c0_i32_3 = arith.constant 0 : i32
    %c0_i32_4 = arith.constant 0 : i32
    return %arg0, %4, %c0_i32_1, %c0_i32_2, %c0_i32_3 : i32, i32, i32, i32, i32
  }
  func.func @transform_3(%arg0: i32, %arg1: i32) -> (i32, i32, i32, i32, i32) {
    %c2_i32 = arith.constant 2 : i32
    %0 = arith.muli %c2_i32, %arg1 : i32
    %c1_i32 = arith.constant 1 : i32
    %1 = arith.subi %0, %c1_i32 : i32
    %c0_i32 = arith.constant 0 : i32
    %2 = arith.addi %1, %c0_i32 : i32
    %c0_i32_0 = arith.constant 0 : i32
    %c7_i32 = arith.constant 7 : i32
    %3 = arith.maxsi %c0_i32_0, %2 : i32
    %4 = arith.minsi %c7_i32, %3 : i32
    %c1_i32_1 = arith.constant 1 : i32
    %c0_i32_2 = arith.constant 0 : i32
    %c0_i32_3 = arith.constant 0 : i32
    %c0_i32_4 = arith.constant 0 : i32
    return %arg0, %4, %c1_i32_1, %c0_i32_2, %c0_i32_3 : i32, i32, i32, i32, i32
  }
  func.func @transform_4(%arg0: i32, %arg1: i32) -> (i32, i32, i32, i32, i32) {
    %c2_i32 = arith.constant 2 : i32
    %0 = arith.muli %c2_i32, %arg1 : i32
    %c1_i32 = arith.constant 1 : i32
    %1 = arith.subi %0, %c1_i32 : i32
    %c1_i32_0 = arith.constant 1 : i32
    %2 = arith.addi %1, %c1_i32_0 : i32
    %c0_i32 = arith.constant 0 : i32
    %c7_i32 = arith.constant 7 : i32
    %3 = arith.maxsi %c0_i32, %2 : i32
    %4 = arith.minsi %c7_i32, %3 : i32
    %c0_i32_1 = arith.constant 0 : i32
    %c0_i32_2 = arith.constant 0 : i32
    %c0_i32_3 = arith.constant 0 : i32
    %c0_i32_4 = arith.constant 0 : i32
    return %arg0, %4, %c0_i32_1, %c0_i32_2, %c0_i32_3 : i32, i32, i32, i32, i32
  }
  func.func @transform_5(%arg0: i32, %arg1: i32) -> (i32, i32, i32, i32, i32) {
    %c2_i32 = arith.constant 2 : i32
    %0 = arith.muli %c2_i32, %arg1 : i32
    %c1_i32 = arith.constant 1 : i32
    %1 = arith.subi %0, %c1_i32 : i32
    %c1_i32_0 = arith.constant 1 : i32
    %2 = arith.addi %1, %c1_i32_0 : i32
    %c0_i32 = arith.constant 0 : i32
    %c7_i32 = arith.constant 7 : i32
    %3 = arith.maxsi %c0_i32, %2 : i32
    %4 = arith.minsi %c7_i32, %3 : i32
    %c1_i32_1 = arith.constant 1 : i32
    %c0_i32_2 = arith.constant 0 : i32
    %c0_i32_3 = arith.constant 0 : i32
    %c0_i32_4 = arith.constant 0 : i32
    return %arg0, %4, %c1_i32_1, %c0_i32_2, %c0_i32_3 : i32, i32, i32, i32, i32
  }
  func.func @transform_6(%arg0: i32, %arg1: i32) -> (i32, i32, i32, i32, i32) {
    %c2_i32 = arith.constant 2 : i32
    %0 = arith.muli %c2_i32, %arg1 : i32
    %c1_i32 = arith.constant 1 : i32
    %1 = arith.subi %0, %c1_i32 : i32
    %c2_i32_0 = arith.constant 2 : i32
    %2 = arith.addi %1, %c2_i32_0 : i32
    %c0_i32 = arith.constant 0 : i32
    %c7_i32 = arith.constant 7 : i32
    %3 = arith.maxsi %c0_i32, %2 : i32
    %4 = arith.minsi %c7_i32, %3 : i32
    %c0_i32_1 = arith.constant 0 : i32
    %c0_i32_2 = arith.constant 0 : i32
    %c0_i32_3 = arith.constant 0 : i32
    %c0_i32_4 = arith.constant 0 : i32
    return %arg0, %4, %c0_i32_1, %c0_i32_2, %c0_i32_3 : i32, i32, i32, i32, i32
  }
  func.func @transform_7(%arg0: i32, %arg1: i32) -> (i32, i32, i32, i32, i32) {
    %c2_i32 = arith.constant 2 : i32
    %0 = arith.muli %c2_i32, %arg1 : i32
    %c1_i32 = arith.constant 1 : i32
    %1 = arith.subi %0, %c1_i32 : i32
    %c2_i32_0 = arith.constant 2 : i32
    %2 = arith.addi %1, %c2_i32_0 : i32
    %c0_i32 = arith.constant 0 : i32
    %c7_i32 = arith.constant 7 : i32
    %3 = arith.maxsi %c0_i32, %2 : i32
    %4 = arith.minsi %c7_i32, %3 : i32
    %c1_i32_1 = arith.constant 1 : i32
    %c0_i32_2 = arith.constant 0 : i32
    %c0_i32_3 = arith.constant 0 : i32
    %c0_i32_4 = arith.constant 0 : i32
    return %arg0, %4, %c1_i32_1, %c0_i32_2, %c0_i32_3 : i32, i32, i32, i32, i32
  }
  func.func @transform_8(%arg0: i32, %arg1: i32) -> (i32, i32, i32, i32) {
    %c0_i32 = arith.constant 0 : i32
    %c0_i32_0 = arith.constant 0 : i32
    %c0_i32_1 = arith.constant 0 : i32
    return %arg0, %arg1, %c0_i32, %c0_i32_0 : i32, i32, i32, i32
  }
}

module attributes {stable_mosaic.version = 11 : i64} {
  func.func @_matmul_stats_kernel(%arg0: i32, %arg1: memref<16x576xbf16, #tpu.memory_space<vmem>>, %arg2: memref<576x64xbf16, #tpu.memory_space<vmem>>, %arg3: memref<16x64xbf16, #tpu.memory_space<vmem>>, %arg4: memref<1x1x64xf32, #tpu.memory_space<vmem>>, %arg5: memref<1x1x64xf32, #tpu.memory_space<vmem>>) attributes {dimension_semantics = [#tpu.dimension_semantics<parallel>], iteration_bounds = array<i64: 2>, scalar_prefetch = 0 : i64, scratch_operands = 0 : i64, tpu.core_type = #tpu.core_type<tc>, window_params = [{transform_indices = @transform_0, window_bounds = array<i64: 16, 576>}, {pipeline_mode = #tpu.pipeline_mode<synchronous>, transform_indices = @transform_1, window_bounds = array<i64: 576, 64>}, {transform_indices = @transform_2, window_bounds = array<i64: 16, 64>}, {transform_indices = @transform_3, window_bounds = array<i64: 1, 1, 64>}, {transform_indices = @transform_4, window_bounds = array<i64: 1, 1, 64>}]} {
    %c0 = arith.constant 0 : index
    %c0_0 = arith.constant 0 : index
    %0 = vector.load %arg1[%c0, %c0_0] : memref<16x576xbf16, #tpu.memory_space<vmem>>, vector<16x576xbf16>
    %c0_1 = arith.constant 0 : index
    %c0_2 = arith.constant 0 : index
    %1 = vector.load %arg2[%c0_1, %c0_2] : memref<576x64xbf16, #tpu.memory_space<vmem>>, vector<576x64xbf16>
    %cst = arith.constant dense<0.000000e+00> : vector<16x64xf32>
    %2 = tpu.matmul %0, %1, %cst {dimension_numbers = #tpu.dot_dimension_numbers<[1], [0], [0], [1], [0, 0, 1, 1], [], []>} : vector<16x576xbf16>, vector<576x64xbf16>, vector<16x64xf32> -> vector<16x64xf32>
    %3 = arith.truncf %2 : vector<16x64xf32> to vector<16x64xbf16>
    %c0_3 = arith.constant 0 : index
    %c0_4 = arith.constant 0 : index
    %4 = vector.load %arg3[%c0_3, %c0_4] : memref<16x64xbf16, #tpu.memory_space<vmem>>, vector<16x64xbf16>
    tpu.vector_store %arg3[%c0_3, %c0_4], %3 {strides = array<i32>} : memref<16x64xbf16, #tpu.memory_space<vmem>>, vector<16x64xbf16>,
    %cst_5 = arith.constant dense<0.000000e+00> : vector<64xf32>
    %5 = vector.multi_reduction <add>, %2, %cst_5 [0] : vector<16x64xf32> to vector<64xf32>
    %6 = vector.shape_cast %5 : vector<64xf32> to vector<1x64xf32>
    %c0_6 = arith.constant 0 : index
    %c0_7 = arith.constant 0 : index
    %c0_8 = arith.constant 0 : index
    %7 = vector.load %arg4[%c0_6, %c0_7, %c0_8] : memref<1x1x64xf32, #tpu.memory_space<vmem>>, vector<1x1x64xf32>
    %8 = vector.shape_cast %7 : vector<1x1x64xf32> to vector<1x64xf32>
    %9 = vector.shape_cast %6 : vector<1x64xf32> to vector<1x1x64xf32>
    tpu.vector_store %arg4[%c0_6, %c0_7, %c0_8], %9 {strides = array<i32>} : memref<1x1x64xf32, #tpu.memory_space<vmem>>, vector<1x1x64xf32>,
    %10 = arith.mulf %2, %2 : vector<16x64xf32>
    %cst_9 = arith.constant dense<0.000000e+00> : vector<64xf32>
    %11 = vector.multi_reduction <add>, %10, %cst_9 [0] : vector<16x64xf32> to vector<64xf32>
    %12 = vector.shape_cast %11 : vector<64xf32> to vector<1x64xf32>
    %c0_10 = arith.constant 0 : index
    %c0_11 = arith.constant 0 : index
    %c0_12 = arith.constant 0 : index
    %13 = vector.load %arg5[%c0_10, %c0_11, %c0_12] : memref<1x1x64xf32, #tpu.memory_space<vmem>>, vector<1x1x64xf32>
    %14 = vector.shape_cast %13 : vector<1x1x64xf32> to vector<1x64xf32>
    %15 = vector.shape_cast %12 : vector<1x64xf32> to vector<1x1x64xf32>
    tpu.vector_store %arg5[%c0_10, %c0_11, %c0_12], %15 {strides = array<i32>} : memref<1x1x64xf32, #tpu.memory_space<vmem>>, vector<1x1x64xf32>,
    return
  }
  func.func @transform_0(%arg0: i32) -> (i32, i32) {
    %c0_i32 = arith.constant 0 : i32
    %c0_i32_0 = arith.constant 0 : i32
    return %arg0, %c0_i32 : i32, i32
  }
  func.func @transform_1(%arg0: i32) -> (i32, i32) {
    %c0_i32 = arith.constant 0 : i32
    %c0_i32_0 = arith.constant 0 : i32
    %c0_i32_1 = arith.constant 0 : i32
    return %c0_i32, %c0_i32_0 : i32, i32
  }
  func.func @transform_2(%arg0: i32) -> (i32, i32) {
    %c0_i32 = arith.constant 0 : i32
    %c0_i32_0 = arith.constant 0 : i32
    return %arg0, %c0_i32 : i32, i32
  }
  func.func @transform_3(%arg0: i32) -> (i32, i32, i32) {
    %c0_i32 = arith.constant 0 : i32
    %c0_i32_0 = arith.constant 0 : i32
    %c0_i32_1 = arith.constant 0 : i32
    return %arg0, %c0_i32, %c0_i32_0 : i32, i32, i32
  }
  func.func @transform_4(%arg0: i32) -> (i32, i32, i32) {
    %c0_i32 = arith.constant 0 : i32
    %c0_i32_0 = arith.constant 0 : i32
    %c0_i32_1 = arith.constant 0 : i32
    return %arg0, %c0_i32, %c0_i32_0 : i32, i32, i32
  }
}

module attributes {stable_mosaic.version = 11 : i64} {
  func.func @kernel(%arg0: i32, %arg1: memref<8x128xbf16, #tpu.memory_space<vmem>>, %arg2: memref<1x128xf32, #tpu.memory_space<vmem>>, %arg3: memref<1x128xf32, #tpu.memory_space<vmem>>, %arg4: memref<8x128xbf16, #tpu.memory_space<vmem>>) attributes {dimension_semantics = [#tpu.dimension_semantics<parallel>], iteration_bounds = array<i64: 2>, scalar_prefetch = 0 : i64, scratch_operands = 0 : i64, tpu.core_type = #tpu.core_type<tc>, window_params = [{transform_indices = @transform_0, window_bounds = array<i64: 8, 128>}, {pipeline_mode = #tpu.pipeline_mode<synchronous>, transform_indices = @transform_1, window_bounds = array<i64: 1, 128>}, {pipeline_mode = #tpu.pipeline_mode<synchronous>, transform_indices = @transform_2, window_bounds = array<i64: 1, 128>}, {transform_indices = @transform_3, window_bounds = array<i64: 8, 128>}]} {
    %c0 = arith.constant 0 : index
    %c0_0 = arith.constant 0 : index
    %0 = vector.load %arg1[%c0, %c0_0] : memref<8x128xbf16, #tpu.memory_space<vmem>>, vector<8x128xbf16>
    %1 = arith.extf %0 : vector<8x128xbf16> to vector<8x128xf32>
    %c0_1 = arith.constant 0 : index
    %c0_2 = arith.constant 0 : index
    %2 = vector.load %arg2[%c0_1, %c0_2] : memref<1x128xf32, #tpu.memory_space<vmem>>, vector<1x128xf32>
    %3 = vector.broadcast %2 : vector<1x128xf32> to vector<8x128xf32>
    %4 = arith.mulf %1, %3 : vector<8x128xf32>
    %c0_3 = arith.constant 0 : index
    %c0_4 = arith.constant 0 : index
    %5 = vector.load %arg3[%c0_3, %c0_4] : memref<1x128xf32, #tpu.memory_space<vmem>>, vector<1x128xf32>
    %6 = vector.broadcast %5 : vector<1x128xf32> to vector<8x128xf32>
    %7 = arith.addf %4, %6 : vector<8x128xf32>
    %cst = arith.constant 0.000000e+00 : f32
    %8 = vector.broadcast %cst : f32 to vector<8x128xf32>
    %9 = arith.maximumf %7, %8 : vector<8x128xf32>
    %10 = arith.truncf %9 : vector<8x128xf32> to vector<8x128xbf16>
    %c0_5 = arith.constant 0 : index
    %c0_6 = arith.constant 0 : index
    %11 = vector.load %arg4[%c0_5, %c0_6] : memref<8x128xbf16, #tpu.memory_space<vmem>>, vector<8x128xbf16>
    tpu.vector_store %arg4[%c0_5, %c0_6], %10 {strides = array<i32>} : memref<8x128xbf16, #tpu.memory_space<vmem>>, vector<8x128xbf16>,
    return
  }
  func.func @transform_0(%arg0: i32) -> (i32, i32) {
    %c0_i32 = arith.constant 0 : i32
    %c0_i32_0 = arith.constant 0 : i32
    return %arg0, %c0_i32 : i32, i32
  }
  func.func @transform_1(%arg0: i32) -> (i32, i32) {
    %c0_i32 = arith.constant 0 : i32
    %c0_i32_0 = arith.constant 0 : i32
    %c0_i32_1 = arith.constant 0 : i32
    return %c0_i32, %c0_i32_0 : i32, i32
  }
  func.func @transform_2(%arg0: i32) -> (i32, i32) {
    %c0_i32 = arith.constant 0 : i32
    %c0_i32_0 = arith.constant 0 : i32
    %c0_i32_1 = arith.constant 0 : i32
    return %c0_i32, %c0_i32_0 : i32, i32
  }
  func.func @transform_3(%arg0: i32) -> (i32, i32) {
    %c0_i32 = arith.constant 0 : i32
    %c0_i32_0 = arith.constant 0 : i32
    return %arg0, %c0_i32 : i32, i32
  }
}

module attributes {stable_mosaic.version = 11 : i64} {
  func.func @kernel(%arg0: i32, %arg1: memref<8x128xbf16, #tpu.memory_space<vmem>>, %arg2: memref<1x128xf32, #tpu.memory_space<vmem>>, %arg3: memref<1x128xf32, #tpu.memory_space<vmem>>, %arg4: memref<8x128xbf16, #tpu.memory_space<vmem>>, %arg5: memref<8x128xf32, #tpu.memory_space<vmem>>) attributes {dimension_semantics = [#tpu.dimension_semantics<parallel>], iteration_bounds = array<i64: 2>, scalar_prefetch = 0 : i64, scratch_operands = 0 : i64, tpu.core_type = #tpu.core_type<tc>, window_params = [{transform_indices = @transform_0, window_bounds = array<i64: 8, 128>}, {pipeline_mode = #tpu.pipeline_mode<synchronous>, transform_indices = @transform_1, window_bounds = array<i64: 1, 128>}, {pipeline_mode = #tpu.pipeline_mode<synchronous>, transform_indices = @transform_2, window_bounds = array<i64: 1, 128>}, {transform_indices = @transform_3, window_bounds = array<i64: 8, 128>}, {transform_indices = @transform_4, window_bounds = array<i64: 8, 128>}]} {
    %c0 = arith.constant 0 : index
    %c0_0 = arith.constant 0 : index
    %0 = vector.load %arg1[%c0, %c0_0] : memref<8x128xbf16, #tpu.memory_space<vmem>>, vector<8x128xbf16>
    %1 = arith.extf %0 : vector<8x128xbf16> to vector<8x128xf32>
    %c0_1 = arith.constant 0 : index
    %c0_2 = arith.constant 0 : index
    %2 = vector.load %arg2[%c0_1, %c0_2] : memref<1x128xf32, #tpu.memory_space<vmem>>, vector<1x128xf32>
    %3 = vector.broadcast %2 : vector<1x128xf32> to vector<8x128xf32>
    %4 = arith.mulf %1, %3 : vector<8x128xf32>
    %c0_3 = arith.constant 0 : index
    %c0_4 = arith.constant 0 : index
    %5 = vector.load %arg3[%c0_3, %c0_4] : memref<1x128xf32, #tpu.memory_space<vmem>>, vector<1x128xf32>
    %6 = vector.broadcast %5 : vector<1x128xf32> to vector<8x128xf32>
    %7 = arith.addf %4, %6 : vector<8x128xf32>
    %c0_5 = arith.constant 0 : index
    %c0_6 = arith.constant 0 : index
    %8 = vector.load %arg4[%c0_5, %c0_6] : memref<8x128xbf16, #tpu.memory_space<vmem>>, vector<8x128xbf16>
    %9 = arith.extf %8 : vector<8x128xbf16> to vector<8x128xf32>
    %10 = arith.addf %7, %9 : vector<8x128xf32>
    %cst = arith.constant 0.000000e+00 : f32
    %11 = vector.broadcast %cst : f32 to vector<8x128xf32>
    %12 = arith.maximumf %10, %11 : vector<8x128xf32>
    %c0_7 = arith.constant 0 : index
    %c0_8 = arith.constant 0 : index
    %13 = vector.load %arg5[%c0_7, %c0_8] : memref<8x128xf32, #tpu.memory_space<vmem>>, vector<8x128xf32>
    tpu.vector_store %arg5[%c0_7, %c0_8], %12 {strides = array<i32>} : memref<8x128xf32, #tpu.memory_space<vmem>>, vector<8x128xf32>,
    return
  }
  func.func @transform_0(%arg0: i32) -> (i32, i32) {
    %c0_i32 = arith.constant 0 : i32
    %c0_i32_0 = arith.constant 0 : i32
    return %arg0, %c0_i32 : i32, i32
  }
  func.func @transform_1(%arg0: i32) -> (i32, i32) {
    %c0_i32 = arith.constant 0 : i32
    %c0_i32_0 = arith.constant 0 : i32
    %c0_i32_1 = arith.constant 0 : i32
    return %c0_i32, %c0_i32_0 : i32, i32
  }
  func.func @transform_2(%arg0: i32) -> (i32, i32) {
    %c0_i32 = arith.constant 0 : i32
    %c0_i32_0 = arith.constant 0 : i32
    %c0_i32_1 = arith.constant 0 : i32
    return %c0_i32, %c0_i32_0 : i32, i32
  }
  func.func @transform_3(%arg0: i32) -> (i32, i32) {
    %c0_i32 = arith.constant 0 : i32
    %c0_i32_0 = arith.constant 0 : i32
    return %arg0, %c0_i32 : i32, i32
  }
  func.func @transform_4(%arg0: i32) -> (i32, i32) {
    %c0_i32 = arith.constant 0 : i32
    %c0_i32_0 = arith.constant 0 : i32
    return %arg0, %c0_i32 : i32, i32
  }
}

</mosaic_0001>

<llo_original>
// kernel: resnet18_client_forward.7
$region0: #{resnet18_client_forward.7}
  #allocation0 [shape = 'u32[]', space=smem, size = 0x4, offset = 0x4, fixed_abs, tag = 'smem constant byte address 0x4 - core index']
  #allocation1 [shape = 'u32[72,128]{1,0:T(1,128)}', space=vmem, size = 0x9000, scoped, tag = 'internal scratch']
  %s0 = inlined_call_operand.vmem [shape: f32[1,64], index: 0, kind: input, shape index: {}]
  %s1 = inlined_call_operand.vmem [shape: f32[1,64], index: 1, kind: input, shape index: {}]
  %s2 = inlined_call_operand.vmem [shape: bf16[2,8,2,5,64], index: 2, kind: input, shape index: {}, may-alias: {2,3,4,5,6,7}]
  %s3 = inlined_call_operand.vmem [shape: bf16[2,8,2,5,64], index: 3, kind: input, shape index: {}, may-alias: {2,3,4,5,6,7}]
  %s4 = inlined_call_operand.vmem [shape: bf16[2,8,2,5,64], index: 4, kind: input, shape index: {}, may-alias: {2,3,4,5,6,7}]
  %s5 = inlined_call_operand.vmem [shape: bf16[2,8,2,5,64], index: 5, kind: input, shape index: {}, may-alias: {2,3,4,5,6,7}]
  %s6 = inlined_call_operand.vmem [shape: bf16[2,8,2,5,64], index: 6, kind: input, shape index: {}, may-alias: {2,3,4,5,6,7}]
  %s7 = inlined_call_operand.vmem [shape: bf16[2,8,2,5,64], index: 7, kind: input, shape index: {}, may-alias: {2,3,4,5,6,7}]
  %s8 = inlined_call_operand.vmem [shape: bf16[2,4,4,64], index: 8, kind: output, shape index: {}]
  %s9 = sld [smem:[#allocation0]]
  $region341: #{resnet18_client_forward.7} parent=0
    _
  %s11 = ssub.s32 1, %s9
  %s12 = scalar_select 0, %s11, %s9
  $region1: #{resnet18_client_forward.7} parent=0
    #allocation2 [shape = 'u8[8192]{0}', space=vmem, size = 0x2000, scoped, tag = 'input window, operand 2']
    #allocation3 [shape = 'u8[8192]{0}', space=vmem, size = 0x2000, scoped, tag = 'input window, operand 3']
    #allocation4 [shape = 'u8[8192]{0}', space=vmem, size = 0x2000, scoped, tag = 'input window, operand 4']
    #allocation5 [shape = 'u8[8192]{0}', space=vmem, size = 0x2000, scoped, tag = 'input window, operand 5']
    #allocation6 [shape = 'u8[8192]{0}', space=vmem, size = 0x2000, scoped, tag = 'input window, operand 6']
    #allocation7 [shape = 'u8[8192]{0}', space=vmem, size = 0x2000, scoped, tag = 'input window, operand 7']
    #allocation8 [shape = 'u8[4096]{0}', space=vmem, size = 0x1000, scoped, tag = 'output window, operand 0']
    loop: start=0, step=1, limit=6
    $region2: #{resnet18_client_forward.7} parent=1 // loop_pre_header
      _
    $region3: #{resnet18_client_forward.7} parent=1 // loop_header
      %s14 = sphi 0, %s18
      %p15 = scmp.ge.s32.totalorder %s14, 6
      %s21 = sphi 0, %s33
      %s22 = sphi 0, %s29
      %s23 = sphi 0, %s21
      %s24 = sphi 0, %s22
      %s25 = sphi 0, %s23
      %s26 = sphi 0, %s24
      %s34 = sphi 0, %s34
      %s36 = sphi 0, %s34
      %s37 = sphi 0, %s36
      %s51 = sphi 0, %s37
      %s55 = sphi 0, %s55
      %s57 = sphi 0, %s55
      %s58 = sphi 0, %s57
      %s72 = sphi 0, %s58
      %s92 = sphi 0, %s94
      %s95 = sphi 0, %s92
      %s96 = sphi 0, %s95
      %s112 = sphi 0, %s96
      %s132 = sphi 0, %s134
      %s135 = sphi 0, %s132
      %s136 = sphi 0, %s135
      %s152 = sphi 0, %s136
      %s170 = sphi 0, %s172
      %s173 = sphi 0, %s170
      %s174 = sphi 0, %s173
      %s190 = sphi 0, %s174
      %s208 = sphi 0, %s210
      %s211 = sphi 0, %s208
      %s212 = sphi 0, %s211
      %s228 = sphi 0, %s212
      %s248 = sphi 0, %s250
      %s251 = sphi 0, %s248
      %s252 = sphi 0, %s251
      %s268 = sphi 0, %s252
      %s288 = sphi 0, %s290
      %s291 = sphi 0, %s288
      %s292 = sphi 0, %s291
      %s308 = sphi 0, %s292
      %s316 = sphi 0, %s318
      %s319 = sphi 0, %s316
      %s320 = sphi 0, %s319
      %s336 = sphi 0, %s320
    $region4: #{resnet18_client_forward.7} parent=1 // loop_header_branch
      %17 = sbr.rel (%p15) target = $region8
    $region5: #{resnet18_client_forward.7} parent=1 // loop_body
      %s19 = ssub.s32 %s14, 1
      %s20 = ssub.s32 %s14, 2
      %s27 = sadd.s32 1, %s22
      %p28 = scmp.ge.s32.totalorder %s27, 4
      %s29 = scalar_select %p28, 0, %s27
      %s30 = sadd.s32 1, %s21
      %s31 = scalar_select %p28, %s30, %s21
      %p32 = scmp.ge.s32.totalorder %s31, 1
      %s33 = scalar_select %p32, 0, %s31
      %s35 = sadd.s32 %s34, 1
      %p38 = scmp.eq.s32.totalorder %s14, 3
      %p39 = scmp.ne.s32.totalorder %s34, %s36
      %p40 = scmp.eq.s32.totalorder %s14, 0
      %p41 = por %p39, %p40
      %p42 = scmp.ne.s32.totalorder %s34, %s36
      %p43 = scmp.eq.s32.totalorder %s19, 3
      %p44 = por %p42, %p43
      %p45 = scmp.ne.s32.totalorder %s36, %s37
      %p46 = scmp.eq.s32.totalorder %s19, 0
      %p47 = por %p45, %p46
      %p48 = scmp.ne.s32.totalorder %s36, %s37
      %p49 = scmp.eq.s32.totalorder %s20, 3
      %p50 = por %p48, %p49
      %p52 = scmp.ne.s32.totalorder %s37, %s51
      %p53 = scmp.eq.s32.totalorder %s20, 0
      %p54 = por %p52, %p53
      %s56 = sadd.s32 %s55, 1
      %p59 = scmp.eq.s32.totalorder %s14, 3
      %p60 = scmp.ne.s32.totalorder %s55, %s57
      %p61 = scmp.eq.s32.totalorder %s14, 0
      %p62 = por %p60, %p61
      %p63 = scmp.ne.s32.totalorder %s55, %s57
      %p64 = scmp.eq.s32.totalorder %s19, 3
      %p65 = por %p63, %p64
      %p66 = scmp.ne.s32.totalorder %s57, %s58
      %p67 = scmp.eq.s32.totalorder %s19, 0
      %p68 = por %p66, %p67
      %p69 = scmp.ne.s32.totalorder %s57, %s58
      %p70 = scmp.eq.s32.totalorder %s20, 3
      %p71 = por %p69, %p70
      %p73 = scmp.ne.s32.totalorder %s58, %s72
      %p74 = scmp.eq.s32.totalorder %s20, 0
      %p75 = por %p73, %p74
      %s76 = smul.u32 %s22, 2
      %s77 = ssub.s32 %s76, 1
      %p78 = scmp.gt.s32.totalorder %s77, 0
      %s79 = scalar_select %p78, %s77, 0
      %p80 = scmp.lt.s32.totalorder %s79, 7
      %s81 = scalar_select %p80, %s79, 7
      %s82 = smul.u32 %s29, 2
      %s83 = ssub.s32 %s82, 1
      %p84 = scmp.gt.s32.totalorder %s83, 0
      %s85 = scalar_select %p84, %s83, 0
      %p86 = scmp.lt.s32.totalorder %s85, 7
      %s87 = scalar_select %p86, %s85, 7
      %s88 = ssub.s32 %s21, %s33
      %s89 = ssub.s32 %s81, %s87
      %s90 = sor.u32 %s88, %s89
      %p91 = scmp.eq.s32.totalorder %s90, 0
      %s93 = sadd.s32 %s92, 1
      %s94 = scalar_select %p91, %s92, %s93
      %p97 = pneg %p91
      %p98 = scmp.eq.s32.totalorder %s14, 3
      %p99 = por %p97, %p98
      %p100 = scmp.ne.s32.totalorder %s92, %s95
      %p101 = scmp.eq.s32.totalorder %s14, 0
      %p102 = por %p100, %p101
      %p103 = scmp.ne.s32.totalorder %s92, %s95
      %p104 = scmp.eq.s32.totalorder %s19, 3
      %p105 = por %p103, %p104
      %p106 = scmp.ne.s32.totalorder %s95, %s96
      %p107 = scmp.eq.s32.totalorder %s19, 0
      %p108 = por %p106, %p107
      %p109 = scmp.ne.s32.totalorder %s95, %s96
      %p110 = scmp.eq.s32.totalorder %s20, 3
      %p111 = por %p109, %p110
      %p113 = scmp.ne.s32.totalorder %s96, %s112
      %p114 = scmp.eq.s32.totalorder %s20, 0
      %p115 = por %p113, %p114
      %s116 = smul.u32 %s22, 2
      %s117 = ssub.s32 %s116, 1
      %p118 = scmp.gt.s32.totalorder %s117, 0
      %s119 = scalar_select %p118, %s117, 0
      %p120 = scmp.lt.s32.totalorder %s119, 7
      %s121 = scalar_select %p120, %s119, 7
      %s122 = smul.u32 %s29, 2
      %s123 = ssub.s32 %s122, 1
      %p124 = scmp.gt.s32.totalorder %s123, 0
      %s125 = scalar_select %p124, %s123, 0
      %p126 = scmp.lt.s32.totalorder %s125, 7
      %s127 = scalar_select %p126, %s125, 7
      %s128 = ssub.s32 %s21, %s33
      %s129 = ssub.s32 %s121, %s127
      %s130 = sor.u32 %s128, %s129
      %p131 = scmp.eq.s32.totalorder %s130, 0
      %s133 = sadd.s32 %s132, 1
      %s134 = scalar_select %p131, %s132, %s133
      %p137 = pneg %p131
      %p138 = scmp.eq.s32.totalorder %s14, 3
      %p139 = por %p137, %p138
      %p140 = scmp.ne.s32.totalorder %s132, %s135
      %p141 = scmp.eq.s32.totalorder %s14, 0
      %p142 = por %p140, %p141
      %p143 = scmp.ne.s32.totalorder %s132, %s135
      %p144 = scmp.eq.s32.totalorder %s19, 3
      %p145 = por %p143, %p144
      %p146 = scmp.ne.s32.totalorder %s135, %s136
      %p147 = scmp.eq.s32.totalorder %s19, 0
      %p148 = por %p146, %p147
      %p149 = scmp.ne.s32.totalorder %s135, %s136
      %p150 = scmp.eq.s32.totalorder %s20, 3
      %p151 = por %p149, %p150
      %p153 = scmp.ne.s32.totalorder %s136, %s152
      %p154 = scmp.eq.s32.totalorder %s20, 0
      %p155 = por %p153, %p154
      %s156 = smul.u32 %s22, 2
      %p157 = scmp.gt.s32.totalorder %s156, 0
      %s158 = scalar_select %p157, %s156, 0
      %p159 = scmp.lt.s32.totalorder %s158, 7
      %s160 = scalar_select %p159, %s158, 7
      %s161 = smul.u32 %s29, 2
      %p162 = scmp.gt.s32.totalorder %s161, 0
      %s163 = scalar_select %p162, %s161, 0
      %p164 = scmp.lt.s32.totalorder %s163, 7
      %s165 = scalar_select %p164, %s163, 7
      %s166 = ssub.s32 %s21, %s33
      %s167 = ssub.s32 %s160, %s165
      %s168 = sor.u32 %s166, %s167
      %p169 = scmp.eq.s32.totalorder %s168, 0
      %s171 = sadd.s32 %s170, 1
      %s172 = scalar_select %p169, %s170, %s171
      %p175 = pneg %p169
      %p176 = scmp.eq.s32.totalorder %s14, 3
      %p177 = por %p175, %p176
      %p178 = scmp.ne.s32.totalorder %s170, %s173
      %p179 = scmp.eq.s32.totalorder %s14, 0
      %p180 = por %p178, %p179
      %p181 = scmp.ne.s32.totalorder %s170, %s173
      %p182 = scmp.eq.s32.totalorder %s19, 3
      %p183 = por %p181, %p182
      %p184 = scmp.ne.s32.totalorder %s173, %s174
      %p185 = scmp.eq.s32.totalorder %s19, 0
      %p186 = por %p184, %p185
      %p187 = scmp.ne.s32.totalorder %s173, %s174
      %p188 = scmp.eq.s32.totalorder %s20, 3
      %p189 = por %p187, %p188
      %p191 = scmp.ne.s32.totalorder %s174, %s190
      %p192 = scmp.eq.s32.totalorder %s20, 0
      %p193 = por %p191, %p192
      %s194 = smul.u32 %s22, 2
      %p195 = scmp.gt.s32.totalorder %s194, 0
      %s196 = scalar_select %p195, %s194, 0
      %p197 = scmp.lt.s32.totalorder %s196, 7
      %s198 = scalar_select %p197, %s196, 7
      %s199 = smul.u32 %s29, 2
      %p200 = scmp.gt.s32.totalorder %s199, 0
      %s201 = scalar_select %p200, %s199, 0
      %p202 = scmp.lt.s32.totalorder %s201, 7
      %s203 = scalar_select %p202, %s201, 7
      %s204 = ssub.s32 %s21, %s33
      %s205 = ssub.s32 %s198, %s203
      %s206 = sor.u32 %s204, %s205
      %p207 = scmp.eq.s32.totalorder %s206, 0
      %s209 = sadd.s32 %s208, 1
      %s210 = scalar_select %p207, %s208, %s209
      %p213 = pneg %p207
      %p214 = scmp.eq.s32.totalorder %s14, 3
      %p215 = por %p213, %p214
      %p216 = scmp.ne.s32.totalorder %s208, %s211
      %p217 = scmp.eq.s32.totalorder %s14, 0
      %p218 = por %p216, %p217
      %p219 = scmp.ne.s32.totalorder %s208, %s211
      %p220 = scmp.eq.s32.totalorder %s19, 3
      %p221 = por %p219, %p220
      %p222 = scmp.ne.s32.totalorder %s211, %s212
      %p223 = scmp.eq.s32.totalorder %s19, 0
      %p224 = por %p222, %p223
      %p225 = scmp.ne.s32.totalorder %s211, %s212
      %p226 = scmp.eq.s32.totalorder %s20, 3
      %p227 = por %p225, %p226
      %p229 = scmp.ne.s32.totalorder %s212, %s228
      %p230 = scmp.eq.s32.totalorder %s20, 0
      %p231 = por %p229, %p230
      %s232 = smul.u32 %s22, 2
      %s233 = sadd.s32 %s232, 1
      %p234 = scmp.gt.s32.totalorder %s233, 0
      %s235 = scalar_select %p234, %s233, 0
      %p236 = scmp.lt.s32.totalorder %s235, 7
      %s237 = scalar_select %p236, %s235, 7
      %s238 = smul.u32 %s29, 2
      %s239 = sadd.s32 %s238, 1
      %p240 = scmp.gt.s32.totalorder %s239, 0
      %s241 = scalar_select %p240, %s239, 0
      %p242 = scmp.lt.s32.totalorder %s241, 7
      %s243 = scalar_select %p242, %s241, 7
      %s244 = ssub.s32 %s21, %s33
      %s245 = ssub.s32 %s237, %s243
      %s246 = sor.u32 %s244, %s245
      %p247 = scmp.eq.s32.totalorder %s246, 0
      %s249 = sadd.s32 %s248, 1
      %s250 = scalar_select %p247, %s248, %s249
      %p253 = pneg %p247
      %p254 = scmp.eq.s32.totalorder %s14, 3
      %p255 = por %p253, %p254
      %p256 = scmp.ne.s32.totalorder %s248, %s251
      %p257 = scmp.eq.s32.totalorder %s14, 0
      %p258 = por %p256, %p257
      %p259 = scmp.ne.s32.totalorder %s248, %s251
      %p260 = scmp.eq.s32.totalorder %s19, 3
      %p261 = por %p259, %p260
      %p262 = scmp.ne.s32.totalorder %s251, %s252
      %p263 = scmp.eq.s32.totalorder %s19, 0
      %p264 = por %p262, %p263
      %p265 = scmp.ne.s32.totalorder %s251, %s252
      %p266 = scmp.eq.s32.totalorder %s20, 3
      %p267 = por %p265, %p266
      %p269 = scmp.ne.s32.totalorder %s252, %s268
      %p270 = scmp.eq.s32.totalorder %s20, 0
      %p271 = por %p269, %p270
      %s272 = smul.u32 %s22, 2
      %s273 = sadd.s32 %s272, 1
      %p274 = scmp.gt.s32.totalorder %s273, 0
      %s275 = scalar_select %p274, %s273, 0
      %p276 = scmp.lt.s32.totalorder %s275, 7
      %s277 = scalar_select %p276, %s275, 7
      %s278 = smul.u32 %s29, 2
      %s279 = sadd.s32 %s278, 1
      %p280 = scmp.gt.s32.totalorder %s279, 0
      %s281 = scalar_select %p280, %s279, 0
      %p282 = scmp.lt.s32.totalorder %s281, 7
      %s283 = scalar_select %p282, %s281, 7
      %s284 = ssub.s32 %s21, %s33
      %s285 = ssub.s32 %s277, %s283
      %s286 = sor.u32 %s284, %s285
      %p287 = scmp.eq.s32.totalorder %s286, 0
      %s289 = sadd.s32 %s288, 1
      %s290 = scalar_select %p287, %s288, %s289
      %p293 = pneg %p287
      %p294 = scmp.eq.s32.totalorder %s14, 3
      %p295 = por %p293, %p294
      %p296 = scmp.ne.s32.totalorder %s288, %s291
      %p297 = scmp.eq.s32.totalorder %s14, 0
      %p298 = por %p296, %p297
      %p299 = scmp.ne.s32.totalorder %s288, %s291
      %p300 = scmp.eq.s32.totalorder %s19, 3
      %p301 = por %p299, %p300
      %p302 = scmp.ne.s32.totalorder %s291, %s292
      %p303 = scmp.eq.s32.totalorder %s19, 0
      %p304 = por %p302, %p303
      %p305 = scmp.ne.s32.totalorder %s291, %s292
      %p306 = scmp.eq.s32.totalorder %s20, 3
      %p307 = por %p305, %p306
      %p309 = scmp.ne.s32.totalorder %s292, %s308
      %p310 = scmp.eq.s32.totalorder %s20, 0
      %p311 = por %p309, %p310
      %s312 = ssub.s32 %s21, %s33
      %s313 = ssub.s32 %s22, %s29
      %s314 = sor.u32 %s312, %s313
      %p315 = scmp.eq.s32.totalorder %s314, 0
      %s317 = sadd.s32 %s316, 1
      %s318 = scalar_select %p315, %s316, %s317
      %p321 = pneg %p315
      %p322 = scmp.eq.s32.totalorder %s14, 3
      %p323 = por %p321, %p322
      %p324 = scmp.ne.s32.totalorder %s316, %s319
      %p325 = scmp.eq.s32.totalorder %s14, 0
      %p326 = por %p324, %p325
      %p327 = scmp.ne.s32.totalorder %s316, %s319
      %p328 = scmp.eq.s32.totalorder %s19, 3
      %p329 = por %p327, %p328
      %p330 = scmp.ne.s32.totalorder %s319, %s320
      %p331 = scmp.eq.s32.totalorder %s19, 0
      %p332 = por %p330, %p331
      %p333 = scmp.ne.s32.totalorder %s319, %s320
      %p334 = scmp.eq.s32.totalorder %s20, 3
      %p335 = por %p333, %p334
      %p337 = scmp.ne.s32.totalorder %s320, %s336
      %p338 = scmp.eq.s32.totalorder %s20, 0
      %p339 = por %p337, %p338
      %p340 = scmp.le.s32.totalorder 1, %s14
      %p341 = scmp.lt.s32.totalorder %s14, 5
      %p342 = pnand %p340, %p341
      %p343 = pneg %p342
      // Predicated region
      $region9: #{resnet18_client_forward.7} parent=5 // pred_check
        _
      $region10: #{resnet18_client_forward.7} parent=5 // pred_check_branch
        %345 = sbr.rel (%p342) target = $region12
      $region11: #{resnet18_client_forward.7} parent=5 // pred_region
        %s346 = ssub.s32 %s14, 1
        // Predicated region
        $region13: #{resnet18_client_forward.7} parent=11 // pred_check
          %p347 = pneg %p47
        $region14: #{resnet18_client_forward.7} parent=11 // pred_check_branch
          %349 = sbr.rel (%p347) target = $region16
        $region15: #{resnet18_client_forward.7} parent=11 // pred_region
          _
        $region16: #{resnet18_client_forward.7} parent=11 // pred_fallthru
          _
        // Predicated region
        $region17: #{resnet18_client_forward.7} parent=11 // pred_check
          %p350 = pneg %p68
        $region18: #{resnet18_client_forward.7} parent=11 // pred_check_branch
          %352 = sbr.rel (%p350) target = $region20
        $region19: #{resnet18_client_forward.7} parent=11 // pred_region
          _
        $region20: #{resnet18_client_forward.7} parent=11 // pred_fallthru
          _
      $region12: #{resnet18_client_forward.7} parent=5 // pred_fallthru
        _
      %p353 = scmp.lt.s32.totalorder %s14, 4
      // Predicated region
      $region21: #{resnet18_client_forward.7} parent=5 // pred_check
        %p354 = pneg %p353
      $region22: #{resnet18_client_forward.7} parent=5 // pred_check_branch
        %356 = sbr.rel (%p354) target = $region24
      $region23: #{resnet18_client_forward.7} parent=5 // pred_region
        // Predicated region
        $region25: #{resnet18_client_forward.7} parent=23 // pred_check
          %p357 = pneg %p102
        $region26: #{resnet18_client_forward.7} parent=23 // pred_check_branch
          %359 = sbr.rel (%p357) target = $region28
        $region27: #{resnet18_client_forward.7} parent=23 // pred_region
          %s360 = sand.u32 %s92, 1
          %s361 = sand.u32 %s92, 1
          %s362 = smul.addr %s361, 8
          %s363 = scalar_lea.vmem [#allocation2], %s362
          %s364 = smul.u32 %s22, 2
          %s365 = ssub.s32 %s364, 1
          %p366 = scmp.gt.s32.totalorder %s365, 0
          %s367 = scalar_select %p366, %s365, 0
          %p368 = scmp.lt.s32.totalorder %s367, 7
          %s369 = scalar_select %p368, %s367, 7
          %s370 = smul.u32 2, %s21
          %s371 = smul.addr %s369, 2
          %s372 = smul.addr %s370, 16
          %s373 = sadd.s32 %s371, %s372
          %s374 = smul.addr %s373, 4
          %s375 = scalar_lea.vmem %s2, %s374
          // Predicated region
          $region29: #{resnet18_client_forward.7} parent=27 // pred_check
            _
          $region30: #{resnet18_client_forward.7} parent=27 // pred_check_branch
            %377 = sbr.rel (0) target = $region32
          $region31: #{resnet18_client_forward.7} parent=27 // pred_region
            // Predicated region
            $region33: #{resnet18_client_forward.7} parent=31 // pred_check
              _
            $region34: #{resnet18_client_forward.7} parent=31 // pred_check_branch
              %379 = sbr.rel target = $region36
            $region35: #{resnet18_client_forward.7} parent=31 // pred_region
              // Predicated region
              $region48: #{resnet18_client_forward.7} parent=35 // pred_check
                _
              $region49: #{resnet18_client_forward.7} parent=35 // pred_check_branch
                %397 = sbr.rel (0) target = $region51
              $region50: #{resnet18_client_forward.7} parent=35 // pred_region
                loop: start=0, step=1, limit=1
                $region52: #{resnet18_client_forward.7} parent=50 // loop_pre_header
                  _
                $region53: #{resnet18_client_forward.7} parent=50 // loop_header
                  %s399 = sphi 0, %s403
                  %p400 = scmp.ge.s32.totalorder %s399, 1
                  %s404 = sphi %s375, %s375
                  %s405 = sphi %s363, %s363
                $region54: #{resnet18_client_forward.7} parent=50 // loop_header_branch
                  %402 = sbr.rel (%p400) target = $region58
                $region55: #{resnet18_client_forward.7} parent=50 // loop_body
                  _
                $region56: #{resnet18_client_forward.7} parent=50 // loop_footer
                  %s403 = sadd.s32 1, %s399
                $region57: #{resnet18_client_forward.7} parent=50 // loop_footer_branch
                  %398 = sbr.rel target = $region53
                $region58: #{resnet18_client_forward.7} parent=50 // loop_exit
                  _
                %s407 = ssub.s32 16, 1
                loop: start=0, step=1, limit=1
                $region59: #{resnet18_client_forward.7} parent=50 // loop_pre_header
                  _
                $region60: #{resnet18_client_forward.7} parent=50 // loop_header
                  %s409 = sphi 0, %s413
                  %p410 = scmp.ge.s32.totalorder %s409, 1
                  %s414 = sphi %s375, %s375
                  %s415 = sphi %s363, %s363
                $region61: #{resnet18_client_forward.7} parent=50 // loop_header_branch
                  %412 = sbr.rel (%p410) target = $region65
                $region62: #{resnet18_client_forward.7} parent=50 // loop_body
                  %v416 = vld [vmem:[%s414] sm:%s407]
                  %417 = vst [vmem:[%s415] sm:%s407] %v416
                  %v418 = vld [vmem:[%s414 + $0x40] sm:%s407]
                  %419 = vst [vmem:[%s415 + $0x4] sm:%s407] %v418
                $region63: #{resnet18_client_forward.7} parent=50 // loop_footer
                  %s413 = sadd.s32 1, %s409
                $region64: #{resnet18_client_forward.7} parent=50 // loop_footer_branch
                  %408 = sbr.rel target = $region60
                $region65: #{resnet18_client_forward.7} parent=50 // loop_exit
                  _
              $region51: #{resnet18_client_forward.7} parent=35 // pred_fallthru
                _
            $region36: #{resnet18_client_forward.7} parent=31 // pred_fallthru
              _
            // Predicated region
            $region37: #{resnet18_client_forward.7} parent=31 // pred_check
              _
            $region38: #{resnet18_client_forward.7} parent=31 // pred_check_branch
              %381 = sbr.rel (0) target = $region40
            $region39: #{resnet18_client_forward.7} parent=31 // pred_region
              %s383 = ssub.s32 16, 1
              loop: start=0, step=1, limit=1
              $region41: #{resnet18_client_forward.7} parent=39 // loop_pre_header
                _
              $region42: #{resnet18_client_forward.7} parent=39 // loop_header
                %s385 = sphi 0, %s389
                %p386 = scmp.ge.s32.totalorder %s385, 1
                %s390 = sphi %s375, %s375
                %s391 = sphi %s363, %s363
              $region43: #{resnet18_client_forward.7} parent=39 // loop_header_branch
                %388 = sbr.rel (%p386) target = $region47
              $region44: #{resnet18_client_forward.7} parent=39 // loop_body
                %v392 = vld [vmem:[%s390] sm:%s383]
                %393 = vst [vmem:[%s391] sm:%s383] %v392
                %v394 = vld [vmem:[%s390 + $0x40] sm:%s383]
                %395 = vst [vmem:[%s391 + $0x4] sm:%s383] %v394
              $region45: #{resnet18_client_forward.7} parent=39 // loop_footer
                %s389 = sadd.s32 1, %s385
              $region46: #{resnet18_client_forward.7} parent=39 // loop_footer_branch
                %384 = sbr.rel target = $region42
              $region47: #{resnet18_client_forward.7} parent=39 // loop_exit
                _
            $region40: #{resnet18_client_forward.7} parent=31 // pred_fallthru
              _
          $region32: #{resnet18_client_forward.7} parent=27 // pred_fallthru
            _
          %420 = vnop
        $region28: #{resnet18_client_forward.7} parent=23 // pred_fallthru
          _
        // Predicated region
        $region66: #{resnet18_client_forward.7} parent=23 // pred_check
          %p421 = pneg %p142
        $region67: #{resnet18_client_forward.7} parent=23 // pred_check_branch
          %423 = sbr.rel (%p421) target = $region69
        $region68: #{resnet18_client_forward.7} parent=23 // pred_region
          %s424 = sand.u32 %s132, 1
          %s425 = sand.u32 %s132, 1
          %s426 = smul.addr %s425, 8
          %s427 = scalar_lea.vmem [#allocation3], %s426
          %s428 = smul.u32 %s22, 2
          %s429 = ssub.s32 %s428, 1
          %p430 = scmp.gt.s32.totalorder %s429, 0
          %s431 = scalar_select %p430, %s429, 0
          %p432 = scmp.lt.s32.totalorder %s431, 7
          %s433 = scalar_select %p432, %s431, 7
          %s434 = smul.u32 2, %s21
          %s435 = smul.addr %s433, 2
          %s436 = sadd.s32 1, %s435
          %s437 = smul.addr %s434, 16
          %s438 = sadd.s32 %s436, %s437
          %s439 = smul.addr %s438, 4
          %s440 = scalar_lea.vmem %s3, %s439
          // Predicated region
          $region70: #{resnet18_client_forward.7} parent=68 // pred_check
            _
          $region71: #{resnet18_client_forward.7} parent=68 // pred_check_branch
            %442 = sbr.rel (0) target = $region73
          $region72: #{resnet18_client_forward.7} parent=68 // pred_region
            // Predicated region
            $region74: #{resnet18_client_forward.7} parent=72 // pred_check
              _
            $region75: #{resnet18_client_forward.7} parent=72 // pred_check_branch
              %444 = sbr.rel target = $region77
            $region76: #{resnet18_client_forward.7} parent=72 // pred_region
              // Predicated region
              $region89: #{resnet18_client_forward.7} parent=76 // pred_check
                _
              $region90: #{resnet18_client_forward.7} parent=76 // pred_check_branch
                %462 = sbr.rel (0) target = $region92
              $region91: #{resnet18_client_forward.7} parent=76 // pred_region
                loop: start=0, step=1, limit=1
                $region93: #{resnet18_client_forward.7} parent=91 // loop_pre_header
                  _
                $region94: #{resnet18_client_forward.7} parent=91 // loop_header
                  %s464 = sphi 0, %s468
                  %p465 = scmp.ge.s32.totalorder %s464, 1
                  %s469 = sphi %s440, %s440
                  %s470 = sphi %s427, %s427
                $region95: #{resnet18_client_forward.7} parent=91 // loop_header_branch
                  %467 = sbr.rel (%p465) target = $region99
                $region96: #{resnet18_client_forward.7} parent=91 // loop_body
                  _
                $region97: #{resnet18_client_forward.7} parent=91 // loop_footer
                  %s468 = sadd.s32 1, %s464
                $region98: #{resnet18_client_forward.7} parent=91 // loop_footer_branch
                  %463 = sbr.rel target = $region94
                $region99: #{resnet18_client_forward.7} parent=91 // loop_exit
                  _
                %s472 = ssub.s32 16, 1
                loop: start=0, step=1, limit=1
                $region100: #{resnet18_client_forward.7} parent=91 // loop_pre_header
                  _
                $region101: #{resnet18_client_forward.7} parent=91 // loop_header
                  %s474 = sphi 0, %s478
                  %p475 = scmp.ge.s32.totalorder %s474, 1
                  %s479 = sphi %s440, %s440
                  %s480 = sphi %s427, %s427
                $region102: #{resnet18_client_forward.7} parent=91 // loop_header_branch
                  %477 = sbr.rel (%p475) target = $region106
                $region103: #{resnet18_client_forward.7} parent=91 // loop_body
                  %v481 = vld [vmem:[%s479] sm:%s472]
                  %482 = vst [vmem:[%s480] sm:%s472] %v481
                  %v483 = vld [vmem:[%s479 + $0x40] sm:%s472]
                  %484 = vst [vmem:[%s480 + $0x4] sm:%s472] %v483
                $region104: #{resnet18_client_forward.7} parent=91 // loop_footer
                  %s478 = sadd.s32 1, %s474
                $region105: #{resnet18_client_forward.7} parent=91 // loop_footer_branch
                  %473 = sbr.rel target = $region101
                $region106: #{resnet18_client_forward.7} parent=91 // loop_exit
                  _
              $region92: #{resnet18_client_forward.7} parent=76 // pred_fallthru
                _
            $region77: #{resnet18_client_forward.7} parent=72 // pred_fallthru
              _
            // Predicated region
            $region78: #{resnet18_client_forward.7} parent=72 // pred_check
              _
            $region79: #{resnet18_client_forward.7} parent=72 // pred_check_branch
              %446 = sbr.rel (0) target = $region81
            $region80: #{resnet18_client_forward.7} parent=72 // pred_region
              %s448 = ssub.s32 16, 1
              loop: start=0, step=1, limit=1
              $region82: #{resnet18_client_forward.7} parent=80 // loop_pre_header
                _
              $region83: #{resnet18_client_forward.7} parent=80 // loop_header
                %s450 = sphi 0, %s454
                %p451 = scmp.ge.s32.totalorder %s450, 1
                %s455 = sphi %s440, %s440
                %s456 = sphi %s427, %s427
              $region84: #{resnet18_client_forward.7} parent=80 // loop_header_branch
                %453 = sbr.rel (%p451) target = $region88
              $region85: #{resnet18_client_forward.7} parent=80 // loop_body
                %v457 = vld [vmem:[%s455] sm:%s448]
                %458 = vst [vmem:[%s456] sm:%s448] %v457
                %v459 = vld [vmem:[%s455 + $0x40] sm:%s448]
                %460 = vst [vmem:[%s456 + $0x4] sm:%s448] %v459
              $region86: #{resnet18_client_forward.7} parent=80 // loop_footer
                %s454 = sadd.s32 1, %s450
              $region87: #{resnet18_client_forward.7} parent=80 // loop_footer_branch
                %449 = sbr.rel target = $region83
              $region88: #{resnet18_client_forward.7} parent=80 // loop_exit
                _
            $region81: #{resnet18_client_forward.7} parent=72 // pred_fallthru
              _
          $region73: #{resnet18_client_forward.7} parent=68 // pred_fallthru
            _
          %485 = vnop
        $region69: #{resnet18_client_forward.7} parent=23 // pred_fallthru
          _
        // Predicated region
        $region107: #{resnet18_client_forward.7} parent=23 // pred_check
          %p486 = pneg %p180
        $region108: #{resnet18_client_forward.7} parent=23 // pred_check_branch
          %488 = sbr.rel (%p486) target = $region110
        $region109: #{resnet18_client_forward.7} parent=23 // pred_region
          %s489 = sand.u32 %s170, 1
          %s490 = sand.u32 %s170, 1
          %s491 = smul.addr %s490, 8
          %s492 = scalar_lea.vmem [#allocation4], %s491
          %s493 = smul.u32 %s22, 2
          %p494 = scmp.gt.s32.totalorder %s493, 0
          %s495 = scalar_select %p494, %s493, 0
          %p496 = scmp.lt.s32.totalorder %s495, 7
          %s497 = scalar_select %p496, %s495, 7
          %s498 = smul.u32 2, %s21
          %s499 = smul.addr %s497, 2
          %s500 = smul.addr %s498, 16
          %s501 = sadd.s32 %s499, %s500
          %s502 = smul.addr %s501, 4
          %s503 = scalar_lea.vmem %s4, %s502
          // Predicated region
          $region111: #{resnet18_client_forward.7} parent=109 // pred_check
            _
          $region112: #{resnet18_client_forward.7} parent=109 // pred_check_branch
            %505 = sbr.rel (0) target = $region114
          $region113: #{resnet18_client_forward.7} parent=109 // pred_region
            // Predicated region
            $region115: #{resnet18_client_forward.7} parent=113 // pred_check
              _
            $region116: #{resnet18_client_forward.7} parent=113 // pred_check_branch
              %507 = sbr.rel target = $region118
            $region117: #{resnet18_client_forward.7} parent=113 // pred_region
              // Predicated region
              $region130: #{resnet18_client_forward.7} parent=117 // pred_check
                _
              $region131: #{resnet18_client_forward.7} parent=117 // pred_check_branch
                %525 = sbr.rel (0) target = $region133
              $region132: #{resnet18_client_forward.7} parent=117 // pred_region
                loop: start=0, step=1, limit=1
                $region134: #{resnet18_client_forward.7} parent=132 // loop_pre_header
                  _
                $region135: #{resnet18_client_forward.7} parent=132 // loop_header
                  %s527 = sphi 0, %s531
                  %p528 = scmp.ge.s32.totalorder %s527, 1
                  %s532 = sphi %s503, %s503
                  %s533 = sphi %s492, %s492
                $region136: #{resnet18_client_forward.7} parent=132 // loop_header_branch
                  %530 = sbr.rel (%p528) target = $region140
                $region137: #{resnet18_client_forward.7} parent=132 // loop_body
                  _
                $region138: #{resnet18_client_forward.7} parent=132 // loop_footer
                  %s531 = sadd.s32 1, %s527
                $region139: #{resnet18_client_forward.7} parent=132 // loop_footer_branch
                  %526 = sbr.rel target = $region135
                $region140: #{resnet18_client_forward.7} parent=132 // loop_exit
                  _
                %s535 = ssub.s32 16, 1
                loop: start=0, step=1, limit=1
                $region141: #{resnet18_client_forward.7} parent=132 // loop_pre_header
                  _
                $region142: #{resnet18_client_forward.7} parent=132 // loop_header
                  %s537 = sphi 0, %s541
                  %p538 = scmp.ge.s32.totalorder %s537, 1
                  %s542 = sphi %s503, %s503
                  %s543 = sphi %s492, %s492
                $region143: #{resnet18_client_forward.7} parent=132 // loop_header_branch
                  %540 = sbr.rel (%p538) target = $region147
                $region144: #{resnet18_client_forward.7} parent=132 // loop_body
                  %v544 = vld [vmem:[%s542] sm:%s535]
                  %545 = vst [vmem:[%s543] sm:%s535] %v544
                  %v546 = vld [vmem:[%s542 + $0x40] sm:%s535]
                  %547 = vst [vmem:[%s543 + $0x4] sm:%s535] %v546
                $region145: #{resnet18_client_forward.7} parent=132 // loop_footer
                  %s541 = sadd.s32 1, %s537
                $region146: #{resnet18_client_forward.7} parent=132 // loop_footer_branch
                  %536 = sbr.rel target = $region142
                $region147: #{resnet18_client_forward.7} parent=132 // loop_exit
                  _
              $region133: #{resnet18_client_forward.7} parent=117 // pred_fallthru
                _
            $region118: #{resnet18_client_forward.7} parent=113 // pred_fallthru
              _
            // Predicated region
            $region119: #{resnet18_client_forward.7} parent=113 // pred_check
              _
            $region120: #{resnet18_client_forward.7} parent=113 // pred_check_branch
              %509 = sbr.rel (0) target = $region122
            $region121: #{resnet18_client_forward.7} parent=113 // pred_region
              %s511 = ssub.s32 16, 1
              loop: start=0, step=1, limit=1
              $region123: #{resnet18_client_forward.7} parent=121 // loop_pre_header
                _
              $region124: #{resnet18_client_forward.7} parent=121 // loop_header
                %s513 = sphi 0, %s517
                %p514 = scmp.ge.s32.totalorder %s513, 1
                %s518 = sphi %s503, %s503
                %s519 = sphi %s492, %s492
              $region125: #{resnet18_client_forward.7} parent=121 // loop_header_branch
                %516 = sbr.rel (%p514) target = $region129
              $region126: #{resnet18_client_forward.7} parent=121 // loop_body
                %v520 = vld [vmem:[%s518] sm:%s511]
                %521 = vst [vmem:[%s519] sm:%s511] %v520
                %v522 = vld [vmem:[%s518 + $0x40] sm:%s511]
                %523 = vst [vmem:[%s519 + $0x4] sm:%s511] %v522
              $region127: #{resnet18_client_forward.7} parent=121 // loop_footer
                %s517 = sadd.s32 1, %s513
              $region128: #{resnet18_client_forward.7} parent=121 // loop_footer_branch
                %512 = sbr.rel target = $region124
              $region129: #{resnet18_client_forward.7} parent=121 // loop_exit
                _
            $region122: #{resnet18_client_forward.7} parent=113 // pred_fallthru
              _
          $region114: #{resnet18_client_forward.7} parent=109 // pred_fallthru
            _
          %548 = vnop
        $region110: #{resnet18_client_forward.7} parent=23 // pred_fallthru
          _
        // Predicated region
        $region148: #{resnet18_client_forward.7} parent=23 // pred_check
          %p549 = pneg %p218
        $region149: #{resnet18_client_forward.7} parent=23 // pred_check_branch
          %551 = sbr.rel (%p549) target = $region151
        $region150: #{resnet18_client_forward.7} parent=23 // pred_region
          %s552 = sand.u32 %s208, 1
          %s553 = sand.u32 %s208, 1
          %s554 = smul.addr %s553, 8
          %s555 = scalar_lea.vmem [#allocation5], %s554
          %s556 = smul.u32 %s22, 2
          %p557 = scmp.gt.s32.totalorder %s556, 0
          %s558 = scalar_select %p557, %s556, 0
          %p559 = scmp.lt.s32.totalorder %s558, 7
          %s560 = scalar_select %p559, %s558, 7
          %s561 = smul.u32 2, %s21
          %s562 = smul.addr %s560, 2
          %s563 = sadd.s32 1, %s562
          %s564 = smul.addr %s561, 16
          %s565 = sadd.s32 %s563, %s564
          %s566 = smul.addr %s565, 4
          %s567 = scalar_lea.vmem %s5, %s566
          // Predicated region
          $region152: #{resnet18_client_forward.7} parent=150 // pred_check
            _
          $region153: #{resnet18_client_forward.7} parent=150 // pred_check_branch
            %569 = sbr.rel (0) target = $region155
          $region154: #{resnet18_client_forward.7} parent=150 // pred_region
            // Predicated region
            $region156: #{resnet18_client_forward.7} parent=154 // pred_check
              _
            $region157: #{resnet18_client_forward.7} parent=154 // pred_check_branch
              %571 = sbr.rel target = $region159
            $region158: #{resnet18_client_forward.7} parent=154 // pred_region
              // Predicated region
              $region171: #{resnet18_client_forward.7} parent=158 // pred_check
                _
              $region172: #{resnet18_client_forward.7} parent=158 // pred_check_branch
                %589 = sbr.rel (0) target = $region174
              $region173: #{resnet18_client_forward.7} parent=158 // pred_region
                loop: start=0, step=1, limit=1
                $region175: #{resnet18_client_forward.7} parent=173 // loop_pre_header
                  _
                $region176: #{resnet18_client_forward.7} parent=173 // loop_header
                  %s591 = sphi 0, %s595
                  %p592 = scmp.ge.s32.totalorder %s591, 1
                  %s596 = sphi %s567, %s567
                  %s597 = sphi %s555, %s555
                $region177: #{resnet18_client_forward.7} parent=173 // loop_header_branch
                  %594 = sbr.rel (%p592) target = $region181
                $region178: #{resnet18_client_forward.7} parent=173 // loop_body
                  _
                $region179: #{resnet18_client_forward.7} parent=173 // loop_footer
                  %s595 = sadd.s32 1, %s591
                $region180: #{resnet18_client_forward.7} parent=173 // loop_footer_branch
                  %590 = sbr.rel target = $region176
                $region181: #{resnet18_client_forward.7} parent=173 // loop_exit
                  _
                %s599 = ssub.s32 16, 1
                loop: start=0, step=1, limit=1
                $region182: #{resnet18_client_forward.7} parent=173 // loop_pre_header
                  _
                $region183: #{resnet18_client_forward.7} parent=173 // loop_header
                  %s601 = sphi 0, %s605
                  %p602 = scmp.ge.s32.totalorder %s601, 1
                  %s606 = sphi %s567, %s567
                  %s607 = sphi %s555, %s555
                $region184: #{resnet18_client_forward.7} parent=173 // loop_header_branch
                  %604 = sbr.rel (%p602) target = $region188
                $region185: #{resnet18_client_forward.7} parent=173 // loop_body
                  %v608 = vld [vmem:[%s606] sm:%s599]
                  %609 = vst [vmem:[%s607] sm:%s599] %v608
                  %v610 = vld [vmem:[%s606 + $0x40] sm:%s599]
                  %611 = vst [vmem:[%s607 + $0x4] sm:%s599] %v610
                $region186: #{resnet18_client_forward.7} parent=173 // loop_footer
                  %s605 = sadd.s32 1, %s601
                $region187: #{resnet18_client_forward.7} parent=173 // loop_footer_branch
                  %600 = sbr.rel target = $region183
                $region188: #{resnet18_client_forward.7} parent=173 // loop_exit
                  _
              $region174: #{resnet18_client_forward.7} parent=158 // pred_fallthru
                _
            $region159: #{resnet18_client_forward.7} parent=154 // pred_fallthru
              _
            // Predicated region
            $region160: #{resnet18_client_forward.7} parent=154 // pred_check
              _
            $region161: #{resnet18_client_forward.7} parent=154 // pred_check_branch
              %573 = sbr.rel (0) target = $region163
            $region162: #{resnet18_client_forward.7} parent=154 // pred_region
              %s575 = ssub.s32 16, 1
              loop: start=0, step=1, limit=1
              $region164: #{resnet18_client_forward.7} parent=162 // loop_pre_header
                _
              $region165: #{resnet18_client_forward.7} parent=162 // loop_header
                %s577 = sphi 0, %s581
                %p578 = scmp.ge.s32.totalorder %s577, 1
                %s582 = sphi %s567, %s567
                %s583 = sphi %s555, %s555
              $region166: #{resnet18_client_forward.7} parent=162 // loop_header_branch
                %580 = sbr.rel (%p578) target = $region170
              $region167: #{resnet18_client_forward.7} parent=162 // loop_body
                %v584 = vld [vmem:[%s582] sm:%s575]
                %585 = vst [vmem:[%s583] sm:%s575] %v584
                %v586 = vld [vmem:[%s582 + $0x40] sm:%s575]
                %587 = vst [vmem:[%s583 + $0x4] sm:%s575] %v586
              $region168: #{resnet18_client_forward.7} parent=162 // loop_footer
                %s581 = sadd.s32 1, %s577
              $region169: #{resnet18_client_forward.7} parent=162 // loop_footer_branch
                %576 = sbr.rel target = $region165
              $region170: #{resnet18_client_forward.7} parent=162 // loop_exit
                _
            $region163: #{resnet18_client_forward.7} parent=154 // pred_fallthru
              _
          $region155: #{resnet18_client_forward.7} parent=150 // pred_fallthru
            _
          %612 = vnop
        $region151: #{resnet18_client_forward.7} parent=23 // pred_fallthru
          _
        // Predicated region
        $region189: #{resnet18_client_forward.7} parent=23 // pred_check
          %p613 = pneg %p258
        $region190: #{resnet18_client_forward.7} parent=23 // pred_check_branch
          %615 = sbr.rel (%p613) target = $region192
        $region191: #{resnet18_client_forward.7} parent=23 // pred_region
          %s616 = sand.u32 %s248, 1
          %s617 = sand.u32 %s248, 1
          %s618 = smul.addr %s617, 8
          %s619 = scalar_lea.vmem [#allocation6], %s618
          %s620 = smul.u32 %s22, 2
          %s621 = sadd.s32 %s620, 1
          %p622 = scmp.gt.s32.totalorder %s621, 0
          %s623 = scalar_select %p622, %s621, 0
          %p624 = scmp.lt.s32.totalorder %s623, 7
          %s625 = scalar_select %p624, %s623, 7
          %s626 = smul.u32 2, %s21
          %s627 = smul.addr %s625, 2
          %s628 = smul.addr %s626, 16
          %s629 = sadd.s32 %s627, %s628
          %s630 = smul.addr %s629, 4
          %s631 = scalar_lea.vmem %s6, %s630
          // Predicated region
          $region193: #{resnet18_client_forward.7} parent=191 // pred_check
            _
          $region194: #{resnet18_client_forward.7} parent=191 // pred_check_branch
            %633 = sbr.rel (0) target = $region196
          $region195: #{resnet18_client_forward.7} parent=191 // pred_region
            // Predicated region
            $region197: #{resnet18_client_forward.7} parent=195 // pred_check
              _
            $region198: #{resnet18_client_forward.7} parent=195 // pred_check_branch
              %635 = sbr.rel target = $region200
            $region199: #{resnet18_client_forward.7} parent=195 // pred_region
              // Predicated region
              $region212: #{resnet18_client_forward.7} parent=199 // pred_check
                _
              $region213: #{resnet18_client_forward.7} parent=199 // pred_check_branch
                %653 = sbr.rel (0) target = $region215
              $region214: #{resnet18_client_forward.7} parent=199 // pred_region
                loop: start=0, step=1, limit=1
                $region216: #{resnet18_client_forward.7} parent=214 // loop_pre_header
                  _
                $region217: #{resnet18_client_forward.7} parent=214 // loop_header
                  %s655 = sphi 0, %s659
                  %p656 = scmp.ge.s32.totalorder %s655, 1
                  %s660 = sphi %s631, %s631
                  %s661 = sphi %s619, %s619
                $region218: #{resnet18_client_forward.7} parent=214 // loop_header_branch
                  %658 = sbr.rel (%p656) target = $region222
                $region219: #{resnet18_client_forward.7} parent=214 // loop_body
                  _
                $region220: #{resnet18_client_forward.7} parent=214 // loop_footer
                  %s659 = sadd.s32 1, %s655
                $region221: #{resnet18_client_forward.7} parent=214 // loop_footer_branch
                  %654 = sbr.rel target = $region217
                $region222: #{resnet18_client_forward.7} parent=214 // loop_exit
                  _
                %s663 = ssub.s32 16, 1
                loop: start=0, step=1, limit=1
                $region223: #{resnet18_client_forward.7} parent=214 // loop_pre_header
                  _
                $region224: #{resnet18_client_forward.7} parent=214 // loop_header
                  %s665 = sphi 0, %s669
                  %p666 = scmp.ge.s32.totalorder %s665, 1
                  %s670 = sphi %s631, %s631
                  %s671 = sphi %s619, %s619
                $region225: #{resnet18_client_forward.7} parent=214 // loop_header_branch
                  %668 = sbr.rel (%p666) target = $region229
                $region226: #{resnet18_client_forward.7} parent=214 // loop_body
                  %v672 = vld [vmem:[%s670] sm:%s663]
                  %673 = vst [vmem:[%s671] sm:%s663] %v672
                  %v674 = vld [vmem:[%s670 + $0x40] sm:%s663]
                  %675 = vst [vmem:[%s671 + $0x4] sm:%s663] %v674
                $region227: #{resnet18_client_forward.7} parent=214 // loop_footer
                  %s669 = sadd.s32 1, %s665
                $region228: #{resnet18_client_forward.7} parent=214 // loop_footer_branch
                  %664 = sbr.rel target = $region224
                $region229: #{resnet18_client_forward.7} parent=214 // loop_exit
                  _
              $region215: #{resnet18_client_forward.7} parent=199 // pred_fallthru
                _
            $region200: #{resnet18_client_forward.7} parent=195 // pred_fallthru
              _
            // Predicated region
            $region201: #{resnet18_client_forward.7} parent=195 // pred_check
              _
            $region202: #{resnet18_client_forward.7} parent=195 // pred_check_branch
              %637 = sbr.rel (0) target = $region204
            $region203: #{resnet18_client_forward.7} parent=195 // pred_region
              %s639 = ssub.s32 16, 1
              loop: start=0, step=1, limit=1
              $region205: #{resnet18_client_forward.7} parent=203 // loop_pre_header
                _
              $region206: #{resnet18_client_forward.7} parent=203 // loop_header
                %s641 = sphi 0, %s645
                %p642 = scmp.ge.s32.totalorder %s641, 1
                %s646 = sphi %s631, %s631
                %s647 = sphi %s619, %s619
              $region207: #{resnet18_client_forward.7} parent=203 // loop_header_branch
                %644 = sbr.rel (%p642) target = $region211
              $region208: #{resnet18_client_forward.7} parent=203 // loop_body
                %v648 = vld [vmem:[%s646] sm:%s639]
                %649 = vst [vmem:[%s647] sm:%s639] %v648
                %v650 = vld [vmem:[%s646 + $0x40] sm:%s639]
                %651 = vst [vmem:[%s647 + $0x4] sm:%s639] %v650
              $region209: #{resnet18_client_forward.7} parent=203 // loop_footer
                %s645 = sadd.s32 1, %s641
              $region210: #{resnet18_client_forward.7} parent=203 // loop_footer_branch
                %640 = sbr.rel target = $region206
              $region211: #{resnet18_client_forward.7} parent=203 // loop_exit
                _
            $region204: #{resnet18_client_forward.7} parent=195 // pred_fallthru
              _
          $region196: #{resnet18_client_forward.7} parent=191 // pred_fallthru
            _
          %676 = vnop
        $region192: #{resnet18_client_forward.7} parent=23 // pred_fallthru
          _
        // Predicated region
        $region230: #{resnet18_client_forward.7} parent=23 // pred_check
          %p677 = pneg %p298
        $region231: #{resnet18_client_forward.7} parent=23 // pred_check_branch
          %679 = sbr.rel (%p677) target = $region233
        $region232: #{resnet18_client_forward.7} parent=23 // pred_region
          %s680 = sand.u32 %s288, 1
          %s681 = sand.u32 %s288, 1
          %s682 = smul.addr %s681, 8
          %s683 = scalar_lea.vmem [#allocation7], %s682
          %s684 = smul.u32 %s22, 2
          %s685 = sadd.s32 %s684, 1
          %p686 = scmp.gt.s32.totalorder %s685, 0
          %s687 = scalar_select %p686, %s685, 0
          %p688 = scmp.lt.s32.totalorder %s687, 7
          %s689 = scalar_select %p688, %s687, 7
          %s690 = smul.u32 2, %s21
          %s691 = smul.addr %s689, 2
          %s692 = sadd.s32 1, %s691
          %s693 = smul.addr %s690, 16
          %s694 = sadd.s32 %s692, %s693
          %s695 = smul.addr %s694, 4
          %s696 = scalar_lea.vmem %s7, %s695
          // Predicated region
          $region234: #{resnet18_client_forward.7} parent=232 // pred_check
            _
          $region235: #{resnet18_client_forward.7} parent=232 // pred_check_branch
            %698 = sbr.rel (0) target = $region237
          $region236: #{resnet18_client_forward.7} parent=232 // pred_region
            // Predicated region
            $region238: #{resnet18_client_forward.7} parent=236 // pred_check
              _
            $region239: #{resnet18_client_forward.7} parent=236 // pred_check_branch
              %700 = sbr.rel target = $region241
            $region240: #{resnet18_client_forward.7} parent=236 // pred_region
              // Predicated region
              $region253: #{resnet18_client_forward.7} parent=240 // pred_check
                _
              $region254: #{resnet18_client_forward.7} parent=240 // pred_check_branch
                %718 = sbr.rel (0) target = $region256
              $region255: #{resnet18_client_forward.7} parent=240 // pred_region
                loop: start=0, step=1, limit=1
                $region257: #{resnet18_client_forward.7} parent=255 // loop_pre_header
                  _
                $region258: #{resnet18_client_forward.7} parent=255 // loop_header
                  %s720 = sphi 0, %s724
                  %p721 = scmp.ge.s32.totalorder %s720, 1
                  %s725 = sphi %s696, %s696
                  %s726 = sphi %s683, %s683
                $region259: #{resnet18_client_forward.7} parent=255 // loop_header_branch
                  %723 = sbr.rel (%p721) target = $region263
                $region260: #{resnet18_client_forward.7} parent=255 // loop_body
                  _
                $region261: #{resnet18_client_forward.7} parent=255 // loop_footer
                  %s724 = sadd.s32 1, %s720
                $region262: #{resnet18_client_forward.7} parent=255 // loop_footer_branch
                  %719 = sbr.rel target = $region258
                $region263: #{resnet18_client_forward.7} parent=255 // loop_exit
                  _
                %s728 = ssub.s32 16, 1
                loop: start=0, step=1, limit=1
                $region264: #{resnet18_client_forward.7} parent=255 // loop_pre_header
                  _
                $region265: #{resnet18_client_forward.7} parent=255 // loop_header
                  %s730 = sphi 0, %s734
                  %p731 = scmp.ge.s32.totalorder %s730, 1
                  %s735 = sphi %s696, %s696
                  %s736 = sphi %s683, %s683
                $region266: #{resnet18_client_forward.7} parent=255 // loop_header_branch
                  %733 = sbr.rel (%p731) target = $region270
                $region267: #{resnet18_client_forward.7} parent=255 // loop_body
                  %v737 = vld [vmem:[%s735] sm:%s728]
                  %738 = vst [vmem:[%s736] sm:%s728] %v737
                  %v739 = vld [vmem:[%s735 + $0x40] sm:%s728]
                  %740 = vst [vmem:[%s736 + $0x4] sm:%s728] %v739
                $region268: #{resnet18_client_forward.7} parent=255 // loop_footer
                  %s734 = sadd.s32 1, %s730
                $region269: #{resnet18_client_forward.7} parent=255 // loop_footer_branch
                  %729 = sbr.rel target = $region265
                $region270: #{resnet18_client_forward.7} parent=255 // loop_exit
                  _
              $region256: #{resnet18_client_forward.7} parent=240 // pred_fallthru
                _
            $region241: #{resnet18_client_forward.7} parent=236 // pred_fallthru
              _
            // Predicated region
            $region242: #{resnet18_client_forward.7} parent=236 // pred_check
              _
            $region243: #{resnet18_client_forward.7} parent=236 // pred_check_branch
              %702 = sbr.rel (0) target = $region245
            $region244: #{resnet18_client_forward.7} parent=236 // pred_region
              %s704 = ssub.s32 16, 1
              loop: start=0, step=1, limit=1
              $region246: #{resnet18_client_forward.7} parent=244 // loop_pre_header
                _
              $region247: #{resnet18_client_forward.7} parent=244 // loop_header
                %s706 = sphi 0, %s710
                %p707 = scmp.ge.s32.totalorder %s706, 1
                %s711 = sphi %s696, %s696
                %s712 = sphi %s683, %s683
              $region248: #{resnet18_client_forward.7} parent=244 // loop_header_branch
                %709 = sbr.rel (%p707) target = $region252
              $region249: #{resnet18_client_forward.7} parent=244 // loop_body
                %v713 = vld [vmem:[%s711] sm:%s704]
                %714 = vst [vmem:[%s712] sm:%s704] %v713
                %v715 = vld [vmem:[%s711 + $0x40] sm:%s704]
                %716 = vst [vmem:[%s712 + $0x4] sm:%s704] %v715
              $region250: #{resnet18_client_forward.7} parent=244 // loop_footer
                %s710 = sadd.s32 1, %s706
              $region251: #{resnet18_client_forward.7} parent=244 // loop_footer_branch
                %705 = sbr.rel target = $region247
              $region252: #{resnet18_client_forward.7} parent=244 // loop_exit
                _
            $region245: #{resnet18_client_forward.7} parent=236 // pred_fallthru
              _
          $region237: #{resnet18_client_forward.7} parent=232 // pred_fallthru
            _
          %741 = vnop
        $region233: #{resnet18_client_forward.7} parent=23 // pred_fallthru
          _
      $region24: #{resnet18_client_forward.7} parent=5 // pred_fallthru
        _
      %p742 = scmp.le.s32.totalorder 1, %s14
      %p743 = scmp.lt.s32.totalorder %s14, 5
      %p744 = pnand %p742, %p743
      %p745 = pneg %p744
      // Predicated region
      $region271: #{resnet18_client_forward.7} parent=5 // pred_check
        _
      $region272: #{resnet18_client_forward.7} parent=5 // pred_check_branch
        %747 = sbr.rel (%p744) target = $region274
      $region273: #{resnet18_client_forward.7} parent=5 // pred_region
        %s748 = ssub.s32 %s14, 1
        %s749 = sand.u32 %s95, 1
        %s750 = sand.u32 %s95, 1
        %s751 = smul.addr %s750, 8
        %s752 = scalar_lea.vmem [#allocation2], %s751
        // Predicated region
        $region275: #{resnet18_client_forward.7} parent=273 // pred_check
          %p753 = pneg %p108
        $region276: #{resnet18_client_forward.7} parent=273 // pred_check_branch
          %755 = sbr.rel (%p753) target = $region278
        $region277: #{resnet18_client_forward.7} parent=273 // pred_region
          _
        $region278: #{resnet18_client_forward.7} parent=273 // pred_fallthru
          _
        %s756 = sand.u32 %s135, 1
        %s757 = sand.u32 %s135, 1
        %s758 = smul.addr %s757, 8
        %s759 = scalar_lea.vmem [#allocation3], %s758
        // Predicated region
        $region279: #{resnet18_client_forward.7} parent=273 // pred_check
          %p760 = pneg %p148
        $region280: #{resnet18_client_forward.7} parent=273 // pred_check_branch
          %762 = sbr.rel (%p760) target = $region282
        $region281: #{resnet18_client_forward.7} parent=273 // pred_region
          _
        $region282: #{resnet18_client_forward.7} parent=273 // pred_fallthru
          _
        %s763 = sand.u32 %s173, 1
        %s764 = sand.u32 %s173, 1
        %s765 = smul.addr %s764, 8
        %s766 = scalar_lea.vmem [#allocation4], %s765
        // Predicated region
        $region283: #{resnet18_client_forward.7} parent=273 // pred_check
          %p767 = pneg %p186
        $region284: #{resnet18_client_forward.7} parent=273 // pred_check_branch
          %769 = sbr.rel (%p767) target = $region286
        $region285: #{resnet18_client_forward.7} parent=273 // pred_region
          _
        $region286: #{resnet18_client_forward.7} parent=273 // pred_fallthru
          _
        %s770 = sand.u32 %s211, 1
        %s771 = sand.u32 %s211, 1
        %s772 = smul.addr %s771, 8
        %s773 = scalar_lea.vmem [#allocation5], %s772
        // Predicated region
        $region287: #{resnet18_client_forward.7} parent=273 // pred_check
          %p774 = pneg %p224
        $region288: #{resnet18_client_forward.7} parent=273 // pred_check_branch
          %776 = sbr.rel (%p774) target = $region290
        $region289: #{resnet18_client_forward.7} parent=273 // pred_region
          _
        $region290: #{resnet18_client_forward.7} parent=273 // pred_fallthru
          _
        %s777 = sand.u32 %s251, 1
        %s778 = sand.u32 %s251, 1
        %s779 = smul.addr %s778, 8
        %s780 = scalar_lea.vmem [#allocation6], %s779
        // Predicated region
        $region291: #{resnet18_client_forward.7} parent=273 // pred_check
          %p781 = pneg %p264
        $region292: #{resnet18_client_forward.7} parent=273 // pred_check_branch
          %783 = sbr.rel (%p781) target = $region294
        $region293: #{resnet18_client_forward.7} parent=273 // pred_region
          _
        $region294: #{resnet18_client_forward.7} parent=273 // pred_fallthru
          _
        %s784 = sand.u32 %s291, 1
        %s785 = sand.u32 %s291, 1
        %s786 = smul.addr %s785, 8
        %s787 = scalar_lea.vmem [#allocation7], %s786
        // Predicated region
        $region295: #{resnet18_client_forward.7} parent=273 // pred_check
          %p788 = pneg %p304
        $region296: #{resnet18_client_forward.7} parent=273 // pred_check_branch
          %790 = sbr.rel (%p788) target = $region298
        $region297: #{resnet18_client_forward.7} parent=273 // pred_region
          _
        $region298: #{resnet18_client_forward.7} parent=273 // pred_fallthru
          _
        %p791 = pneg %p47
        %p792 = pneg %p44
        %p793 = pneg %p68
        %p794 = pneg %p65
        %s795 = sand.u32 %s95, 1
        %s796 = sand.u32 %s95, 1
        %s797 = smul.addr %s796, 8
        %s798 = scalar_lea.vmem [#allocation2], %s797
        %p799 = pneg %p108
        %p800 = pneg %p105
        %s801 = sand.u32 %s135, 1
        %s802 = sand.u32 %s135, 1
        %s803 = smul.addr %s802, 8
        %s804 = scalar_lea.vmem [#allocation3], %s803
        %p805 = pneg %p148
        %p806 = pneg %p145
        %s807 = sand.u32 %s173, 1
        %s808 = sand.u32 %s173, 1
        %s809 = smul.addr %s808, 8
        %s810 = scalar_lea.vmem [#allocation4], %s809
        %p811 = pneg %p186
        %p812 = pneg %p183
        %s813 = sand.u32 %s211, 1
        %s814 = sand.u32 %s211, 1
        %s815 = smul.addr %s814, 8
        %s816 = scalar_lea.vmem [#allocation5], %s815
        %p817 = pneg %p224
        %p818 = pneg %p221
        %s819 = sand.u32 %s251, 1
        %s820 = sand.u32 %s251, 1
        %s821 = smul.addr %s820, 8
        %s822 = scalar_lea.vmem [#allocation6], %s821
        %p823 = pneg %p264
        %p824 = pneg %p261
        %s825 = sand.u32 %s291, 1
        %s826 = sand.u32 %s291, 1
        %s827 = smul.addr %s826, 8
        %s828 = scalar_lea.vmem [#allocation7], %s827
        %p829 = pneg %p304
        %p830 = pneg %p301
        %p831 = pneg %p332
        %p832 = pneg %p329
        %s833 = sand.u32 %s319, 1
        %s834 = sand.u32 %s319, 1
        %s835 = smul.addr %s834, 4
        %s836 = scalar_lea.vmem [#allocation8], %s835
        %s837 = smul.u32 %s24, 2
        %s838 = ssub.s32 %s837, 1
        %p839 = scmp.gt.s32.totalorder %s838, 0
        %s840 = scalar_select %p839, %s838, 0
        %p841 = scmp.lt.s32.totalorder %s840, 7
        %s842 = scalar_select %p841, %s840, 7
        %s843 = smul.u32 2, %s23
        %s844 = smul.u32 %s24, 2
        %s845 = ssub.s32 %s844, 1
        %p846 = scmp.gt.s32.totalorder %s845, 0
        %s847 = scalar_select %p846, %s845, 0
        %p848 = scmp.lt.s32.totalorder %s847, 7
        %s849 = scalar_select %p848, %s847, 7
        %s850 = smul.u32 2, %s23
        %s851 = smul.u32 %s24, 2
        %p852 = scmp.gt.s32.totalorder %s851, 0
        %s853 = scalar_select %p852, %s851, 0
        %p854 = scmp.lt.s32.totalorder %s853, 7
        %s855 = scalar_select %p854, %s853, 7
        %s856 = smul.u32 2, %s23
        %s857 = smul.u32 %s24, 2
        %p858 = scmp.gt.s32.totalorder %s857, 0
        %s859 = scalar_select %p858, %s857, 0
        %p860 = scmp.lt.s32.totalorder %s859, 7
        %s861 = scalar_select %p860, %s859, 7
        %s862 = smul.u32 2, %s23
        %s863 = smul.u32 %s24, 2
        %s864 = sadd.s32 %s863, 1
        %p865 = scmp.gt.s32.totalorder %s864, 0
        %s866 = scalar_select %p865, %s864, 0
        %p867 = scmp.lt.s32.totalorder %s866, 7
        %s868 = scalar_select %p867, %s866, 7
        %s869 = smul.u32 2, %s23
        %s870 = smul.u32 %s24, 2
        %s871 = sadd.s32 %s870, 1
        %p872 = scmp.gt.s32.totalorder %s871, 0
        %s873 = scalar_select %p872, %s871, 0
        %p874 = scmp.lt.s32.totalorder %s873, 7
        %s875 = scalar_select %p874, %s873, 7
        %s876 = smul.u32 2, %s23
        %s877 = smul.u32 2, %s23
        %v878 = vld [vmem:[%s0] sm:$0x1]
        %v879 = vld [vmem:[%s1] sm:$0x1]
        %v880 = vld [vmem:[%s752] sm:$0x3]
        %v881 = vld [vmem:[%s752 + $0x4] sm:$0x3]
        %v882 = vld [vmem:[%s759] sm:$0x3]
        %v883 = vld [vmem:[%s759 + $0x4] sm:$0x3]
        %v884 = vld [vmem:[%s752] sm:$0x7]
        %v885 = vld [vmem:[%s752 + $0x4] sm:$0x7]
        %v886 = vunpack.c.l.bf16 %v880
        %v887 = vunpack.c.l.bf16 %v881
        %v889 = vperm.slane %v878, 0
        %v891 = vmul.f32 %v886, %v889
        %v892 = vmul.f32 %v887, %v889
        %v894 = vperm.slane %v879, 0
        %v896 = vadd.f32 %v891, %v894
        %v897 = vadd.f32 %v892, %v894
        %v898 = vunpack.c.l.bf16 %v882
        %v899 = vunpack.c.l.bf16 %v883
        %v900 = vmul.f32 %v898, %v889
        %v901 = vmul.f32 %v899, %v889
        %v902 = vadd.f32 %v900, %v894
        %v903 = vadd.f32 %v901, %v894
        %v904 = vmax.f32 %v896, %v902
        %v905 = vmax.f32 %v897, %v903
        %v906 = vunpack.c.l.bf16 %v884
        %v907 = vunpack.c.l.bf16 %v885
        %v908 = vmul.f32 %v906, %v889
        %v909 = vmul.f32 %v907, %v889
        %v910 = vadd.f32 %v908, %v894
        %v911 = vadd.f32 %v909, %v894
        %v914 = vrot.slane %v910, 1
        %v915 = vrot.slane %v911, 1
        %v918 = vmax.f32 %v904, %v914
        %v919 = vmax.f32 %v905, %v915
        %v920 = vld [vmem:[%s766] sm:$0x3]
        %v921 = vld [vmem:[%s766 + $0x4] sm:$0x3]
        %v922 = vld [vmem:[%s773] sm:$0x3]
        %v923 = vld [vmem:[%s773 + $0x4] sm:$0x3]
        %v924 = vld [vmem:[%s766] sm:$0x7]
        %v925 = vld [vmem:[%s766 + $0x4] sm:$0x7]
        %v926 = vunpack.c.l.bf16 %v920
        %v927 = vunpack.c.l.bf16 %v921
        %v928 = vmul.f32 %v926, %v889
        %v929 = vmul.f32 %v927, %v889
        %v930 = vadd.f32 %v928, %v894
        %v931 = vadd.f32 %v929, %v894
        %v932 = vmax.f32 %v918, %v930
        %v933 = vmax.f32 %v919, %v931
        %v934 = vunpack.c.l.bf16 %v922
        %v935 = vunpack.c.l.bf16 %v923
        %v936 = vmul.f32 %v934, %v889
        %v937 = vmul.f32 %v935, %v889
        %v938 = vadd.f32 %v936, %v894
        %v939 = vadd.f32 %v937, %v894
        %v940 = vmax.f32 %v932, %v938
        %v941 = vmax.f32 %v933, %v939
        %v942 = vunpack.c.l.bf16 %v924
        %v943 = vunpack.c.l.bf16 %v925
        %v944 = vmul.f32 %v942, %v889
        %v945 = vmul.f32 %v943, %v889
        %v946 = vadd.f32 %v944, %v894
        %v947 = vadd.f32 %v945, %v894
        %v950 = vrot.slane %v946, 1
        %v951 = vrot.slane %v947, 1
        %v954 = vmax.f32 %v940, %v950
        %v955 = vmax.f32 %v941, %v951
        %v956 = vld [vmem:[%s780] sm:$0x3]
        %v957 = vld [vmem:[%s780 + $0x4] sm:$0x3]
        %v958 = vld [vmem:[%s787] sm:$0x3]
        %v959 = vld [vmem:[%s787 + $0x4] sm:$0x3]
        %v960 = vld [vmem:[%s780] sm:$0x7]
        %v961 = vld [vmem:[%s780 + $0x4] sm:$0x7]
        %v962 = vunpack.c.l.bf16 %v956
        %v963 = vunpack.c.l.bf16 %v957
        %v964 = vmul.f32 %v962, %v889
        %v965 = vmul.f32 %v963, %v889
        %v966 = vadd.f32 %v964, %v894
        %v967 = vadd.f32 %v965, %v894
        %v968 = vmax.f32 %v954, %v966
        %v969 = vmax.f32 %v955, %v967
        %v970 = vunpack.c.l.bf16 %v958
        %v971 = vunpack.c.l.bf16 %v959
        %v972 = vmul.f32 %v970, %v889
        %v973 = vmul.f32 %v971, %v889
        %v974 = vadd.f32 %v972, %v894
        %v975 = vadd.f32 %v973, %v894
        %v976 = vmax.f32 %v968, %v974
        %v977 = vmax.f32 %v969, %v975
        %v978 = vunpack.c.l.bf16 %v960
        %v979 = vunpack.c.l.bf16 %v961
        %v980 = vmul.f32 %v978, %v889
        %v981 = vmul.f32 %v979, %v889
        %v982 = vadd.f32 %v980, %v894
        %v983 = vadd.f32 %v981, %v894
        %v986 = vrot.slane %v982, 1
        %v987 = vrot.slane %v983, 1
        %v990 = vmax.f32 %v976, %v986
        %v991 = vmax.f32 %v977, %v987
        %v992 = vmax.f32 %v990, 0.0
        %v993 = vmax.f32 %v991, 0.0
        %v994 = vpack.c.bf16 %v992, %v992
        %v995 = vpack.c.bf16 %v993, %v993
        %vm996 = vcmask 517120
        %997 = vst.msk [vmem:[%s836] sm:$0x3] %vm996, %v994
        %998 = vst.msk [vmem:[%s836 + $0x2] sm:$0x3] %vm996, %v995
        %s999 = sand.u32 %s319, 1
        %s1000 = sand.u32 %s319, 1
        %s1001 = smul.addr %s1000, 4
        %s1002 = scalar_lea.vmem [#allocation8], %s1001
        // Predicated region
        $region299: #{resnet18_client_forward.7} parent=273 // pred_check
          %p1003 = pneg %p329
        $region300: #{resnet18_client_forward.7} parent=273 // pred_check_branch
          %1005 = sbr.rel (%p1003) target = $region302
        $region301: #{resnet18_client_forward.7} parent=273 // pred_region
          %s1006 = smul.u32 2, %s23
          %s1007 = smul.addr %s1006, 4
          %s1008 = sadd.s32 %s24, %s1007
          %s1009 = smul.addr %s1008, 2
          %s1010 = scalar_lea.vmem %s8, %s1009
          // Predicated region
          $region303: #{resnet18_client_forward.7} parent=301 // pred_check
            _
          $region304: #{resnet18_client_forward.7} parent=301 // pred_check_branch
            %1012 = sbr.rel (0) target = $region306
          $region305: #{resnet18_client_forward.7} parent=301 // pred_region
            // Predicated region
            $region307: #{resnet18_client_forward.7} parent=305 // pred_check
              _
            $region308: #{resnet18_client_forward.7} parent=305 // pred_check_branch
              %1014 = sbr.rel target = $region310
            $region309: #{resnet18_client_forward.7} parent=305 // pred_region
              // Predicated region
              $region322: #{resnet18_client_forward.7} parent=309 // pred_check
                _
              $region323: #{resnet18_client_forward.7} parent=309 // pred_check_branch
                %1032 = sbr.rel (0) target = $region325
              $region324: #{resnet18_client_forward.7} parent=309 // pred_region
                %s1034 = ssub.s32 4, 1
                loop: start=0, step=1, limit=1
                $region326: #{resnet18_client_forward.7} parent=324 // loop_pre_header
                  _
                $region327: #{resnet18_client_forward.7} parent=324 // loop_header
                  %s1036 = sphi 0, %s1040
                  %p1037 = scmp.ge.s32.totalorder %s1036, 1
                  %s1041 = sphi %s1002, %s1002
                  %s1042 = sphi %s1010, %s1010
                $region328: #{resnet18_client_forward.7} parent=324 // loop_header_branch
                  %1039 = sbr.rel (%p1037) target = $region332
                $region329: #{resnet18_client_forward.7} parent=324 // loop_body
                  %v1043 = vld [vmem:[%s1041] sm:%s1034]
                  %1044 = vst [vmem:[%s1042] sm:%s1034] %v1043
                  %v1045 = vld [vmem:[%s1041 + $0x2] sm:%s1034]
                  %1046 = vst [vmem:[%s1042 + $0x8] sm:%s1034] %v1045
                $region330: #{resnet18_client_forward.7} parent=324 // loop_footer
                  %s1040 = sadd.s32 1, %s1036
                $region331: #{resnet18_client_forward.7} parent=324 // loop_footer_branch
                  %1035 = sbr.rel target = $region327
                $region332: #{resnet18_client_forward.7} parent=324 // loop_exit
                  _
              $region325: #{resnet18_client_forward.7} parent=309 // pred_fallthru
                _
            $region310: #{resnet18_client_forward.7} parent=305 // pred_fallthru
              _
            // Predicated region
            $region311: #{resnet18_client_forward.7} parent=305 // pred_check
              _
            $region312: #{resnet18_client_forward.7} parent=305 // pred_check_branch
              %1016 = sbr.rel (0) target = $region314
            $region313: #{resnet18_client_forward.7} parent=305 // pred_region
              %s1018 = ssub.s32 4, 1
              loop: start=0, step=1, limit=1
              $region315: #{resnet18_client_forward.7} parent=313 // loop_pre_header
                _
              $region316: #{resnet18_client_forward.7} parent=313 // loop_header
                %s1020 = sphi 0, %s1024
                %p1021 = scmp.ge.s32.totalorder %s1020, 1
                %s1025 = sphi %s1002, %s1002
                %s1026 = sphi %s1010, %s1010
              $region317: #{resnet18_client_forward.7} parent=313 // loop_header_branch
                %1023 = sbr.rel (%p1021) target = $region321
              $region318: #{resnet18_client_forward.7} parent=313 // loop_body
                %v1027 = vld [vmem:[%s1025] sm:%s1018]
                %1028 = vst [vmem:[%s1026] sm:%s1018] %v1027
                %v1029 = vld [vmem:[%s1025 + $0x2] sm:%s1018]
                %1030 = vst [vmem:[%s1026 + $0x8] sm:%s1018] %v1029
              $region319: #{resnet18_client_forward.7} parent=313 // loop_footer
                %s1024 = sadd.s32 1, %s1020
              $region320: #{resnet18_client_forward.7} parent=313 // loop_footer_branch
                %1019 = sbr.rel target = $region316
              $region321: #{resnet18_client_forward.7} parent=313 // loop_exit
                _
            $region314: #{resnet18_client_forward.7} parent=305 // pred_fallthru
              _
          $region306: #{resnet18_client_forward.7} parent=301 // pred_fallthru
            _
          %1047 = vnop
        $region302: #{resnet18_client_forward.7} parent=273 // pred_fallthru
          _
      $region274: #{resnet18_client_forward.7} parent=5 // pred_fallthru
        _
      %p1048 = scmp.le.s32.totalorder 2, %s14
      // Predicated region
      $region333: #{resnet18_client_forward.7} parent=5 // pred_check
        %p1049 = pneg %p1048
      $region334: #{resnet18_client_forward.7} parent=5 // pred_check_branch
        %1051 = sbr.rel (%p1049) target = $region336
      $region335: #{resnet18_client_forward.7} parent=5 // pred_region
        %s1052 = ssub.s32 %s14, 2
        // Predicated region
        $region337: #{resnet18_client_forward.7} parent=335 // pred_check
          %p1053 = pneg %p335
        $region338: #{resnet18_client_forward.7} parent=335 // pred_check_branch
          %1055 = sbr.rel (%p1053) target = $region340
        $region339: #{resnet18_client_forward.7} parent=335 // pred_region
          %s1056 = sand.u32 %s320, 1
          %s1057 = sand.u32 %s320, 1
          %s1058 = smul.addr %s1057, 4
          %s1059 = scalar_lea.vmem [#allocation8], %s1058
        $region340: #{resnet18_client_forward.7} parent=335 // pred_fallthru
          _
      $region336: #{resnet18_client_forward.7} parent=5 // pred_fallthru
        _
    $region6: #{resnet18_client_forward.7} parent=1 // loop_footer
      %s18 = sadd.s32 1, %s14
    $region7: #{resnet18_client_forward.7} parent=1 // loop_footer_branch
      %13 = sbr.rel target = $region3
    $region8: #{resnet18_client_forward.7} parent=1 // loop_exit
      _

// kernel: resnet18_client_forward.6
$region0: #{resnet18_client_forward.6}
  #allocation0 [shape = 'u32[]', space=smem, size = 0x4, offset = 0x4, fixed_abs, tag = 'smem constant byte address 0x4 - core index']
  #allocation1 [shape = 'u32[72,128]{1,0:T(1,128)}', space=vmem, size = 0x9000, scoped, tag = 'internal scratch']
  %s0 = inlined_call_operand.vmem [shape: bf16[128,147], index: 0, kind: input, shape index: {}]
  %s1 = inlined_call_operand.vmem [shape: bf16[147,64], index: 1, kind: input, shape index: {}]
  %s2 = inlined_call_operand.vmem [shape: bf16[128,64], index: 2, kind: output, shape index: {0}]
  %s3 = inlined_call_operand.vmem [shape: f32[2,1,64], index: 3, kind: output, shape index: {1}]
  %s4 = inlined_call_operand.vmem [shape: f32[2,1,64], index: 4, kind: output, shape index: {2}]
  %5 = xla_tuple %s2, %s3, %s4
  %s6 = sld [smem:[#allocation0]]
  $region57: #{resnet18_client_forward.6} parent=0
    _
  %s8 = ssub.s32 1, %s6
  %s9 = scalar_select 0, %s8, %s6
  loop: start=0, step=1, limit=4
  $region2: #{resnet18_client_forward.6} parent=0 // loop_pre_header
    _
  $region3: #{resnet18_client_forward.6} parent=0 // loop_header
    %s11 = sphi 0, %s15
    %p12 = scmp.ge.s32.totalorder %s11, 4
    %s21 = sphi 0, %s23
    %s24 = sphi 0, %s21
    %s25 = sphi 0, %s24
    %s41 = sphi 0, %s25
    %s45 = sphi 0, %s45
    %s47 = sphi 0, %s45
    %s48 = sphi 0, %s47
    %s62 = sphi 0, %s48
    %s68 = sphi 0, %s70
    %s71 = sphi 0, %s68
    %s72 = sphi 0, %s71
    %s88 = sphi 0, %s72
    %s94 = sphi 0, %s96
    %s97 = sphi 0, %s94
    %s98 = sphi 0, %s97
    %s114 = sphi 0, %s98
    %s120 = sphi 0, %s122
    %s123 = sphi 0, %s120
    %s124 = sphi 0, %s123
    %s140 = sphi 0, %s124
  $region4: #{resnet18_client_forward.6} parent=0 // loop_header_branch
    %14 = sbr.rel (%p12) target = $region8
  $region5: #{resnet18_client_forward.6} parent=0 // loop_body
    %s16 = ssub.s32 %s11, 1
    %s17 = ssub.s32 %s11, 2
    %s18 = sadd.s32 %s11, 1
    %s19 = ssub.s32 %s11, %s18
    %p20 = scmp.eq.s32.totalorder %s19, 0
    %s22 = sadd.s32 %s21, 1
    %s23 = scalar_select %p20, %s21, %s22
    %p26 = pneg %p20
    %p27 = scmp.eq.s32.totalorder %s11, 1
    %p28 = por %p26, %p27
    %p29 = scmp.ne.s32.totalorder %s21, %s24
    %p30 = scmp.eq.s32.totalorder %s11, 0
    %p31 = por %p29, %p30
    %p32 = scmp.ne.s32.totalorder %s21, %s24
    %p33 = scmp.eq.s32.totalorder %s16, 1
    %p34 = por %p32, %p33
    %p35 = scmp.ne.s32.totalorder %s24, %s25
    %p36 = scmp.eq.s32.totalorder %s16, 0
    %p37 = por %p35, %p36
    %p38 = scmp.ne.s32.totalorder %s24, %s25
    %p39 = scmp.eq.s32.totalorder %s17, 1
    %p40 = por %p38, %p39
    %p42 = scmp.ne.s32.totalorder %s25, %s41
    %p43 = scmp.eq.s32.totalorder %s17, 0
    %p44 = por %p42, %p43
    %s46 = sadd.s32 %s45, 1
    %p49 = scmp.eq.s32.totalorder %s11, 1
    %p50 = scmp.ne.s32.totalorder %s45, %s47
    %p51 = scmp.eq.s32.totalorder %s11, 0
    %p52 = por %p50, %p51
    %p53 = scmp.ne.s32.totalorder %s45, %s47
    %p54 = scmp.eq.s32.totalorder %s16, 1
    %p55 = por %p53, %p54
    %p56 = scmp.ne.s32.totalorder %s47, %s48
    %p57 = scmp.eq.s32.totalorder %s16, 0
    %p58 = por %p56, %p57
    %p59 = scmp.ne.s32.totalorder %s47, %s48
    %p60 = scmp.eq.s32.totalorder %s17, 1
    %p61 = por %p59, %p60
    %p63 = scmp.ne.s32.totalorder %s48, %s62
    %p64 = scmp.eq.s32.totalorder %s17, 0
    %p65 = por %p63, %p64
    %s66 = ssub.s32 %s11, %s18
    %p67 = scmp.eq.s32.totalorder %s66, 0
    %s69 = sadd.s32 %s68, 1
    %s70 = scalar_select %p67, %s68, %s69
    %p73 = pneg %p67
    %p74 = scmp.eq.s32.totalorder %s11, 1
    %p75 = por %p73, %p74
    %p76 = scmp.ne.s32.totalorder %s68, %s71
    %p77 = scmp.eq.s32.totalorder %s11, 0
    %p78 = por %p76, %p77
    %p79 = scmp.ne.s32.totalorder %s68, %s71
    %p80 = scmp.eq.s32.totalorder %s16, 1
    %p81 = por %p79, %p80
    %p82 = scmp.ne.s32.totalorder %s71, %s72
    %p83 = scmp.eq.s32.totalorder %s16, 0
    %p84 = por %p82, %p83
    %p85 = scmp.ne.s32.totalorder %s71, %s72
    %p86 = scmp.eq.s32.totalorder %s17, 1
    %p87 = por %p85, %p86
    %p89 = scmp.ne.s32.totalorder %s72, %s88
    %p90 = scmp.eq.s32.totalorder %s17, 0
    %p91 = por %p89, %p90
    %s92 = ssub.s32 %s11, %s18
    %p93 = scmp.eq.s32.totalorder %s92, 0
    %s95 = sadd.s32 %s94, 1
    %s96 = scalar_select %p93, %s94, %s95
    %p99 = pneg %p93
    %p100 = scmp.eq.s32.totalorder %s11, 1
    %p101 = por %p99, %p100
    %p102 = scmp.ne.s32.totalorder %s94, %s97
    %p103 = scmp.eq.s32.totalorder %s11, 0
    %p104 = por %p102, %p103
    %p105 = scmp.ne.s32.totalorder %s94, %s97
    %p106 = scmp.eq.s32.totalorder %s16, 1
    %p107 = por %p105, %p106
    %p108 = scmp.ne.s32.totalorder %s97, %s98
    %p109 = scmp.eq.s32.totalorder %s16, 0
    %p110 = por %p108, %p109
    %p111 = scmp.ne.s32.totalorder %s97, %s98
    %p112 = scmp.eq.s32.totalorder %s17, 1
    %p113 = por %p111, %p112
    %p115 = scmp.ne.s32.totalorder %s98, %s114
    %p116 = scmp.eq.s32.totalorder %s17, 0
    %p117 = por %p115, %p116
    %s118 = ssub.s32 %s11, %s18
    %p119 = scmp.eq.s32.totalorder %s118, 0
    %s121 = sadd.s32 %s120, 1
    %s122 = scalar_select %p119, %s120, %s121
    %p125 = pneg %p119
    %p126 = scmp.eq.s32.totalorder %s11, 1
    %p127 = por %p125, %p126
    %p128 = scmp.ne.s32.totalorder %s120, %s123
    %p129 = scmp.eq.s32.totalorder %s11, 0
    %p130 = por %p128, %p129
    %p131 = scmp.ne.s32.totalorder %s120, %s123
    %p132 = scmp.eq.s32.totalorder %s16, 1
    %p133 = por %p131, %p132
    %p134 = scmp.ne.s32.totalorder %s123, %s124
    %p135 = scmp.eq.s32.totalorder %s16, 0
    %p136 = por %p134, %p135
    %p137 = scmp.ne.s32.totalorder %s123, %s124
    %p138 = scmp.eq.s32.totalorder %s17, 1
    %p139 = por %p137, %p138
    %p141 = scmp.ne.s32.totalorder %s124, %s140
    %p142 = scmp.eq.s32.totalorder %s17, 0
    %p143 = por %p141, %p142
    %p144 = scmp.le.s32.totalorder 1, %s11
    %p145 = scmp.lt.s32.totalorder %s11, 3
    %p146 = pnand %p144, %p145
    %p147 = pneg %p146
    // Predicated region
    $region9: #{resnet18_client_forward.6} parent=5 // pred_check
      _
    $region10: #{resnet18_client_forward.6} parent=5 // pred_check_branch
      %149 = sbr.rel (%p146) target = $region12
    $region11: #{resnet18_client_forward.6} parent=5 // pred_region
      %s150 = ssub.s32 %s11, 1
      // Predicated region
      $region13: #{resnet18_client_forward.6} parent=11 // pred_check
        %p151 = pneg %p58
      $region14: #{resnet18_client_forward.6} parent=11 // pred_check_branch
        %153 = sbr.rel (%p151) target = $region16
      $region15: #{resnet18_client_forward.6} parent=11 // pred_region
        _
      $region16: #{resnet18_client_forward.6} parent=11 // pred_fallthru
        _
    $region12: #{resnet18_client_forward.6} parent=5 // pred_fallthru
      _
    %p154 = scmp.lt.s32.totalorder %s11, 2
    // Predicated region
    $region17: #{resnet18_client_forward.6} parent=5 // pred_check
      %p155 = pneg %p154
    $region18: #{resnet18_client_forward.6} parent=5 // pred_check_branch
      %157 = sbr.rel (%p155) target = $region20
    $region19: #{resnet18_client_forward.6} parent=5 // pred_region
      // Predicated region
      $region21: #{resnet18_client_forward.6} parent=19 // pred_check
        %p158 = pneg %p31
      $region22: #{resnet18_client_forward.6} parent=19 // pred_check_branch
        %160 = sbr.rel (%p158) target = $region24
      $region23: #{resnet18_client_forward.6} parent=19 // pred_region
        %s161 = smul.u32 8, %s11
        %p162 = scmp.lt.s32.totalorder %s161, 15
        %s163 = scalar_select %p162, %s161, 15
        %s164 = smul.addr %s163, 2
        %s165 = smul.addr %s164, 4
        %s166 = scalar_lea.vmem %s0, %s165
        %s167 = smul.u32 8, %s11
      $region24: #{resnet18_client_forward.6} parent=19 // pred_fallthru
        _
    $region20: #{resnet18_client_forward.6} parent=5 // pred_fallthru
      _
    %p168 = scmp.le.s32.totalorder 1, %s11
    %p169 = scmp.lt.s32.totalorder %s11, 3
    %p170 = pnand %p168, %p169
    %p171 = pneg %p170
    // Predicated region
    $region25: #{resnet18_client_forward.6} parent=5 // pred_check
      _
    $region26: #{resnet18_client_forward.6} parent=5 // pred_check_branch
      %173 = sbr.rel (%p170) target = $region28
    $region27: #{resnet18_client_forward.6} parent=5 // pred_region
      %s174 = ssub.s32 %s11, 1
      %s175 = smul.u32 8, %s16
      %p176 = scmp.lt.s32.totalorder %s175, 15
      %s177 = scalar_select %p176, %s175, 15
      %s178 = smul.addr %s177, 2
      %s179 = smul.addr %s178, 4
      %s180 = scalar_lea.vmem %s0, %s179
      %p181 = pneg %p37
      %p182 = pneg %p34
      %p183 = pneg %p58
      %p184 = pneg %p55
      %p185 = pneg %p84
      %p186 = pneg %p81
      %s187 = smul.u32 8, %s16
      %p188 = scmp.lt.s32.totalorder %s187, 15
      %s189 = scalar_select %p188, %s187, 15
      %s190 = smul.addr %s189, 4
      %s191 = scalar_lea.vmem %s2, %s190
      %p192 = pneg %p110
      %p193 = pneg %p107
      %p194 = scmp.lt.s32.totalorder %s16, 1
      %s195 = scalar_select %p194, %s16, 1
      %s196 = scalar_lea.vmem %s3, %s195
      %p197 = pneg %p136
      %p198 = pneg %p133
      %p199 = scmp.lt.s32.totalorder %s16, 1
      %s200 = scalar_select %p199, %s16, 1
      %s201 = scalar_lea.vmem %s4, %s200
      %s202 = smul.u32 8, %s16
      %p203 = scmp.lt.s32.totalorder %s202, 15
      %s204 = scalar_select %p203, %s202, 15
      %s205 = smul.addr %s204, 2
      %s206 = smul.addr %s205, 4
      %s207 = scalar_lea.vmem %s0, %s206
      %s208 = smul.u32 8, %s16
      %s209 = smul.u32 8, %s16
      %p210 = scmp.lt.s32.totalorder %s209, 15
      %s211 = scalar_select %p210, %s209, 15
      %s212 = smul.addr %s211, 4
      %s213 = scalar_lea.vmem %s2, %s212
      %s214 = smul.u32 8, %s16
      %p215 = scmp.lt.s32.totalorder %s16, 1
      %s216 = scalar_select %p215, %s16, 1
      %s217 = scalar_lea.vmem %s3, %s216
      %p218 = scmp.lt.s32.totalorder %s16, 1
      %s219 = scalar_select %p218, %s16, 1
      %s220 = scalar_lea.vmem %s4, %s219
      %v222 = vld [vmem:[%s207] sm:$0xff]
      %v223 = vld [vmem:[%s207 + $0x8] sm:$0xff]
      %v224 = vld [vmem:[%s207 + $0x10] sm:$0xff]
      %v225 = vld [vmem:[%s207 + $0x18] sm:$0xff]
      %v226 = vld [vmem:[%s207 + $0x20] sm:$0xff]
      %v227 = vld [vmem:[%s207 + $0x28] sm:$0xff]
      %v228 = vld [vmem:[%s207 + $0x30] sm:$0xff]
      %v229 = vld [vmem:[%s207 + $0x38] sm:$0xff]
      %v230 = vld [vmem:[%s1] sm:$0xf]
      %v231 = vld [vmem:[%s1 + $0x4] sm:$0xf]
      %v232 = vld [vmem:[%s1 + $0x8] sm:$0xf]
      %v233 = vld [vmem:[%s1 + $0xc] sm:$0xf]
      %v234 = vld [vmem:[%s1 + $0x10] sm:$0xf]
      %v235 = vld [vmem:[%s1 + $0x14] sm:$0xf]
      %v236 = vld [vmem:[%s1 + $0x18] sm:$0xf]
      %v237 = vld [vmem:[%s1 + $0x1c] sm:$0xf]
      %v238 = vld [vmem:[%s1 + $0x20] sm:$0xf]
      %v239 = vld [vmem:[%s1 + $0x24] sm:$0xf]
      %v240 = vld [vmem:[%s1 + $0x28] sm:$0xf]
      %v241 = vld [vmem:[%s1 + $0x2c] sm:$0xf]
      %v242 = vld [vmem:[%s1 + $0x30] sm:$0xf]
      %v243 = vld [vmem:[%s1 + $0x34] sm:$0xf]
      %v244 = vld [vmem:[%s1 + $0x38] sm:$0xf]
      %v245 = vld [vmem:[%s1 + $0x3c] sm:$0xf]
      %v246 = vld [vmem:[%s1 + $0x40] sm:$0xf]
      %v247 = vld [vmem:[%s1 + $0x44] sm:$0xf]
      %v248 = vld [vmem:[%s1 + $0x48] sm:$0x3]
      %v257 = vunpack.c.l.b16 %v222
      %v258 = vunpack.c.h.b16 %v222
      %v259 = vunpack.c.l.b16 %v223
      %v260 = vunpack.c.h.b16 %v223
      %v261 = vunpack.c.l.b16 %v224
      %v262 = vunpack.c.h.b16 %v224
      %v263 = vunpack.c.l.b16 %v225
      %v264 = vunpack.c.h.b16 %v225
      %v265 = vunpack.c.l.b16 %v226
      %v266 = vunpack.c.h.b16 %v226
      %v267 = vunpack.c.l.b16 %v227
      %v268 = vunpack.c.h.b16 %v227
      %v269 = vunpack.c.l.b16 %v228
      %v270 = vunpack.c.h.b16 %v228
      %v271 = vunpack.c.l.b16 %v229
      %v272 = vunpack.c.h.b16 %v229
      %v273 = vpack.c.b16 %v259, %v257
      %v274 = vpack.c.b16 %v260, %v258
      %v275 = vpack.c.b16 %v263, %v261
      %v276 = vpack.c.b16 %v264, %v262
      %v277 = vpack.c.b16 %v267, %v265
      %v278 = vpack.c.b16 %v268, %v266
      %v279 = vpack.c.b16 %v271, %v269
      %v280 = vpack.c.b16 %v272, %v270
      %v304 = vunpack.c.l.b16 %v230
      %v305 = vunpack.c.l.b16 %v231
      %v306 = vunpack.c.l.b16 %v232
      %v307 = vunpack.c.l.b16 %v233
      %v308 = vunpack.c.l.b16 %v234
      %v309 = vunpack.c.l.b16 %v235
      %v310 = vunpack.c.l.b16 %v236
      %v311 = vunpack.c.l.b16 %v237
      %v312 = vunpack.c.l.b16 %v238
      %v313 = vunpack.c.l.b16 %v239
      %v314 = vunpack.c.l.b16 %v240
      %v315 = vunpack.c.l.b16 %v241
      %v316 = vunpack.c.l.b16 %v242
      %v317 = vunpack.c.l.b16 %v243
      %v318 = vunpack.c.l.b16 %v244
      %v319 = vunpack.c.l.b16 %v245
      %v320 = vunpack.c.l.b16 %v246
      %v321 = vunpack.c.l.b16 %v247
      %v322 = vunpack.c.l.b16 %v248
      %v323 = vpack.c.b16 %v305, %v304
      %v324 = vpack.c.b16 %v307, %v306
      %v325 = vpack.c.b16 %v309, %v308
      %v326 = vpack.c.b16 %v311, %v310
      %v327 = vpack.c.b16 %v313, %v312
      %v328 = vpack.c.b16 %v315, %v314
      %v329 = vpack.c.b16 %v317, %v316
      %v330 = vpack.c.b16 %v319, %v318
      %v331 = vpack.c.b16 %v321, %v320
      %v332 = vpack.c.b16 %v322, %v322
      %vm342 = vcmask 154624
      %v344 = vsel %vm342, %v274, 0
      %v347 = vsel %vm342, %v276, 0
      %v350 = vsel %vm342, %v278, 0
      %v353 = vsel %vm342, %v280, 0
      %vm355 = vcmask 1040384
      %vm356 = vcmask 1041408
      %v357 = vsel %vm355, 4294967295, 65535
      %v358 = vsel %vm356, %v357, 0
      %v360 = vand.u32 %v332, %v358
      %362 = vmatpush.bf16.msra.mxu0 %v330
      %363 = vmatpush.bf16.msra.mxu0 %v329
      %364 = vmatpush.bf16.msra.mxu0 %v328
      %365 = vmatpush.bf16.msra.mxu0 %v327
      %366 = vmatpush.bf16.msra.mxu0 %v326
      %367 = vmatpush.bf16.msra.mxu0 %v325
      %368 = vmatpush.bf16.msra.mxu0 %v324
      %369 = vmatpush.bf16.msra.mxu0 %v323
      %370 = vmatmul.bf16.gmra.mxu0 %v273
      %v371 = vpop.f32.mrf.mxu0
      %v372 = vadd.f32 0.0, %v371
      %v373 = vpop.f32.mrf.mxu0
      %v374 = vadd.f32 0.0, %v373
      %375 = vmatmul.bf16.gmra.mxu0 %v275
      %v376 = vpop.f32.mrf.mxu0
      %v377 = vadd.f32 0.0, %v376
      %v378 = vpop.f32.mrf.mxu0
      %v379 = vadd.f32 0.0, %v378
      %380 = vmatmul.bf16.gmra.mxu0 %v277
      %v381 = vpop.f32.mrf.mxu0
      %v382 = vadd.f32 0.0, %v381
      %v383 = vpop.f32.mrf.mxu0
      %v384 = vadd.f32 0.0, %v383
      %385 = vmatmul.bf16.gmra.mxu0 %v279
      %v386 = vpop.f32.mrf.mxu0
      %v387 = vadd.f32 0.0, %v386
      %v388 = vpop.f32.mrf.mxu0
      %v389 = vadd.f32 0.0, %v388
      %390 = vdwg.mxu0
      %391 = vmatpush.bf16.msra.mxu0 0
      %392 = vmatpush.bf16.msra.mxu0 0
      %393 = vmatpush.bf16.msra.mxu0 0
      %394 = vmatpush.bf16.msra.mxu0 0
      %395 = vmatpush.bf16.msra.mxu0 0
      %396 = vmatpush.bf16.msra.mxu0 0
      %397 = vmatpush.bf16.msra.mxu0 %v360
      %398 = vmatpush.bf16.msra.mxu0 %v331
      %399 = vmatmul.bf16.gmra.mxu0 %v344
      %v400 = vpop.f32.mrf.mxu0
      %v401 = vadd.f32 %v372, %v400
      %v402 = vpop.f32.mrf.mxu0
      %v403 = vadd.f32 %v374, %v402
      %404 = vmatmul.bf16.gmra.mxu0 %v347
      %v405 = vpop.f32.mrf.mxu0
      %v406 = vadd.f32 %v377, %v405
      %v407 = vpop.f32.mrf.mxu0
      %v408 = vadd.f32 %v379, %v407
      %409 = vmatmul.bf16.gmra.mxu0 %v350
      %v410 = vpop.f32.mrf.mxu0
      %v411 = vadd.f32 %v382, %v410
      %v412 = vpop.f32.mrf.mxu0
      %v413 = vadd.f32 %v384, %v412
      %414 = vmatmul.bf16.gmra.mxu0 %v353
      %v415 = vpop.f32.mrf.mxu0
      %v416 = vadd.f32 %v387, %v415
      %v417 = vpop.f32.mrf.mxu0
      %v418 = vadd.f32 %v389, %v417
      %419 = vdwg.mxu0
      %v420 = vpack.c.bf16 %v401, %v401
      %v421 = vpack.c.bf16 %v403, %v403
      %v422 = vpack.c.bf16 %v406, %v406
      %v423 = vpack.c.bf16 %v408, %v408
      %v424 = vpack.c.bf16 %v411, %v411
      %v425 = vpack.c.bf16 %v413, %v413
      %v426 = vpack.c.bf16 %v416, %v416
      %v427 = vpack.c.bf16 %v418, %v418
      %vm428 = vcmask 519168
      %429 = vst.msk [vmem:[%s213] sm:$0xf] %vm428, %v420
      %430 = vst.msk [vmem:[%s213 + $0x4] sm:$0xf] %vm428, %v421
      %431 = vst.msk [vmem:[%s213 + $0x8] sm:$0xf] %vm428, %v422
      %432 = vst.msk [vmem:[%s213 + $0xc] sm:$0xf] %vm428, %v423
      %433 = vst.msk [vmem:[%s213 + $0x10] sm:$0xf] %vm428, %v424
      %434 = vst.msk [vmem:[%s213 + $0x14] sm:$0xf] %vm428, %v425
      %435 = vst.msk [vmem:[%s213 + $0x18] sm:$0xf] %vm428, %v426
      %436 = vst.msk [vmem:[%s213 + $0x1c] sm:$0xf] %vm428, %v427
      %vm437 = vcmask 523264
      %v438 = vsel %vm437, %v401, 0.0
      %v439 = vsel %vm437, %v403, 0.0
      %v440 = vadd.f32 %v438, %v439
      %v441 = vsel %vm437, %v406, 0.0
      %v442 = vadd.f32 %v440, %v441
      %v443 = vsel %vm437, %v408, 0.0
      %v444 = vadd.f32 %v442, %v443
      %v445 = vsel %vm437, %v411, 0.0
      %v446 = vadd.f32 %v444, %v445
      %v447 = vsel %vm437, %v413, 0.0
      %v448 = vadd.f32 %v446, %v447
      %v449 = vsel %vm437, %v416, 0.0
      %v450 = vadd.f32 %v448, %v449
      %v451 = vsel %vm437, %v418, 0.0
      %v452 = vadd.f32 %v450, %v451
      %v453 = vrot.slane %v452, 4
      %v454 = vadd.f32 %v452, %v453
      %v455 = vrot.slane %v454, 2
      %v456 = vadd.f32 %v454, %v455
      %v457 = vrot.slane %v456, 1
      %v458 = vadd.f32 %v456, %v457
      %vm459 = vcmask 516096
      %460 = vst.msk [vmem:[%s217] sm:$0x1] %vm459, %v458
      %v461 = vmul.f32 %v401, %v401
      %v462 = vmul.f32 %v403, %v403
      %v463 = vmul.f32 %v406, %v406
      %v464 = vmul.f32 %v408, %v408
      %v465 = vmul.f32 %v411, %v411
      %v466 = vmul.f32 %v413, %v413
      %v467 = vmul.f32 %v416, %v416
      %v468 = vmul.f32 %v418, %v418
      %v469 = vsel %vm437, %v461, 0.0
      %v470 = vsel %vm437, %v462, 0.0
      %v471 = vadd.f32 %v469, %v470
      %v472 = vsel %vm437, %v463, 0.0
      %v473 = vadd.f32 %v471, %v472
      %v474 = vsel %vm437, %v464, 0.0
      %v475 = vadd.f32 %v473, %v474
      %v476 = vsel %vm437, %v465, 0.0
      %v477 = vadd.f32 %v475, %v476
      %v478 = vsel %vm437, %v466, 0.0
      %v479 = vadd.f32 %v477, %v478
      %v480 = vsel %vm437, %v467, 0.0
      %v481 = vadd.f32 %v479, %v480
      %v482 = vsel %vm437, %v468, 0.0
      %v483 = vadd.f32 %v481, %v482
      %v484 = vrot.slane %v483, 4
      %v485 = vadd.f32 %v483, %v484
      %v486 = vrot.slane %v485, 2
      %v487 = vadd.f32 %v485, %v486
      %v488 = vrot.slane %v487, 1
      %v489 = vadd.f32 %v487, %v488
      %490 = vst.msk [vmem:[%s220] sm:$0x1] %vm459, %v489
      %s491 = smul.u32 8, %s16
      %p492 = scmp.lt.s32.totalorder %s491, 15
      %s493 = scalar_select %p492, %s491, 15
      %s494 = smul.addr %s493, 4
      %s495 = scalar_lea.vmem %s2, %s494
      %p496 = scmp.lt.s32.totalorder %s16, 1
      %s497 = scalar_select %p496, %s16, 1
      %s498 = scalar_lea.vmem %s3, %s497
      %p499 = scmp.lt.s32.totalorder %s16, 1
      %s500 = scalar_select %p499, %s16, 1
      %s501 = scalar_lea.vmem %s4, %s500
      // Predicated region
      $region29: #{resnet18_client_forward.6} parent=27 // pred_check
        %p502 = pneg %p81
      $region30: #{resnet18_client_forward.6} parent=27 // pred_check_branch
        %504 = sbr.rel (%p502) target = $region32
      $region31: #{resnet18_client_forward.6} parent=27 // pred_region
        %s505 = smul.u32 8, %s16
      $region32: #{resnet18_client_forward.6} parent=27 // pred_fallthru
        _
      // Predicated region
      $region33: #{resnet18_client_forward.6} parent=27 // pred_check
        %p506 = pneg %p107
      $region34: #{resnet18_client_forward.6} parent=27 // pred_check_branch
        %508 = sbr.rel (%p506) target = $region36
      $region35: #{resnet18_client_forward.6} parent=27 // pred_region
        _
      $region36: #{resnet18_client_forward.6} parent=27 // pred_fallthru
        _
      // Predicated region
      $region37: #{resnet18_client_forward.6} parent=27 // pred_check
        %p509 = pneg %p133
      $region38: #{resnet18_client_forward.6} parent=27 // pred_check_branch
        %511 = sbr.rel (%p509) target = $region40
      $region39: #{resnet18_client_forward.6} parent=27 // pred_region
        _
      $region40: #{resnet18_client_forward.6} parent=27 // pred_fallthru
        _
    $region28: #{resnet18_client_forward.6} parent=5 // pred_fallthru
      _
    %p512 = scmp.le.s32.totalorder 2, %s11
    // Predicated region
    $region41: #{resnet18_client_forward.6} parent=5 // pred_check
      %p513 = pneg %p512
    $region42: #{resnet18_client_forward.6} parent=5 // pred_check_branch
      %515 = sbr.rel (%p513) target = $region44
    $region43: #{resnet18_client_forward.6} parent=5 // pred_region
      %s516 = ssub.s32 %s11, 2
      // Predicated region
      $region45: #{resnet18_client_forward.6} parent=43 // pred_check
        %p517 = pneg %p87
      $region46: #{resnet18_client_forward.6} parent=43 // pred_check_branch
        %519 = sbr.rel (%p517) target = $region48
      $region47: #{resnet18_client_forward.6} parent=43 // pred_region
        %s520 = smul.u32 8, %s17
        %p521 = scmp.lt.s32.totalorder %s520, 15
        %s522 = scalar_select %p521, %s520, 15
        %s523 = smul.addr %s522, 4
        %s524 = scalar_lea.vmem %s2, %s523
      $region48: #{resnet18_client_forward.6} parent=43 // pred_fallthru
        _
      // Predicated region
      $region49: #{resnet18_client_forward.6} parent=43 // pred_check
        %p525 = pneg %p113
      $region50: #{resnet18_client_forward.6} parent=43 // pred_check_branch
        %527 = sbr.rel (%p525) target = $region52
      $region51: #{resnet18_client_forward.6} parent=43 // pred_region
        %p528 = scmp.lt.s32.totalorder %s17, 1
        %s529 = scalar_select %p528, %s17, 1
        %s530 = scalar_lea.vmem %s3, %s529
      $region52: #{resnet18_client_forward.6} parent=43 // pred_fallthru
        _
      // Predicated region
      $region53: #{resnet18_client_forward.6} parent=43 // pred_check
        %p531 = pneg %p139
      $region54: #{resnet18_client_forward.6} parent=43 // pred_check_branch
        %533 = sbr.rel (%p531) target = $region56
      $region55: #{resnet18_client_forward.6} parent=43 // pred_region
        %p534 = scmp.lt.s32.totalorder %s17, 1
        %s535 = scalar_select %p534, %s17, 1
        %s536 = scalar_lea.vmem %s4, %s535
      $region56: #{resnet18_client_forward.6} parent=43 // pred_fallthru
        _
    $region44: #{resnet18_client_forward.6} parent=5 // pred_fallthru
      _
  $region6: #{resnet18_client_forward.6} parent=0 // loop_footer
    %s15 = sadd.s32 1, %s11
  $region7: #{resnet18_client_forward.6} parent=0 // loop_footer_branch
    %10 = sbr.rel target = $region3
  $region8: #{resnet18_client_forward.6} parent=0 // loop_exit
    _

// kernel: resnet18_client_forward.8
$region0: #{resnet18_client_forward.8}
  #allocation0 [shape = 'u32[]', space=smem, size = 0x4, offset = 0x4, fixed_abs, tag = 'smem constant byte address 0x4 - core index']
  #allocation1 [shape = 'u32[72,128]{1,0:T(1,128)}', space=vmem, size = 0x9000, scoped, tag = 'internal scratch']
  %s0 = inlined_call_operand.vmem [shape: bf16[32,576], index: 0, kind: input, shape index: {}]
  %s1 = inlined_call_operand.vmem [shape: bf16[576,64], index: 1, kind: input, shape index: {}]
  %s2 = inlined_call_operand.vmem [shape: bf16[32,64], index: 2, kind: output, shape index: {0}]
  %s3 = inlined_call_operand.vmem [shape: f32[2,1,64], index: 3, kind: output, shape index: {1}]
  %s4 = inlined_call_operand.vmem [shape: f32[2,1,64], index: 4, kind: output, shape index: {2}]
  %5 = xla_tuple %s2, %s3, %s4
  %s6 = sld [smem:[#allocation0]]
  $region57: #{resnet18_client_forward.8} parent=0
    _
  %s8 = ssub.s32 1, %s6
  %s9 = scalar_select 0, %s8, %s6
  loop: start=0, step=1, limit=4
  $region2: #{resnet18_client_forward.8} parent=0 // loop_pre_header
    _
  $region3: #{resnet18_client_forward.8} parent=0 // loop_header
    %s11 = sphi 0, %s15
    %p12 = scmp.ge.s32.totalorder %s11, 4
    %s21 = sphi 0, %s23
    %s24 = sphi 0, %s21
    %s25 = sphi 0, %s24
    %s41 = sphi 0, %s25
    %s45 = sphi 0, %s45
    %s47 = sphi 0, %s45
    %s48 = sphi 0, %s47
    %s62 = sphi 0, %s48
    %s68 = sphi 0, %s70
    %s71 = sphi 0, %s68
    %s72 = sphi 0, %s71
    %s88 = sphi 0, %s72
    %s94 = sphi 0, %s96
    %s97 = sphi 0, %s94
    %s98 = sphi 0, %s97
    %s114 = sphi 0, %s98
    %s120 = sphi 0, %s122
    %s123 = sphi 0, %s120
    %s124 = sphi 0, %s123
    %s140 = sphi 0, %s124
  $region4: #{resnet18_client_forward.8} parent=0 // loop_header_branch
    %14 = sbr.rel (%p12) target = $region8
  $region5: #{resnet18_client_forward.8} parent=0 // loop_body
    %s16 = ssub.s32 %s11, 1
    %s17 = ssub.s32 %s11, 2
    %s18 = sadd.s32 %s11, 1
    %s19 = ssub.s32 %s11, %s18
    %p20 = scmp.eq.s32.totalorder %s19, 0
    %s22 = sadd.s32 %s21, 1
    %s23 = scalar_select %p20, %s21, %s22
    %p26 = pneg %p20
    %p27 = scmp.eq.s32.totalorder %s11, 1
    %p28 = por %p26, %p27
    %p29 = scmp.ne.s32.totalorder %s21, %s24
    %p30 = scmp.eq.s32.totalorder %s11, 0
    %p31 = por %p29, %p30
    %p32 = scmp.ne.s32.totalorder %s21, %s24
    %p33 = scmp.eq.s32.totalorder %s16, 1
    %p34 = por %p32, %p33
    %p35 = scmp.ne.s32.totalorder %s24, %s25
    %p36 = scmp.eq.s32.totalorder %s16, 0
    %p37 = por %p35, %p36
    %p38 = scmp.ne.s32.totalorder %s24, %s25
    %p39 = scmp.eq.s32.totalorder %s17, 1
    %p40 = por %p38, %p39
    %p42 = scmp.ne.s32.totalorder %s25, %s41
    %p43 = scmp.eq.s32.totalorder %s17, 0
    %p44 = por %p42, %p43
    %s46 = sadd.s32 %s45, 1
    %p49 = scmp.eq.s32.totalorder %s11, 1
    %p50 = scmp.ne.s32.totalorder %s45, %s47
    %p51 = scmp.eq.s32.totalorder %s11, 0
    %p52 = por %p50, %p51
    %p53 = scmp.ne.s32.totalorder %s45, %s47
    %p54 = scmp.eq.s32.totalorder %s16, 1
    %p55 = por %p53, %p54
    %p56 = scmp.ne.s32.totalorder %s47, %s48
    %p57 = scmp.eq.s32.totalorder %s16, 0
    %p58 = por %p56, %p57
    %p59 = scmp.ne.s32.totalorder %s47, %s48
    %p60 = scmp.eq.s32.totalorder %s17, 1
    %p61 = por %p59, %p60
    %p63 = scmp.ne.s32.totalorder %s48, %s62
    %p64 = scmp.eq.s32.totalorder %s17, 0
    %p65 = por %p63, %p64
    %s66 = ssub.s32 %s11, %s18
    %p67 = scmp.eq.s32.totalorder %s66, 0
    %s69 = sadd.s32 %s68, 1
    %s70 = scalar_select %p67, %s68, %s69
    %p73 = pneg %p67
    %p74 = scmp.eq.s32.totalorder %s11, 1
    %p75 = por %p73, %p74
    %p76 = scmp.ne.s32.totalorder %s68, %s71
    %p77 = scmp.eq.s32.totalorder %s11, 0
    %p78 = por %p76, %p77
    %p79 = scmp.ne.s32.totalorder %s68, %s71
    %p80 = scmp.eq.s32.totalorder %s16, 1
    %p81 = por %p79, %p80
    %p82 = scmp.ne.s32.totalorder %s71, %s72
    %p83 = scmp.eq.s32.totalorder %s16, 0
    %p84 = por %p82, %p83
    %p85 = scmp.ne.s32.totalorder %s71, %s72
    %p86 = scmp.eq.s32.totalorder %s17, 1
    %p87 = por %p85, %p86
    %p89 = scmp.ne.s32.totalorder %s72, %s88
    %p90 = scmp.eq.s32.totalorder %s17, 0
    %p91 = por %p89, %p90
    %s92 = ssub.s32 %s11, %s18
    %p93 = scmp.eq.s32.totalorder %s92, 0
    %s95 = sadd.s32 %s94, 1
    %s96 = scalar_select %p93, %s94, %s95
    %p99 = pneg %p93
    %p100 = scmp.eq.s32.totalorder %s11, 1
    %p101 = por %p99, %p100
    %p102 = scmp.ne.s32.totalorder %s94, %s97
    %p103 = scmp.eq.s32.totalorder %s11, 0
    %p104 = por %p102, %p103
    %p105 = scmp.ne.s32.totalorder %s94, %s97
    %p106 = scmp.eq.s32.totalorder %s16, 1
    %p107 = por %p105, %p106
    %p108 = scmp.ne.s32.totalorder %s97, %s98
    %p109 = scmp.eq.s32.totalorder %s16, 0
    %p110 = por %p108, %p109
    %p111 = scmp.ne.s32.totalorder %s97, %s98
    %p112 = scmp.eq.s32.totalorder %s17, 1
    %p113 = por %p111, %p112
    %p115 = scmp.ne.s32.totalorder %s98, %s114
    %p116 = scmp.eq.s32.totalorder %s17, 0
    %p117 = por %p115, %p116
    %s118 = ssub.s32 %s11, %s18
    %p119 = scmp.eq.s32.totalorder %s118, 0
    %s121 = sadd.s32 %s120, 1
    %s122 = scalar_select %p119, %s120, %s121
    %p125 = pneg %p119
    %p126 = scmp.eq.s32.totalorder %s11, 1
    %p127 = por %p125, %p126
    %p128 = scmp.ne.s32.totalorder %s120, %s123
    %p129 = scmp.eq.s32.totalorder %s11, 0
    %p130 = por %p128, %p129
    %p131 = scmp.ne.s32.totalorder %s120, %s123
    %p132 = scmp.eq.s32.totalorder %s16, 1
    %p133 = por %p131, %p132
    %p134 = scmp.ne.s32.totalorder %s123, %s124
    %p135 = scmp.eq.s32.totalorder %s16, 0
    %p136 = por %p134, %p135
    %p137 = scmp.ne.s32.totalorder %s123, %s124
    %p138 = scmp.eq.s32.totalorder %s17, 1
    %p139 = por %p137, %p138
    %p141 = scmp.ne.s32.totalorder %s124, %s140
    %p142 = scmp.eq.s32.totalorder %s17, 0
    %p143 = por %p141, %p142
    %p144 = scmp.le.s32.totalorder 1, %s11
    %p145 = scmp.lt.s32.totalorder %s11, 3
    %p146 = pnand %p144, %p145
    %p147 = pneg %p146
    // Predicated region
    $region9: #{resnet18_client_forward.8} parent=5 // pred_check
      _
    $region10: #{resnet18_client_forward.8} parent=5 // pred_check_branch
      %149 = sbr.rel (%p146) target = $region12
    $region11: #{resnet18_client_forward.8} parent=5 // pred_region
      %s150 = ssub.s32 %s11, 1
      // Predicated region
      $region13: #{resnet18_client_forward.8} parent=11 // pred_check
        %p151 = pneg %p58
      $region14: #{resnet18_client_forward.8} parent=11 // pred_check_branch
        %153 = sbr.rel (%p151) target = $region16
      $region15: #{resnet18_client_forward.8} parent=11 // pred_region
        _
      $region16: #{resnet18_client_forward.8} parent=11 // pred_fallthru
        _
    $region12: #{resnet18_client_forward.8} parent=5 // pred_fallthru
      _
    %p154 = scmp.lt.s32.totalorder %s11, 2
    // Predicated region
    $region17: #{resnet18_client_forward.8} parent=5 // pred_check
      %p155 = pneg %p154
    $region18: #{resnet18_client_forward.8} parent=5 // pred_check_branch
      %157 = sbr.rel (%p155) target = $region20
    $region19: #{resnet18_client_forward.8} parent=5 // pred_region
      // Predicated region
      $region21: #{resnet18_client_forward.8} parent=19 // pred_check
        %p158 = pneg %p31
      $region22: #{resnet18_client_forward.8} parent=19 // pred_check_branch
        %160 = sbr.rel (%p158) target = $region24
      $region23: #{resnet18_client_forward.8} parent=19 // pred_region
        %s161 = smul.u32 2, %s11
        %p162 = scmp.lt.s32.totalorder %s161, 3
        %s163 = scalar_select %p162, %s161, 3
        %s164 = smul.addr %s163, 5
        %s165 = smul.addr %s164, 4
        %s166 = scalar_lea.vmem %s0, %s165
        %s167 = smul.u32 2, %s11
      $region24: #{resnet18_client_forward.8} parent=19 // pred_fallthru
        _
    $region20: #{resnet18_client_forward.8} parent=5 // pred_fallthru
      _
    %p168 = scmp.le.s32.totalorder 1, %s11
    %p169 = scmp.lt.s32.totalorder %s11, 3
    %p170 = pnand %p168, %p169
    %p171 = pneg %p170
    // Predicated region
    $region25: #{resnet18_client_forward.8} parent=5 // pred_check
      _
    $region26: #{resnet18_client_forward.8} parent=5 // pred_check_branch
      %173 = sbr.rel (%p170) target = $region28
    $region27: #{resnet18_client_forward.8} parent=5 // pred_region
      %s174 = ssub.s32 %s11, 1
      %s175 = smul.u32 2, %s16
      %p176 = scmp.lt.s32.totalorder %s175, 3
      %s177 = scalar_select %p176, %s175, 3
      %s178 = smul.addr %s177, 5
      %s179 = smul.addr %s178, 4
      %s180 = scalar_lea.vmem %s0, %s179
      %p181 = pneg %p37
      %p182 = pneg %p34
      %p183 = pneg %p58
      %p184 = pneg %p55
      %p185 = pneg %p84
      %p186 = pneg %p81
      %s187 = smul.u32 2, %s16
      %p188 = scmp.lt.s32.totalorder %s187, 3
      %s189 = scalar_select %p188, %s187, 3
      %s190 = smul.addr %s189, 4
      %s191 = scalar_lea.vmem %s2, %s190
      %p192 = pneg %p110
      %p193 = pneg %p107
      %p194 = scmp.lt.s32.totalorder %s16, 1
      %s195 = scalar_select %p194, %s16, 1
      %s196 = scalar_lea.vmem %s3, %s195
      %p197 = pneg %p136
      %p198 = pneg %p133
      %p199 = scmp.lt.s32.totalorder %s16, 1
      %s200 = scalar_select %p199, %s16, 1
      %s201 = scalar_lea.vmem %s4, %s200
      %s202 = smul.u32 2, %s16
      %p203 = scmp.lt.s32.totalorder %s202, 3
      %s204 = scalar_select %p203, %s202, 3
      %s205 = smul.addr %s204, 5
      %s206 = smul.addr %s205, 4
      %s207 = scalar_lea.vmem %s0, %s206
      %s208 = smul.u32 2, %s16
      %s209 = smul.u32 2, %s16
      %p210 = scmp.lt.s32.totalorder %s209, 3
      %s211 = scalar_select %p210, %s209, 3
      %s212 = smul.addr %s211, 4
      %s213 = scalar_lea.vmem %s2, %s212
      %s214 = smul.u32 2, %s16
      %p215 = scmp.lt.s32.totalorder %s16, 1
      %s216 = scalar_select %p215, %s16, 1
      %s217 = scalar_lea.vmem %s3, %s216
      %p218 = scmp.lt.s32.totalorder %s16, 1
      %s219 = scalar_select %p218, %s16, 1
      %s220 = scalar_lea.vmem %s4, %s219
      %v222 = vld [vmem:[%s207] sm:$0xff]
      %v223 = vld [vmem:[%s207 + $0x8] sm:$0xff]
      %v224 = vld [vmem:[%s207 + $0x10] sm:$0xf]
      %v225 = vld [vmem:[%s207 + $0x14] sm:$0xff]
      %v226 = vld [vmem:[%s207 + $0x1c] sm:$0xff]
      %v227 = vld [vmem:[%s207 + $0x24] sm:$0xf]
      %v228 = vld [vmem:[%s1] sm:$0xf]
      %v229 = vld [vmem:[%s1 + $0x4] sm:$0xf]
      %v230 = vld [vmem:[%s1 + $0x8] sm:$0xf]
      %v231 = vld [vmem:[%s1 + $0xc] sm:$0xf]
      %v232 = vld [vmem:[%s1 + $0x10] sm:$0xf]
      %v233 = vld [vmem:[%s1 + $0x14] sm:$0xf]
      %v234 = vld [vmem:[%s1 + $0x18] sm:$0xf]
      %v235 = vld [vmem:[%s1 + $0x1c] sm:$0xf]
      %v236 = vld [vmem:[%s1 + $0x20] sm:$0xf]
      %v237 = vld [vmem:[%s1 + $0x24] sm:$0xf]
      %v238 = vld [vmem:[%s1 + $0x28] sm:$0xf]
      %v239 = vld [vmem:[%s1 + $0x2c] sm:$0xf]
      %v240 = vld [vmem:[%s1 + $0x30] sm:$0xf]
      %v241 = vld [vmem:[%s1 + $0x34] sm:$0xf]
      %v242 = vld [vmem:[%s1 + $0x38] sm:$0xf]
      %v243 = vld [vmem:[%s1 + $0x3c] sm:$0xf]
      %v244 = vld [vmem:[%s1 + $0x40] sm:$0xf]
      %v245 = vld [vmem:[%s1 + $0x44] sm:$0xf]
      %v246 = vld [vmem:[%s1 + $0x48] sm:$0xf]
      %v247 = vld [vmem:[%s1 + $0x4c] sm:$0xf]
      %v248 = vld [vmem:[%s1 + $0x50] sm:$0xf]
      %v249 = vld [vmem:[%s1 + $0x54] sm:$0xf]
      %v250 = vld [vmem:[%s1 + $0x58] sm:$0xf]
      %v251 = vld [vmem:[%s1 + $0x5c] sm:$0xf]
      %v252 = vld [vmem:[%s1 + $0x60] sm:$0xf]
      %v253 = vld [vmem:[%s1 + $0x64] sm:$0xf]
      %v254 = vld [vmem:[%s1 + $0x68] sm:$0xf]
      %v255 = vld [vmem:[%s1 + $0x6c] sm:$0xf]
      %v256 = vld [vmem:[%s1 + $0x70] sm:$0xf]
      %v257 = vld [vmem:[%s1 + $0x74] sm:$0xf]
      %v258 = vld [vmem:[%s1 + $0x78] sm:$0xf]
      %v259 = vld [vmem:[%s1 + $0x7c] sm:$0xf]
      %v260 = vld [vmem:[%s1 + $0x80] sm:$0xf]
      %v261 = vld [vmem:[%s1 + $0x84] sm:$0xf]
      %v262 = vld [vmem:[%s1 + $0x88] sm:$0xf]
      %v263 = vld [vmem:[%s1 + $0x8c] sm:$0xf]
      %v264 = vld [vmem:[%s1 + $0x90] sm:$0xf]
      %v265 = vld [vmem:[%s1 + $0x94] sm:$0xf]
      %v266 = vld [vmem:[%s1 + $0x98] sm:$0xf]
      %v267 = vld [vmem:[%s1 + $0x9c] sm:$0xf]
      %v268 = vld [vmem:[%s1 + $0xa0] sm:$0xf]
      %v269 = vld [vmem:[%s1 + $0xa4] sm:$0xf]
      %v270 = vld [vmem:[%s1 + $0xa8] sm:$0xf]
      %v271 = vld [vmem:[%s1 + $0xac] sm:$0xf]
      %v272 = vld [vmem:[%s1 + $0xb0] sm:$0xf]
      %v273 = vld [vmem:[%s1 + $0xb4] sm:$0xf]
      %v274 = vld [vmem:[%s1 + $0xb8] sm:$0xf]
      %v275 = vld [vmem:[%s1 + $0xbc] sm:$0xf]
      %v276 = vld [vmem:[%s1 + $0xc0] sm:$0xf]
      %v277 = vld [vmem:[%s1 + $0xc4] sm:$0xf]
      %v278 = vld [vmem:[%s1 + $0xc8] sm:$0xf]
      %v279 = vld [vmem:[%s1 + $0xcc] sm:$0xf]
      %v280 = vld [vmem:[%s1 + $0xd0] sm:$0xf]
      %v281 = vld [vmem:[%s1 + $0xd4] sm:$0xf]
      %v282 = vld [vmem:[%s1 + $0xd8] sm:$0xf]
      %v283 = vld [vmem:[%s1 + $0xdc] sm:$0xf]
      %v284 = vld [vmem:[%s1 + $0xe0] sm:$0xf]
      %v285 = vld [vmem:[%s1 + $0xe4] sm:$0xf]
      %v286 = vld [vmem:[%s1 + $0xe8] sm:$0xf]
      %v287 = vld [vmem:[%s1 + $0xec] sm:$0xf]
      %v288 = vld [vmem:[%s1 + $0xf0] sm:$0xf]
      %v289 = vld [vmem:[%s1 + $0xf4] sm:$0xf]
      %v290 = vld [vmem:[%s1 + $0xf8] sm:$0xf]
      %v291 = vld [vmem:[%s1 + $0xfc] sm:$0xf]
      %v292 = vld [vmem:[%s1 + $0x100] sm:$0xf]
      %v293 = vld [vmem:[%s1 + $0x104] sm:$0xf]
      %v294 = vld [vmem:[%s1 + $0x108] sm:$0xf]
      %v295 = vld [vmem:[%s1 + $0x10c] sm:$0xf]
      %v296 = vld [vmem:[%s1 + $0x110] sm:$0xf]
      %v297 = vld [vmem:[%s1 + $0x114] sm:$0xf]
      %v298 = vld [vmem:[%s1 + $0x118] sm:$0xf]
      %v299 = vld [vmem:[%s1 + $0x11c] sm:$0xf]
      %v306 = vunpack.c.l.b16 %v222
      %v307 = vunpack.c.h.b16 %v222
      %v308 = vunpack.c.l.b16 %v223
      %v309 = vunpack.c.h.b16 %v223
      %v310 = vunpack.c.l.b16 %v224
      %v311 = vunpack.c.l.b16 %v225
      %v312 = vunpack.c.h.b16 %v225
      %v313 = vunpack.c.l.b16 %v226
      %v314 = vunpack.c.h.b16 %v226
      %v315 = vunpack.c.l.b16 %v227
      %v316 = vpack.c.b16 %v311, %v306
      %v317 = vpack.c.b16 %v312, %v307
      %v318 = vpack.c.b16 %v313, %v308
      %v319 = vpack.c.b16 %v314, %v309
      %v320 = vpack.c.b16 %v315, %v310
      %v397 = vunpack.c.l.b16 %v228
      %v398 = vunpack.c.l.b16 %v229
      %v399 = vunpack.c.l.b16 %v230
      %v400 = vunpack.c.l.b16 %v231
      %v401 = vunpack.c.l.b16 %v232
      %v402 = vunpack.c.l.b16 %v233
      %v403 = vunpack.c.l.b16 %v234
      %v404 = vunpack.c.l.b16 %v235
      %v405 = vunpack.c.l.b16 %v236
      %v406 = vunpack.c.l.b16 %v237
      %v407 = vunpack.c.l.b16 %v238
      %v408 = vunpack.c.l.b16 %v239
      %v409 = vunpack.c.l.b16 %v240
      %v410 = vunpack.c.l.b16 %v241
      %v411 = vunpack.c.l.b16 %v242
      %v412 = vunpack.c.l.b16 %v243
      %v413 = vunpack.c.l.b16 %v244
      %v414 = vunpack.c.l.b16 %v245
      %v415 = vunpack.c.l.b16 %v246
      %v416 = vunpack.c.l.b16 %v247
      %v417 = vunpack.c.l.b16 %v248
      %v418 = vunpack.c.l.b16 %v249
      %v419 = vunpack.c.l.b16 %v250
      %v420 = vunpack.c.l.b16 %v251
      %v421 = vunpack.c.l.b16 %v252
      %v422 = vunpack.c.l.b16 %v253
      %v423 = vunpack.c.l.b16 %v254
      %v424 = vunpack.c.l.b16 %v255
      %v425 = vunpack.c.l.b16 %v256
      %v426 = vunpack.c.l.b16 %v257
      %v427 = vunpack.c.l.b16 %v258
      %v428 = vunpack.c.l.b16 %v259
      %v429 = vunpack.c.l.b16 %v260
      %v430 = vunpack.c.l.b16 %v261
      %v431 = vunpack.c.l.b16 %v262
      %v432 = vunpack.c.l.b16 %v263
      %v433 = vunpack.c.l.b16 %v264
      %v434 = vunpack.c.l.b16 %v265
      %v435 = vunpack.c.l.b16 %v266
      %v436 = vunpack.c.l.b16 %v267
      %v437 = vunpack.c.l.b16 %v268
      %v438 = vunpack.c.l.b16 %v269
      %v439 = vunpack.c.l.b16 %v270
      %v440 = vunpack.c.l.b16 %v271
      %v441 = vunpack.c.l.b16 %v272
      %v442 = vunpack.c.l.b16 %v273
      %v443 = vunpack.c.l.b16 %v274
      %v444 = vunpack.c.l.b16 %v275
      %v445 = vunpack.c.l.b16 %v276
      %v446 = vunpack.c.l.b16 %v277
      %v447 = vunpack.c.l.b16 %v278
      %v448 = vunpack.c.l.b16 %v279
      %v449 = vunpack.c.l.b16 %v280
      %v450 = vunpack.c.l.b16 %v281
      %v451 = vunpack.c.l.b16 %v282
      %v452 = vunpack.c.l.b16 %v283
      %v453 = vunpack.c.l.b16 %v284
      %v454 = vunpack.c.l.b16 %v285
      %v455 = vunpack.c.l.b16 %v286
      %v456 = vunpack.c.l.b16 %v287
      %v457 = vunpack.c.l.b16 %v288
      %v458 = vunpack.c.l.b16 %v289
      %v459 = vunpack.c.l.b16 %v290
      %v460 = vunpack.c.l.b16 %v291
      %v461 = vunpack.c.l.b16 %v292
      %v462 = vunpack.c.l.b16 %v293
      %v463 = vunpack.c.l.b16 %v294
      %v464 = vunpack.c.l.b16 %v295
      %v465 = vunpack.c.l.b16 %v296
      %v466 = vunpack.c.l.b16 %v297
      %v467 = vunpack.c.l.b16 %v298
      %v468 = vunpack.c.l.b16 %v299
      %v469 = vpack.c.b16 %v398, %v397
      %v470 = vpack.c.b16 %v400, %v399
      %v471 = vpack.c.b16 %v402, %v401
      %v472 = vpack.c.b16 %v404, %v403
      %v473 = vpack.c.b16 %v406, %v405
      %v474 = vpack.c.b16 %v408, %v407
      %v475 = vpack.c.b16 %v410, %v409
      %v476 = vpack.c.b16 %v412, %v411
      %v477 = vpack.c.b16 %v414, %v413
      %v478 = vpack.c.b16 %v416, %v415
      %v479 = vpack.c.b16 %v418, %v417
      %v480 = vpack.c.b16 %v420, %v419
      %v481 = vpack.c.b16 %v422, %v421
      %v482 = vpack.c.b16 %v424, %v423
      %v483 = vpack.c.b16 %v426, %v425
      %v484 = vpack.c.b16 %v428, %v427
      %v485 = vpack.c.b16 %v430, %v429
      %v486 = vpack.c.b16 %v432, %v431
      %v487 = vpack.c.b16 %v434, %v433
      %v488 = vpack.c.b16 %v436, %v435
      %v489 = vpack.c.b16 %v438, %v437
      %v490 = vpack.c.b16 %v440, %v439
      %v491 = vpack.c.b16 %v442, %v441
      %v492 = vpack.c.b16 %v444, %v443
      %v493 = vpack.c.b16 %v446, %v445
      %v494 = vpack.c.b16 %v448, %v447
      %v495 = vpack.c.b16 %v450, %v449
      %v496 = vpack.c.b16 %v452, %v451
      %v497 = vpack.c.b16 %v454, %v453
      %v498 = vpack.c.b16 %v456, %v455
      %v499 = vpack.c.b16 %v458, %v457
      %v500 = vpack.c.b16 %v460, %v459
      %v501 = vpack.c.b16 %v462, %v461
      %v502 = vpack.c.b16 %v464, %v463
      %v503 = vpack.c.b16 %v466, %v465
      %v504 = vpack.c.b16 %v468, %v467
      %vm541 = vcmask 523264
      %v543 = vsel %vm541, %v320, 0
      %545 = vmatpush.bf16.msra.mxu0 %v476
      %546 = vmatpush.bf16.msra.mxu0 %v475
      %547 = vmatpush.bf16.msra.mxu0 %v474
      %548 = vmatpush.bf16.msra.mxu0 %v473
      %549 = vmatpush.bf16.msra.mxu0 %v472
      %550 = vmatpush.bf16.msra.mxu0 %v471
      %551 = vmatpush.bf16.msra.mxu0 %v470
      %552 = vmatpush.bf16.msra.mxu0 %v469
      %553 = vmatmul.bf16.gmra.mxu0 %v316
      %v554 = vpop.f32.mrf.mxu0
      %v555 = vadd.f32 0.0, %v554
      %v556 = vpop.f32.mrf.mxu0
      %v557 = vadd.f32 0.0, %v556
      %558 = vdwg.mxu0
      %559 = vmatpush.bf16.msra.mxu0 %v484
      %560 = vmatpush.bf16.msra.mxu0 %v483
      %561 = vmatpush.bf16.msra.mxu0 %v482
      %562 = vmatpush.bf16.msra.mxu0 %v481
      %563 = vmatpush.bf16.msra.mxu0 %v480
      %564 = vmatpush.bf16.msra.mxu0 %v479
      %565 = vmatpush.bf16.msra.mxu0 %v478
      %566 = vmatpush.bf16.msra.mxu0 %v477
      %567 = vmatmul.bf16.gmra.mxu0 %v317
      %v568 = vpop.f32.mrf.mxu0
      %v569 = vadd.f32 %v555, %v568
      %v570 = vpop.f32.mrf.mxu0
      %v571 = vadd.f32 %v557, %v570
      %572 = vdwg.mxu0
      %573 = vmatpush.bf16.msra.mxu0 %v492
      %574 = vmatpush.bf16.msra.mxu0 %v491
      %575 = vmatpush.bf16.msra.mxu0 %v490
      %576 = vmatpush.bf16.msra.mxu0 %v489
      %577 = vmatpush.bf16.msra.mxu0 %v488
      %578 = vmatpush.bf16.msra.mxu0 %v487
      %579 = vmatpush.bf16.msra.mxu0 %v486
      %580 = vmatpush.bf16.msra.mxu0 %v485
      %581 = vmatmul.bf16.gmra.mxu0 %v318
      %v582 = vpop.f32.mrf.mxu0
      %v583 = vadd.f32 %v569, %v582
      %v584 = vpop.f32.mrf.mxu0
      %v585 = vadd.f32 %v571, %v584
      %586 = vdwg.mxu0
      %587 = vmatpush.bf16.msra.mxu0 %v500
      %588 = vmatpush.bf16.msra.mxu0 %v499
      %589 = vmatpush.bf16.msra.mxu0 %v498
      %590 = vmatpush.bf16.msra.mxu0 %v497
      %591 = vmatpush.bf16.msra.mxu0 %v496
      %592 = vmatpush.bf16.msra.mxu0 %v495
      %593 = vmatpush.bf16.msra.mxu0 %v494
      %594 = vmatpush.bf16.msra.mxu0 %v493
      %595 = vmatmul.bf16.gmra.mxu0 %v319
      %v596 = vpop.f32.mrf.mxu0
      %v597 = vadd.f32 %v583, %v596
      %v598 = vpop.f32.mrf.mxu0
      %v599 = vadd.f32 %v585, %v598
      %600 = vdwg.mxu0
      %601 = vmatpush.bf16.msra.mxu0 0
      %602 = vmatpush.bf16.msra.mxu0 0
      %603 = vmatpush.bf16.msra.mxu0 0
      %604 = vmatpush.bf16.msra.mxu0 0
      %605 = vmatpush.bf16.msra.mxu0 %v504
      %606 = vmatpush.bf16.msra.mxu0 %v503
      %607 = vmatpush.bf16.msra.mxu0 %v502
      %608 = vmatpush.bf16.msra.mxu0 %v501
      %609 = vmatmul.bf16.gmra.mxu0 %v543
      %v610 = vpop.f32.mrf.mxu0
      %v611 = vadd.f32 %v597, %v610
      %v612 = vpop.f32.mrf.mxu0
      %v613 = vadd.f32 %v599, %v612
      %614 = vdwg.mxu0
      %v615 = vpack.c.bf16 %v611, %v611
      %v616 = vpack.c.bf16 %v613, %v613
      %vm617 = vcmask 519168
      %618 = vst.msk [vmem:[%s213] sm:$0xf] %vm617, %v615
      %619 = vst.msk [vmem:[%s213 + $0x4] sm:$0xf] %vm617, %v616
      %v620 = vsel %vm541, %v611, 0.0
      %v621 = vsel %vm541, %v613, 0.0
      %v622 = vadd.f32 %v620, %v621
      %v623 = vrot.slane %v622, 4
      %v624 = vadd.f32 %v622, %v623
      %v625 = vrot.slane %v624, 2
      %v626 = vadd.f32 %v624, %v625
      %v627 = vrot.slane %v626, 1
      %v628 = vadd.f32 %v626, %v627
      %vm629 = vcmask 516096
      %630 = vst.msk [vmem:[%s217] sm:$0x1] %vm629, %v628
      %v631 = vmul.f32 %v611, %v611
      %v632 = vmul.f32 %v613, %v613
      %v633 = vsel %vm541, %v631, 0.0
      %v634 = vsel %vm541, %v632, 0.0
      %v635 = vadd.f32 %v633, %v634
      %v636 = vrot.slane %v635, 4
      %v637 = vadd.f32 %v635, %v636
      %v638 = vrot.slane %v637, 2
      %v639 = vadd.f32 %v637, %v638
      %v640 = vrot.slane %v639, 1
      %v641 = vadd.f32 %v639, %v640
      %642 = vst.msk [vmem:[%s220] sm:$0x1] %vm629, %v641
      %s643 = smul.u32 2, %s16
      %p644 = scmp.lt.s32.totalorder %s643, 3
      %s645 = scalar_select %p644, %s643, 3
      %s646 = smul.addr %s645, 4
      %s647 = scalar_lea.vmem %s2, %s646
      %p648 = scmp.lt.s32.totalorder %s16, 1
      %s649 = scalar_select %p648, %s16, 1
      %s650 = scalar_lea.vmem %s3, %s649
      %p651 = scmp.lt.s32.totalorder %s16, 1
      %s652 = scalar_select %p651, %s16, 1
      %s653 = scalar_lea.vmem %s4, %s652
      // Predicated region
      $region29: #{resnet18_client_forward.8} parent=27 // pred_check
        %p654 = pneg %p81
      $region30: #{resnet18_client_forward.8} parent=27 // pred_check_branch
        %656 = sbr.rel (%p654) target = $region32
      $region31: #{resnet18_client_forward.8} parent=27 // pred_region
        %s657 = smul.u32 2, %s16
      $region32: #{resnet18_client_forward.8} parent=27 // pred_fallthru
        _
      // Predicated region
      $region33: #{resnet18_client_forward.8} parent=27 // pred_check
        %p658 = pneg %p107
      $region34: #{resnet18_client_forward.8} parent=27 // pred_check_branch
        %660 = sbr.rel (%p658) target = $region36
      $region35: #{resnet18_client_forward.8} parent=27 // pred_region
        _
      $region36: #{resnet18_client_forward.8} parent=27 // pred_fallthru
        _
      // Predicated region
      $region37: #{resnet18_client_forward.8} parent=27 // pred_check
        %p661 = pneg %p133
      $region38: #{resnet18_client_forward.8} parent=27 // pred_check_branch
        %663 = sbr.rel (%p661) target = $region40
      $region39: #{resnet18_client_forward.8} parent=27 // pred_region
        _
      $region40: #{resnet18_client_forward.8} parent=27 // pred_fallthru
        _
    $region28: #{resnet18_client_forward.8} parent=5 // pred_fallthru
      _
    %p664 = scmp.le.s32.totalorder 2, %s11
    // Predicated region
    $region41: #{resnet18_client_forward.8} parent=5 // pred_check
      %p665 = pneg %p664
    $region42: #{resnet18_client_forward.8} parent=5 // pred_check_branch
      %667 = sbr.rel (%p665) target = $region44
    $region43: #{resnet18_client_forward.8} parent=5 // pred_region
      %s668 = ssub.s32 %s11, 2
      // Predicated region
      $region45: #{resnet18_client_forward.8} parent=43 // pred_check
        %p669 = pneg %p87
      $region46: #{resnet18_client_forward.8} parent=43 // pred_check_branch
        %671 = sbr.rel (%p669) target = $region48
      $region47: #{resnet18_client_forward.8} parent=43 // pred_region
        %s672 = smul.u32 2, %s17
        %p673 = scmp.lt.s32.totalorder %s672, 3
        %s674 = scalar_select %p673, %s672, 3
        %s675 = smul.addr %s674, 4
        %s676 = scalar_lea.vmem %s2, %s675
      $region48: #{resnet18_client_forward.8} parent=43 // pred_fallthru
        _
      // Predicated region
      $region49: #{resnet18_client_forward.8} parent=43 // pred_check
        %p677 = pneg %p113
      $region50: #{resnet18_client_forward.8} parent=43 // pred_check_branch
        %679 = sbr.rel (%p677) target = $region52
      $region51: #{resnet18_client_forward.8} parent=43 // pred_region
        %p680 = scmp.lt.s32.totalorder %s17, 1
        %s681 = scalar_select %p680, %s17, 1
        %s682 = scalar_lea.vmem %s3, %s681
      $region52: #{resnet18_client_forward.8} parent=43 // pred_fallthru
        _
      // Predicated region
      $region53: #{resnet18_client_forward.8} parent=43 // pred_check
        %p683 = pneg %p139
      $region54: #{resnet18_client_forward.8} parent=43 // pred_check_branch
        %685 = sbr.rel (%p683) target = $region56
      $region55: #{resnet18_client_forward.8} parent=43 // pred_region
        %p686 = scmp.lt.s32.totalorder %s17, 1
        %s687 = scalar_select %p686, %s17, 1
        %s688 = scalar_lea.vmem %s4, %s687
      $region56: #{resnet18_client_forward.8} parent=43 // pred_fallthru
        _
    $region44: #{resnet18_client_forward.8} parent=5 // pred_fallthru
      _
  $region6: #{resnet18_client_forward.8} parent=0 // loop_footer
    %s15 = sadd.s32 1, %s11
  $region7: #{resnet18_client_forward.8} parent=0 // loop_footer_branch
    %10 = sbr.rel target = $region3
  $region8: #{resnet18_client_forward.8} parent=0 // loop_exit
    _

// kernel: resnet18_client_forward.9
$region0: #{resnet18_client_forward.9}
  #allocation0 [shape = 'u32[]', space=smem, size = 0x4, offset = 0x4, fixed_abs, tag = 'smem constant byte address 0x4 - core index']
  #allocation1 [shape = 'u32[72,128]{1,0:T(1,128)}', space=vmem, size = 0x9000, scoped, tag = 'internal scratch']
  %s0 = inlined_call_operand.vmem [shape: bf16[16,128], index: 0, kind: input, shape index: {}]
  %s1 = inlined_call_operand.vmem [shape: f32[1,128], index: 1, kind: input, shape index: {}]
  %s2 = inlined_call_operand.vmem [shape: f32[1,128], index: 2, kind: input, shape index: {}]
  %s3 = inlined_call_operand.vmem [shape: bf16[16,128], index: 3, kind: output, shape index: {}]
  %s4 = sld [smem:[#allocation0]]
  $region45: #{resnet18_client_forward.9} parent=0
    _
  %s6 = ssub.s32 1, %s4
  %s7 = scalar_select 0, %s6, %s4
  loop: start=0, step=1, limit=4
  $region2: #{resnet18_client_forward.9} parent=0 // loop_pre_header
    _
  $region3: #{resnet18_client_forward.9} parent=0 // loop_header
    %s9 = sphi 0, %s13
    %p10 = scmp.ge.s32.totalorder %s9, 4
    %s19 = sphi 0, %s21
    %s22 = sphi 0, %s19
    %s23 = sphi 0, %s22
    %s39 = sphi 0, %s23
    %s43 = sphi 0, %s43
    %s45 = sphi 0, %s43
    %s46 = sphi 0, %s45
    %s60 = sphi 0, %s46
    %s64 = sphi 0, %s64
    %s66 = sphi 0, %s64
    %s67 = sphi 0, %s66
    %s81 = sphi 0, %s67
    %s87 = sphi 0, %s89
    %s90 = sphi 0, %s87
    %s91 = sphi 0, %s90
    %s107 = sphi 0, %s91
  $region4: #{resnet18_client_forward.9} parent=0 // loop_header_branch
    %12 = sbr.rel (%p10) target = $region8
  $region5: #{resnet18_client_forward.9} parent=0 // loop_body
    %s14 = ssub.s32 %s9, 1
    %s15 = ssub.s32 %s9, 2
    %s16 = sadd.s32 %s9, 1
    %s17 = ssub.s32 %s9, %s16
    %p18 = scmp.eq.s32.totalorder %s17, 0
    %s20 = sadd.s32 %s19, 1
    %s21 = scalar_select %p18, %s19, %s20
    %p24 = pneg %p18
    %p25 = scmp.eq.s32.totalorder %s9, 1
    %p26 = por %p24, %p25
    %p27 = scmp.ne.s32.totalorder %s19, %s22
    %p28 = scmp.eq.s32.totalorder %s9, 0
    %p29 = por %p27, %p28
    %p30 = scmp.ne.s32.totalorder %s19, %s22
    %p31 = scmp.eq.s32.totalorder %s14, 1
    %p32 = por %p30, %p31
    %p33 = scmp.ne.s32.totalorder %s22, %s23
    %p34 = scmp.eq.s32.totalorder %s14, 0
    %p35 = por %p33, %p34
    %p36 = scmp.ne.s32.totalorder %s22, %s23
    %p37 = scmp.eq.s32.totalorder %s15, 1
    %p38 = por %p36, %p37
    %p40 = scmp.ne.s32.totalorder %s23, %s39
    %p41 = scmp.eq.s32.totalorder %s15, 0
    %p42 = por %p40, %p41
    %s44 = sadd.s32 %s43, 1
    %p47 = scmp.eq.s32.totalorder %s9, 1
    %p48 = scmp.ne.s32.totalorder %s43, %s45
    %p49 = scmp.eq.s32.totalorder %s9, 0
    %p50 = por %p48, %p49
    %p51 = scmp.ne.s32.totalorder %s43, %s45
    %p52 = scmp.eq.s32.totalorder %s14, 1
    %p53 = por %p51, %p52
    %p54 = scmp.ne.s32.totalorder %s45, %s46
    %p55 = scmp.eq.s32.totalorder %s14, 0
    %p56 = por %p54, %p55
    %p57 = scmp.ne.s32.totalorder %s45, %s46
    %p58 = scmp.eq.s32.totalorder %s15, 1
    %p59 = por %p57, %p58
    %p61 = scmp.ne.s32.totalorder %s46, %s60
    %p62 = scmp.eq.s32.totalorder %s15, 0
    %p63 = por %p61, %p62
    %s65 = sadd.s32 %s64, 1
    %p68 = scmp.eq.s32.totalorder %s9, 1
    %p69 = scmp.ne.s32.totalorder %s64, %s66
    %p70 = scmp.eq.s32.totalorder %s9, 0
    %p71 = por %p69, %p70
    %p72 = scmp.ne.s32.totalorder %s64, %s66
    %p73 = scmp.eq.s32.totalorder %s14, 1
    %p74 = por %p72, %p73
    %p75 = scmp.ne.s32.totalorder %s66, %s67
    %p76 = scmp.eq.s32.totalorder %s14, 0
    %p77 = por %p75, %p76
    %p78 = scmp.ne.s32.totalorder %s66, %s67
    %p79 = scmp.eq.s32.totalorder %s15, 1
    %p80 = por %p78, %p79
    %p82 = scmp.ne.s32.totalorder %s67, %s81
    %p83 = scmp.eq.s32.totalorder %s15, 0
    %p84 = por %p82, %p83
    %s85 = ssub.s32 %s9, %s16
    %p86 = scmp.eq.s32.totalorder %s85, 0
    %s88 = sadd.s32 %s87, 1
    %s89 = scalar_select %p86, %s87, %s88
    %p92 = pneg %p86
    %p93 = scmp.eq.s32.totalorder %s9, 1
    %p94 = por %p92, %p93
    %p95 = scmp.ne.s32.totalorder %s87, %s90
    %p96 = scmp.eq.s32.totalorder %s9, 0
    %p97 = por %p95, %p96
    %p98 = scmp.ne.s32.totalorder %s87, %s90
    %p99 = scmp.eq.s32.totalorder %s14, 1
    %p100 = por %p98, %p99
    %p101 = scmp.ne.s32.totalorder %s90, %s91
    %p102 = scmp.eq.s32.totalorder %s14, 0
    %p103 = por %p101, %p102
    %p104 = scmp.ne.s32.totalorder %s90, %s91
    %p105 = scmp.eq.s32.totalorder %s15, 1
    %p106 = por %p104, %p105
    %p108 = scmp.ne.s32.totalorder %s91, %s107
    %p109 = scmp.eq.s32.totalorder %s15, 0
    %p110 = por %p108, %p109
    %p111 = scmp.le.s32.totalorder 1, %s9
    %p112 = scmp.lt.s32.totalorder %s9, 3
    %p113 = pnand %p111, %p112
    %p114 = pneg %p113
    // Predicated region
    $region9: #{resnet18_client_forward.9} parent=5 // pred_check
      _
    $region10: #{resnet18_client_forward.9} parent=5 // pred_check_branch
      %116 = sbr.rel (%p113) target = $region12
    $region11: #{resnet18_client_forward.9} parent=5 // pred_region
      %s117 = ssub.s32 %s9, 1
      // Predicated region
      $region13: #{resnet18_client_forward.9} parent=11 // pred_check
        %p118 = pneg %p56
      $region14: #{resnet18_client_forward.9} parent=11 // pred_check_branch
        %120 = sbr.rel (%p118) target = $region16
      $region15: #{resnet18_client_forward.9} parent=11 // pred_region
        _
      $region16: #{resnet18_client_forward.9} parent=11 // pred_fallthru
        _
      // Predicated region
      $region17: #{resnet18_client_forward.9} parent=11 // pred_check
        %p121 = pneg %p77
      $region18: #{resnet18_client_forward.9} parent=11 // pred_check_branch
        %123 = sbr.rel (%p121) target = $region20
      $region19: #{resnet18_client_forward.9} parent=11 // pred_region
        _
      $region20: #{resnet18_client_forward.9} parent=11 // pred_fallthru
        _
    $region12: #{resnet18_client_forward.9} parent=5 // pred_fallthru
      _
    %p124 = scmp.lt.s32.totalorder %s9, 2
    // Predicated region
    $region21: #{resnet18_client_forward.9} parent=5 // pred_check
      %p125 = pneg %p124
    $region22: #{resnet18_client_forward.9} parent=5 // pred_check_branch
      %127 = sbr.rel (%p125) target = $region24
    $region23: #{resnet18_client_forward.9} parent=5 // pred_region
      // Predicated region
      $region25: #{resnet18_client_forward.9} parent=23 // pred_check
        %p128 = pneg %p29
      $region26: #{resnet18_client_forward.9} parent=23 // pred_check_branch
        %130 = sbr.rel (%p128) target = $region28
      $region27: #{resnet18_client_forward.9} parent=23 // pred_region
        %p131 = scmp.lt.s32.totalorder %s9, 1
        %s132 = scalar_select %p131, %s9, 1
        %s133 = smul.addr %s132, 4
        %s134 = scalar_lea.vmem %s0, %s133
      $region28: #{resnet18_client_forward.9} parent=23 // pred_fallthru
        _
    $region24: #{resnet18_client_forward.9} parent=5 // pred_fallthru
      _
    %p135 = scmp.le.s32.totalorder 1, %s9
    %p136 = scmp.lt.s32.totalorder %s9, 3
    %p137 = pnand %p135, %p136
    %p138 = pneg %p137
    // Predicated region
    $region29: #{resnet18_client_forward.9} parent=5 // pred_check
      _
    $region30: #{resnet18_client_forward.9} parent=5 // pred_check_branch
      %140 = sbr.rel (%p137) target = $region32
    $region31: #{resnet18_client_forward.9} parent=5 // pred_region
      %s141 = ssub.s32 %s9, 1
      %p142 = scmp.lt.s32.totalorder %s14, 1
      %s143 = scalar_select %p142, %s14, 1
      %s144 = smul.addr %s143, 4
      %s145 = scalar_lea.vmem %s0, %s144
      %p146 = pneg %p35
      %p147 = pneg %p32
      %p148 = pneg %p56
      %p149 = pneg %p53
      %p150 = pneg %p77
      %p151 = pneg %p74
      %p152 = pneg %p103
      %p153 = pneg %p100
      %p154 = scmp.lt.s32.totalorder %s14, 1
      %s155 = scalar_select %p154, %s14, 1
      %s156 = smul.addr %s155, 4
      %s157 = scalar_lea.vmem %s3, %s156
      %p158 = scmp.lt.s32.totalorder %s14, 1
      %s159 = scalar_select %p158, %s14, 1
      %s160 = smul.addr %s159, 4
      %s161 = scalar_lea.vmem %s0, %s160
      %p162 = scmp.lt.s32.totalorder %s14, 1
      %s163 = scalar_select %p162, %s14, 1
      %s164 = smul.addr %s163, 4
      %s165 = scalar_lea.vmem %s3, %s164
      %v166 = vld [vmem:[%s161] sm:$0xf]
      %v167 = vunpack.c.l.bf16 %v166
      %v168 = vld [vmem:[%s1] sm:$0x1]
      %v170 = vperm.slane %v168, 0
      %v172 = vmul.f32 %v167, %v170
      %v173 = vld [vmem:[%s2] sm:$0x1]
      %v175 = vperm.slane %v173, 0
      %v177 = vadd.f32 %v172, %v175
      %v178 = vmax.f32 %v177, 0.0
      %v179 = vpack.c.bf16 %v178, %v178
      %180 = vst [vmem:[%s165] sm:$0xf] %v179
      %p181 = scmp.lt.s32.totalorder %s14, 1
      %s182 = scalar_select %p181, %s14, 1
      %s183 = smul.addr %s182, 4
      %s184 = scalar_lea.vmem %s3, %s183
      // Predicated region
      $region33: #{resnet18_client_forward.9} parent=31 // pred_check
        %p185 = pneg %p100
      $region34: #{resnet18_client_forward.9} parent=31 // pred_check_branch
        %187 = sbr.rel (%p185) target = $region36
      $region35: #{resnet18_client_forward.9} parent=31 // pred_region
        _
      $region36: #{resnet18_client_forward.9} parent=31 // pred_fallthru
        _
    $region32: #{resnet18_client_forward.9} parent=5 // pred_fallthru
      _
    %p188 = scmp.le.s32.totalorder 2, %s9
    // Predicated region
    $region37: #{resnet18_client_forward.9} parent=5 // pred_check
      %p189 = pneg %p188
    $region38: #{resnet18_client_forward.9} parent=5 // pred_check_branch
      %191 = sbr.rel (%p189) target = $region40
    $region39: #{resnet18_client_forward.9} parent=5 // pred_region
      %s192 = ssub.s32 %s9, 2
      // Predicated region
      $region41: #{resnet18_client_forward.9} parent=39 // pred_check
        %p193 = pneg %p106
      $region42: #{resnet18_client_forward.9} parent=39 // pred_check_branch
        %195 = sbr.rel (%p193) target = $region44
      $region43: #{resnet18_client_forward.9} parent=39 // pred_region
        %p196 = scmp.lt.s32.totalorder %s15, 1
        %s197 = scalar_select %p196, %s15, 1
        %s198 = smul.addr %s197, 4
        %s199 = scalar_lea.vmem %s3, %s198
      $region44: #{resnet18_client_forward.9} parent=39 // pred_fallthru
        _
    $region40: #{resnet18_client_forward.9} parent=5 // pred_fallthru
      _
  $region6: #{resnet18_client_forward.9} parent=0 // loop_footer
    %s13 = sadd.s32 1, %s9
  $region7: #{resnet18_client_forward.9} parent=0 // loop_footer_branch
    %8 = sbr.rel target = $region3
  $region8: #{resnet18_client_forward.9} parent=0 // loop_exit
    _

// kernel: resnet18_client_forward.11
$region0: #{resnet18_client_forward.11}
  #allocation0 [shape = 'u32[]', space=smem, size = 0x4, offset = 0x4, fixed_abs, tag = 'smem constant byte address 0x4 - core index']
  #allocation1 [shape = 'u32[72,128]{1,0:T(1,128)}', space=vmem, size = 0x9000, scoped, tag = 'internal scratch']
  %s0 = inlined_call_operand.vmem [shape: bf16[16,128], index: 0, kind: input, shape index: {}]
  %s1 = inlined_call_operand.vmem [shape: f32[1,128], index: 1, kind: input, shape index: {}]
  %s2 = inlined_call_operand.vmem [shape: f32[1,128], index: 2, kind: input, shape index: {}]
  %s3 = inlined_call_operand.vmem [shape: bf16[16,128], index: 3, kind: input, shape index: {}]
  %s4 = inlined_call_operand.vmem [shape: f32[16,128], index: 4, kind: output, shape index: {}]
  %s5 = sld [smem:[#allocation0]]
  $region49: #{resnet18_client_forward.11} parent=0
    _
  %s7 = ssub.s32 1, %s5
  %s8 = scalar_select 0, %s7, %s5
  loop: start=0, step=1, limit=4
  $region2: #{resnet18_client_forward.11} parent=0 // loop_pre_header
    _
  $region3: #{resnet18_client_forward.11} parent=0 // loop_header
    %s10 = sphi 0, %s14
    %p11 = scmp.ge.s32.totalorder %s10, 4
    %s20 = sphi 0, %s22
    %s23 = sphi 0, %s20
    %s24 = sphi 0, %s23
    %s40 = sphi 0, %s24
    %s44 = sphi 0, %s44
    %s46 = sphi 0, %s44
    %s47 = sphi 0, %s46
    %s61 = sphi 0, %s47
    %s65 = sphi 0, %s65
    %s67 = sphi 0, %s65
    %s68 = sphi 0, %s67
    %s82 = sphi 0, %s68
    %s88 = sphi 0, %s90
    %s91 = sphi 0, %s88
    %s92 = sphi 0, %s91
    %s108 = sphi 0, %s92
    %s114 = sphi 0, %s116
    %s117 = sphi 0, %s114
    %s118 = sphi 0, %s117
    %s134 = sphi 0, %s118
  $region4: #{resnet18_client_forward.11} parent=0 // loop_header_branch
    %13 = sbr.rel (%p11) target = $region8
  $region5: #{resnet18_client_forward.11} parent=0 // loop_body
    %s15 = ssub.s32 %s10, 1
    %s16 = ssub.s32 %s10, 2
    %s17 = sadd.s32 %s10, 1
    %s18 = ssub.s32 %s10, %s17
    %p19 = scmp.eq.s32.totalorder %s18, 0
    %s21 = sadd.s32 %s20, 1
    %s22 = scalar_select %p19, %s20, %s21
    %p25 = pneg %p19
    %p26 = scmp.eq.s32.totalorder %s10, 1
    %p27 = por %p25, %p26
    %p28 = scmp.ne.s32.totalorder %s20, %s23
    %p29 = scmp.eq.s32.totalorder %s10, 0
    %p30 = por %p28, %p29
    %p31 = scmp.ne.s32.totalorder %s20, %s23
    %p32 = scmp.eq.s32.totalorder %s15, 1
    %p33 = por %p31, %p32
    %p34 = scmp.ne.s32.totalorder %s23, %s24
    %p35 = scmp.eq.s32.totalorder %s15, 0
    %p36 = por %p34, %p35
    %p37 = scmp.ne.s32.totalorder %s23, %s24
    %p38 = scmp.eq.s32.totalorder %s16, 1
    %p39 = por %p37, %p38
    %p41 = scmp.ne.s32.totalorder %s24, %s40
    %p42 = scmp.eq.s32.totalorder %s16, 0
    %p43 = por %p41, %p42
    %s45 = sadd.s32 %s44, 1
    %p48 = scmp.eq.s32.totalorder %s10, 1
    %p49 = scmp.ne.s32.totalorder %s44, %s46
    %p50 = scmp.eq.s32.totalorder %s10, 0
    %p51 = por %p49, %p50
    %p52 = scmp.ne.s32.totalorder %s44, %s46
    %p53 = scmp.eq.s32.totalorder %s15, 1
    %p54 = por %p52, %p53
    %p55 = scmp.ne.s32.totalorder %s46, %s47
    %p56 = scmp.eq.s32.totalorder %s15, 0
    %p57 = por %p55, %p56
    %p58 = scmp.ne.s32.totalorder %s46, %s47
    %p59 = scmp.eq.s32.totalorder %s16, 1
    %p60 = por %p58, %p59
    %p62 = scmp.ne.s32.totalorder %s47, %s61
    %p63 = scmp.eq.s32.totalorder %s16, 0
    %p64 = por %p62, %p63
    %s66 = sadd.s32 %s65, 1
    %p69 = scmp.eq.s32.totalorder %s10, 1
    %p70 = scmp.ne.s32.totalorder %s65, %s67
    %p71 = scmp.eq.s32.totalorder %s10, 0
    %p72 = por %p70, %p71
    %p73 = scmp.ne.s32.totalorder %s65, %s67
    %p74 = scmp.eq.s32.totalorder %s15, 1
    %p75 = por %p73, %p74
    %p76 = scmp.ne.s32.totalorder %s67, %s68
    %p77 = scmp.eq.s32.totalorder %s15, 0
    %p78 = por %p76, %p77
    %p79 = scmp.ne.s32.totalorder %s67, %s68
    %p80 = scmp.eq.s32.totalorder %s16, 1
    %p81 = por %p79, %p80
    %p83 = scmp.ne.s32.totalorder %s68, %s82
    %p84 = scmp.eq.s32.totalorder %s16, 0
    %p85 = por %p83, %p84
    %s86 = ssub.s32 %s10, %s17
    %p87 = scmp.eq.s32.totalorder %s86, 0
    %s89 = sadd.s32 %s88, 1
    %s90 = scalar_select %p87, %s88, %s89
    %p93 = pneg %p87
    %p94 = scmp.eq.s32.totalorder %s10, 1
    %p95 = por %p93, %p94
    %p96 = scmp.ne.s32.totalorder %s88, %s91
    %p97 = scmp.eq.s32.totalorder %s10, 0
    %p98 = por %p96, %p97
    %p99 = scmp.ne.s32.totalorder %s88, %s91
    %p100 = scmp.eq.s32.totalorder %s15, 1
    %p101 = por %p99, %p100
    %p102 = scmp.ne.s32.totalorder %s91, %s92
    %p103 = scmp.eq.s32.totalorder %s15, 0
    %p104 = por %p102, %p103
    %p105 = scmp.ne.s32.totalorder %s91, %s92
    %p106 = scmp.eq.s32.totalorder %s16, 1
    %p107 = por %p105, %p106
    %p109 = scmp.ne.s32.totalorder %s92, %s108
    %p110 = scmp.eq.s32.totalorder %s16, 0
    %p111 = por %p109, %p110
    %s112 = ssub.s32 %s10, %s17
    %p113 = scmp.eq.s32.totalorder %s112, 0
    %s115 = sadd.s32 %s114, 1
    %s116 = scalar_select %p113, %s114, %s115
    %p119 = pneg %p113
    %p120 = scmp.eq.s32.totalorder %s10, 1
    %p121 = por %p119, %p120
    %p122 = scmp.ne.s32.totalorder %s114, %s117
    %p123 = scmp.eq.s32.totalorder %s10, 0
    %p124 = por %p122, %p123
    %p125 = scmp.ne.s32.totalorder %s114, %s117
    %p126 = scmp.eq.s32.totalorder %s15, 1
    %p127 = por %p125, %p126
    %p128 = scmp.ne.s32.totalorder %s117, %s118
    %p129 = scmp.eq.s32.totalorder %s15, 0
    %p130 = por %p128, %p129
    %p131 = scmp.ne.s32.totalorder %s117, %s118
    %p132 = scmp.eq.s32.totalorder %s16, 1
    %p133 = por %p131, %p132
    %p135 = scmp.ne.s32.totalorder %s118, %s134
    %p136 = scmp.eq.s32.totalorder %s16, 0
    %p137 = por %p135, %p136
    %p138 = scmp.le.s32.totalorder 1, %s10
    %p139 = scmp.lt.s32.totalorder %s10, 3
    %p140 = pnand %p138, %p139
    %p141 = pneg %p140
    // Predicated region
    $region9: #{resnet18_client_forward.11} parent=5 // pred_check
      _
    $region10: #{resnet18_client_forward.11} parent=5 // pred_check_branch
      %143 = sbr.rel (%p140) target = $region12
    $region11: #{resnet18_client_forward.11} parent=5 // pred_region
      %s144 = ssub.s32 %s10, 1
      // Predicated region
      $region13: #{resnet18_client_forward.11} parent=11 // pred_check
        %p145 = pneg %p57
      $region14: #{resnet18_client_forward.11} parent=11 // pred_check_branch
        %147 = sbr.rel (%p145) target = $region16
      $region15: #{resnet18_client_forward.11} parent=11 // pred_region
        _
      $region16: #{resnet18_client_forward.11} parent=11 // pred_fallthru
        _
      // Predicated region
      $region17: #{resnet18_client_forward.11} parent=11 // pred_check
        %p148 = pneg %p78
      $region18: #{resnet18_client_forward.11} parent=11 // pred_check_branch
        %150 = sbr.rel (%p148) target = $region20
      $region19: #{resnet18_client_forward.11} parent=11 // pred_region
        _
      $region20: #{resnet18_client_forward.11} parent=11 // pred_fallthru
        _
    $region12: #{resnet18_client_forward.11} parent=5 // pred_fallthru
      _
    %p151 = scmp.lt.s32.totalorder %s10, 2
    // Predicated region
    $region21: #{resnet18_client_forward.11} parent=5 // pred_check
      %p152 = pneg %p151
    $region22: #{resnet18_client_forward.11} parent=5 // pred_check_branch
      %154 = sbr.rel (%p152) target = $region24
    $region23: #{resnet18_client_forward.11} parent=5 // pred_region
      // Predicated region
      $region25: #{resnet18_client_forward.11} parent=23 // pred_check
        %p155 = pneg %p30
      $region26: #{resnet18_client_forward.11} parent=23 // pred_check_branch
        %157 = sbr.rel (%p155) target = $region28
      $region27: #{resnet18_client_forward.11} parent=23 // pred_region
        %p158 = scmp.lt.s32.totalorder %s10, 1
        %s159 = scalar_select %p158, %s10, 1
        %s160 = smul.addr %s159, 4
        %s161 = scalar_lea.vmem %s0, %s160
      $region28: #{resnet18_client_forward.11} parent=23 // pred_fallthru
        _
      // Predicated region
      $region29: #{resnet18_client_forward.11} parent=23 // pred_check
        %p162 = pneg %p98
      $region30: #{resnet18_client_forward.11} parent=23 // pred_check_branch
        %164 = sbr.rel (%p162) target = $region32
      $region31: #{resnet18_client_forward.11} parent=23 // pred_region
        %p165 = scmp.lt.s32.totalorder %s10, 1
        %s166 = scalar_select %p165, %s10, 1
        %s167 = smul.addr %s166, 4
        %s168 = scalar_lea.vmem %s3, %s167
      $region32: #{resnet18_client_forward.11} parent=23 // pred_fallthru
        _
    $region24: #{resnet18_client_forward.11} parent=5 // pred_fallthru
      _
    %p169 = scmp.le.s32.totalorder 1, %s10
    %p170 = scmp.lt.s32.totalorder %s10, 3
    %p171 = pnand %p169, %p170
    %p172 = pneg %p171
    // Predicated region
    $region33: #{resnet18_client_forward.11} parent=5 // pred_check
      _
    $region34: #{resnet18_client_forward.11} parent=5 // pred_check_branch
      %174 = sbr.rel (%p171) target = $region36
    $region35: #{resnet18_client_forward.11} parent=5 // pred_region
      %s175 = ssub.s32 %s10, 1
      %p176 = scmp.lt.s32.totalorder %s15, 1
      %s177 = scalar_select %p176, %s15, 1
      %s178 = smul.addr %s177, 4
      %s179 = scalar_lea.vmem %s0, %s178
      %p180 = pneg %p36
      %p181 = pneg %p33
      %p182 = pneg %p57
      %p183 = pneg %p54
      %p184 = pneg %p78
      %p185 = pneg %p75
      %p186 = scmp.lt.s32.totalorder %s15, 1
      %s187 = scalar_select %p186, %s15, 1
      %s188 = smul.addr %s187, 4
      %s189 = scalar_lea.vmem %s3, %s188
      %p190 = pneg %p104
      %p191 = pneg %p101
      %p192 = pneg %p130
      %p193 = pneg %p127
      %p194 = scmp.lt.s32.totalorder %s15, 1
      %s195 = scalar_select %p194, %s15, 1
      %s196 = smul.addr %s195, 8
      %s197 = scalar_lea.vmem %s4, %s196
      %p198 = scmp.lt.s32.totalorder %s15, 1
      %s199 = scalar_select %p198, %s15, 1
      %s200 = smul.addr %s199, 4
      %s201 = scalar_lea.vmem %s0, %s200
      %p202 = scmp.lt.s32.totalorder %s15, 1
      %s203 = scalar_select %p202, %s15, 1
      %s204 = smul.addr %s203, 4
      %s205 = scalar_lea.vmem %s3, %s204
      %p206 = scmp.lt.s32.totalorder %s15, 1
      %s207 = scalar_select %p206, %s15, 1
      %s208 = smul.addr %s207, 8
      %s209 = scalar_lea.vmem %s4, %s208
      %v210 = vld [vmem:[%s201] sm:$0xf]
      %v211 = vunpack.c.l.bf16 %v210
      %v212 = vld [vmem:[%s1] sm:$0x1]
      %v214 = vperm.slane %v212, 0
      %v216 = vmul.f32 %v211, %v214
      %v217 = vld [vmem:[%s2] sm:$0x1]
      %v219 = vperm.slane %v217, 0
      %v221 = vadd.f32 %v216, %v219
      %v222 = vld [vmem:[%s205] sm:$0xf]
      %v223 = vunpack.c.l.bf16 %v222
      %v224 = vadd.f32 %v221, %v223
      %v225 = vmax.f32 %v224, 0.0
      %226 = vst [vmem:[%s209] sm:$0xff] %v225
      %p227 = scmp.lt.s32.totalorder %s15, 1
      %s228 = scalar_select %p227, %s15, 1
      %s229 = smul.addr %s228, 8
      %s230 = scalar_lea.vmem %s4, %s229
      // Predicated region
      $region37: #{resnet18_client_forward.11} parent=35 // pred_check
        %p231 = pneg %p127
      $region38: #{resnet18_client_forward.11} parent=35 // pred_check_branch
        %233 = sbr.rel (%p231) target = $region40
      $region39: #{resnet18_client_forward.11} parent=35 // pred_region
        _
      $region40: #{resnet18_client_forward.11} parent=35 // pred_fallthru
        _
    $region36: #{resnet18_client_forward.11} parent=5 // pred_fallthru
      _
    %p234 = scmp.le.s32.totalorder 2, %s10
    // Predicated region
    $region41: #{resnet18_client_forward.11} parent=5 // pred_check
      %p235 = pneg %p234
    $region42: #{resnet18_client_forward.11} parent=5 // pred_check_branch
      %237 = sbr.rel (%p235) target = $region44
    $region43: #{resnet18_client_forward.11} parent=5 // pred_region
      %s238 = ssub.s32 %s10, 2
      // Predicated region
      $region45: #{resnet18_client_forward.11} parent=43 // pred_check
        %p239 = pneg %p133
      $region46: #{resnet18_client_forward.11} parent=43 // pred_check_branch
        %241 = sbr.rel (%p239) target = $region48
      $region47: #{resnet18_client_forward.11} parent=43 // pred_region
        %p242 = scmp.lt.s32.totalorder %s16, 1
        %s243 = scalar_select %p242, %s16, 1
        %s244 = smul.addr %s243, 8
        %s245 = scalar_lea.vmem %s4, %s244
      $region48: #{resnet18_client_forward.11} parent=43 // pred_fallthru
        _
    $region44: #{resnet18_client_forward.11} parent=5 // pred_fallthru
      _
  $region6: #{resnet18_client_forward.11} parent=0 // loop_footer
    %s14 = sadd.s32 1, %s10
  $region7: #{resnet18_client_forward.11} parent=0 // loop_footer_branch
    %9 = sbr.rel target = $region3
  $region8: #{resnet18_client_forward.11} parent=0 // loop_exit
    _

</llo_original>
